<compile_context>
chip_gen: v7x
topology: tpu7x:2x2x1
jax: 0.10.0
libtpu: 0.0.40
codegen_flags: <defaults>
</compile_context>

<pallas_src>
import functools

import jax
import jax.numpy as jnp
import numpy as np
from jax.experimental import pallas as pl
from jax.experimental.pallas import tpu as pltpu


# -----------------------------------------------------------------------------
# Kernel
# -----------------------------------------------------------------------------
def _make_kernel(T, T_r, L, D, H, B):
    """Builds the Pallas kernel for a (T, T_r, L, D, H, B) configuration."""

    def apply_gates(gates, c_prev):
        # One full-vreg sigmoid + one full-vreg tanh (2 EUP pushes instead of 4),
        # then extract the four H-lane windows.  Lane-window slices are expected
        # to lower to XLU rotates/selects (free slot), not VMEM copies.
        sg = jax.nn.sigmoid(gates)
        th = jnp.tanh(gates)
        i_g = sg[:, 0 * H:1 * H]
        f_g = sg[:, 1 * H:2 * H]
        o_g = sg[:, 3 * H:4 * H]
        g_g = th[:, 2 * H:3 * H]
        c_new = f_g * c_prev + i_g * g_g
        h_new = o_g * jnp.tanh(c_new)
        return h_new, c_new

    def mm(x_f32, w_bf16):
        # bf16 MXU operands, f32 accumulate; elementwise math stays f32.
        return jnp.dot(x_f32.astype(jnp.bfloat16), w_bf16,
                       preferred_element_type=jnp.float32)

    def kernel(*refs):
        # ---- unpack refs ----------------------------------------------------
        it = iter(refs)
        x_ref = next(it); h0_ref = next(it); c0_ref = next(it)
        wih0e_ref = next(it); b0e_ref = next(it); whh0e_ref = next(it)
        enc_hi = [(next(it), next(it), next(it)) for _ in range(L - 1)]
        wd0f_ref = next(it); bd0f_ref = next(it)      # first decoder step (fc_enc folded)
        wd0l_ref = next(it); bd0l_ref = next(it)      # feedback steps (fc_dec folded)
        whh0d_ref = next(it)                          # decoder layer-0 recurrent weight
        dec_hi = [(next(it), next(it), next(it)) for _ in range(L - 1)]
        fcdw_ref = next(it); fcdb_ref = next(it)
        out_ref = next(it)
        h_enc_ref = next(it); c_enc_ref = next(it)
        h_dec_ref = next(it); c_dec_ref = next(it)
        gin_ref = next(it)       # (T*B, 4H) scratch: hoisted encoder layer-0 input proj

        # ---- prologue: ONE (T*B, D) @ (D, 4H) matmul (bias pre-broadcast) ----
        gin_ref[...] = mm(x_ref[...], wih0e_ref[...]) + b0e_ref[...]

        # ---- encoder recurrence (fully unrolled; wavefront overlap emerges
        #      from the data deps: layer-0 of step t+1 only needs h[0] of t) ---
        h = [h0_ref[l] for l in range(L)]
        c = [c0_ref[l] for l in range(L)]
        for t in range(T):
            g0 = gin_ref[pl.ds(t * B, B), :] + mm(h[0], whh0e_ref[...])
            hn, cn = apply_gates(g0, c[0])
            h_new = [hn]; c_new = [cn]
            for l in range(1, L):
                wih_r, whh_r, b_r = enc_hi[l - 1]
                g = mm(h_new[l - 1], wih_r[...]) + mm(h[l], whh_r[...]) + b_r[...]
                hn, cn = apply_gates(g, c[l])
                h_new.append(hn); c_new.append(cn)
            h, c = h_new, c_new

        for l in range(L):
            h_enc_ref[l] = h[l]
            c_enc_ref[l] = c[l]

        # ---- decoder step 0: fc_enc folded into layer-0 input weights --------
        g0 = mm(h[L - 1], wd0f_ref[...]) + mm(h[0], whh0d_ref[...]) + bd0f_ref[...]
        hn, cn = apply_gates(g0, c[0])
        hd = [hn]; cd = [cn]
        for l in range(1, L):
            wih_r, whh_r, b_r = dec_hi[l - 1]
            g = mm(hd[l - 1], wih_r[...]) + mm(h[l], whh_r[...]) + b_r[...]
            hn, cn = apply_gates(g, c[l])
            hd.append(hn); cd.append(cn)
        h_last = [hd[L - 1]]

        # ---- decoder self-feedback steps 1 .. T_r-1 (fully unrolled) ---------
        # fc_dec is fused into wd0l, so each step depends only on the previous
        # LSTM state (no fc_dec matmul on the serial critical path).
        for i in range(1, T_r):
            g0 = (mm(hd[L - 1], wd0l_ref[...]) + mm(hd[0], whh0d_ref[...])
                  + bd0l_ref[...])
            hn, cn = apply_gates(g0, cd[0])
            h_new = [hn]; c_new = [cn]
            for l in range(1, L):
                wih_r, whh_r, b_r = dec_hi[l - 1]
                g = (mm(h_new[l - 1], wih_r[...]) + mm(hd[l], whh_r[...])
                     + b_r[...])
                hn, cn = apply_gates(g, cd[l])
                h_new.append(hn); c_new.append(cn)
            hd, cd = h_new, c_new
            h_last.append(hd[L - 1])

        for l in range(L):
            h_dec_ref[l] = hd[l]
            c_dec_ref[l] = cd[l]

        # ---- epilogue: ONE (T_r*B, H) @ (H, D) output projection -------------
        h_all = jnp.concatenate(h_last, axis=0)          # (T_r*B, H)
        out_ref[...] = mm(h_all, fcdw_ref[...]) + fcdb_ref[...]

    return kernel


# -----------------------------------------------------------------------------
# Wrapper
# -----------------------------------------------------------------------------
@functools.partial(jax.jit, static_argnames=("T", "T_r", "L", "D", "H"))
def sequence2_forward(x, h0_enc, c0_enc, packed_weights, *, T, T_r, L, D, H):
    B = x.shape[1]
    x2 = x.reshape(T * B, D)                 # lane-layout-free reshape outside kernel
    inputs = [x2, h0_enc, c0_enc] + list(packed_weights)
    out_shape = (
        jax.ShapeDtypeStruct((T_r * B, D), jnp.float32),  # outputs (flat, reshaped below)
        jax.ShapeDtypeStruct((L, B, H), jnp.float32),     # h_t_enc
        jax.ShapeDtypeStruct((L, B, H), jnp.float32),     # c_t_enc
        jax.ShapeDtypeStruct((L, B, H), jnp.float32),     # h_t_dec
        jax.ShapeDtypeStruct((L, B, H), jnp.float32),     # c_t_dec
    )
    vmem = pl.BlockSpec(memory_space=pltpu.MemorySpace.VMEM)
    out_flat, he, ce, hd, cd = pl.pallas_call(
        _make_kernel(T, T_r, L, D, H, B),
        out_shape=out_shape,
        in_specs=[vmem] * len(inputs),
        out_specs=tuple(vmem for _ in out_shape),
        scratch_shapes=[
            pltpu.VMEM((T * B, 4 * H), jnp.float32),  # hoisted layer-0 input proj
        ],
    )(*inputs)
    return out_flat.reshape(T_r, B, D), he, ce, hd, cd


# -----------------------------------------------------------------------------
# Deterministic PyTorch-style parameter construction (raw layout)
# -----------------------------------------------------------------------------
def init_params(key, D, H, L):
    def unif(k, shape, bound):
        return jax.random.uniform(k, shape, jnp.float32, -bound, bound)

    def lstm_stack(key):
        layers = []
        bound = 1.0 / float(np.sqrt(H))
        for l in range(L):
            in_dim = D if l == 0 else H
            key, k1, k2, k3, k4 = jax.random.split(key, 5)
            layers.append((unif(k1, (4 * H, in_dim), bound),   # weight_ih
                           unif(k2, (4 * H, H), bound),        # weight_hh
                           unif(k3, (4 * H,), bound),          # bias_ih
                           unif(k4, (4 * H,), bound)))         # bias_hh
        return key, layers

    def linear(key, out_dim, in_dim):
        b = 1.0 / float(np.sqrt(in_dim))
        key, k1, k2 = jax.random.split(key, 3)
        return key, (unif(k1, (out_dim, in_dim), b), unif(k2, (out_dim,), b))

    key, enc = lstm_stack(key)
    key, fce = linear(key, D, H)
    key, dec = lstm_stack(key)
    key, fcd = linear(key, D, H)
    return {"enc": enc, "fce": fce, "dec": dec, "fcd": fcd}


# -----------------------------------------------------------------------------
# Pack raw params into kernel layout: fused fc_enc/fc_dec feedback weights,
# SEPARATE (H,4H) input/recurrent halves (two accumulating matmuls per cell,
# no lane-axis concat), bf16 MXU operands, pre-broadcast biases.  All
# compositions are done in f32 before the bf16 cast.
# -----------------------------------------------------------------------------
def pack_params(p, B, T, T_r, D, H, L):
    bf = jnp.bfloat16
    G = 4 * H

    def bcast(b, rows):
        return jnp.broadcast_to(b[None, :], (rows, b.shape[0]))

    enc0_wih, enc0_whh, enc0_bih, enc0_bhh = p["enc"][0]
    packed = [
        enc0_wih.T.astype(bf),                      # (D, 4H)   layer-0 input weight
        bcast(enc0_bih + enc0_bhh, T * B),          # (T*B, 4H) prologue fused bias
        enc0_whh.T.astype(bf),                      # (H, 4H)   layer-0 recurrent weight
    ]
    for l in range(1, L):
        wih, whh, bih, bhh = p["enc"][l]
        packed.append(wih.T.astype(bf))             # (H, 4H)
        packed.append(whh.T.astype(bf))             # (H, 4H)
        packed.append(bcast(bih + bhh, B))          # (B, 4H)

    fce_w, fce_b = p["fce"]
    fcd_w, fcd_b = p["fcd"]
    dec0_wih, dec0_whh, dec0_bih, dec0_bhh = p["dec"][0]
    wih0d_t = dec0_wih.T                      # (D, 4H)
    b0d = (dec0_bih + dec0_bhh)[None, :]      # (1, 4H)

    # fc_enc folded into first decoder step's layer-0 input weights.
    wfb_enc = fce_w.T @ wih0d_t               # (H, 4H)
    bfb_enc = fce_b[None, :] @ wih0d_t + b0d
    # fc_dec folded into feedback steps' layer-0 input weights.
    wfb_dec = fcd_w.T @ wih0d_t
    bfb_dec = fcd_b[None, :] @ wih0d_t + b0d

    packed.append(wfb_enc.astype(bf))                     # (H, 4H)
    packed.append(jnp.broadcast_to(bfb_enc, (B, G)))
    packed.append(wfb_dec.astype(bf))                     # (H, 4H)
    packed.append(jnp.broadcast_to(bfb_dec, (B, G)))
    packed.append(dec0_whh.T.astype(bf))                  # (H, 4H) dec layer-0 recurrent

    for l in range(1, L):
        wih, whh, bih, bhh = p["dec"][l]
        packed.append(wih.T.astype(bf))
        packed.append(whh.T.astype(bf))
        packed.append(bcast(bih + bhh, B))

    packed.append(fcd_w.T.astype(bf))                               # (H, D)
    packed.append(jnp.broadcast_to(fcd_b[None, :], (T_r * B, D)))   # (T_r*B, D)
    return packed


# -----------------------------------------------------------------------------
# Pure-JAX f32 reference mirroring the PyTorch eval/conditional=False path
# -----------------------------------------------------------------------------
def reference_forward(x, h0, c0, params, T, T_r, L, D, H):
    def cell(layer, x_in, h, c):
        wih, whh, bih, bhh = layer
        g = x_in @ wih.T + bih + h @ whh.T + bhh
        i = jax.nn.sigmoid(g[:, 0:H]); f = jax.nn.sigmoid(g[:, H:2 * H])
        gg = jnp.tanh(g[:, 2 * H:3 * H]); o = jax.nn.sigmoid(g[:, 3 * H:4 * H])
        c_new = f * c + i * gg
        return o * jnp.tanh(c_new), c_new

    h = [h0[l] for l in range(L)]
    c = [c0[l] for l in range(L)]
    for t in range(T):
        h[0], c[0] = cell(params["enc"][0], x[t], h[0], c[0])
        for l in range(1, L):
            h[l], c[l] = cell(params["enc"][l], h[l - 1], h[l], c[l])
    fce_w, fce_b = params["fce"]
    fcd_w, fcd_b = params["fcd"]
    out = h[-1] @ fce_w.T + fce_b
    hd, cd = list(h), list(c)
    outs = []
    for _ in range(T_r):
        hd[0], cd[0] = cell(params["dec"][0], out, hd[0], cd[0])
        for l in range(1, L):
            hd[l], cd[l] = cell(params["dec"][l], hd[l - 1], hd[l], cd[l])
        out = hd[-1] @ fcd_w.T + fcd_b
        outs.append(out)
    return (jnp.stack(outs, 0), jnp.stack(h, 0), jnp.stack(c, 0),
            jnp.stack(hd, 0), jnp.stack(cd, 0))


# -----------------------------------------------------------------------------
if __name__ == "__main__":
    # small shapes consistent with the module
    T, T_r = 8, 8          # encoder seq len, decoder (input_r) seq len
    B = 2                  # batch (dim 1 of `input`)
    D = 4                  # input_dim / output_dim
    H = 32                 # hidden_size
    L = 2                  # numlayers

    key = jax.random.PRNGKey(0)
    key, kx = jax.random.split(key)
    x = jax.random.normal(kx, (T, B, D), jnp.float32)
    h0_enc = jnp.zeros((L, B, H), jnp.float32)
    c0_enc = jnp.zeros((L, B, H), jnp.float32)

    params = init_params(key, D, H, L)
    packed = tuple(pack_params(params, B, T, T_r, D, H, L))

    outs = sequence2_forward(x, h0_enc, c0_enc, packed,
                             T=T, T_r=T_r, L=L, D=D, H=H)
    outs = jax.block_until_ready(outs)

    # sanity check against the pure-f32 reference (tolerance covers bf16 MXU
    # operands + fused-weight accumulation-order differences)
    ref = reference_forward(x, h0_enc, c0_enc, params, T, T_r, L, D, H)
    for got, want in zip(outs, ref):
        np.testing.assert_allclose(np.asarray(got), np.asarray(want),
                                   atol=2e-2, rtol=2e-2)

    print("KERNEL_OK")
</pallas_src>

<mosaic_0001>
module attributes {stable_mosaic.version = 11 : i64} {
  func.func @kernel(%arg0: memref<16x4xf32, #tpu.memory_space<vmem>>, %arg1: memref<2x2x32xf32, #tpu.memory_space<vmem>>, %arg2: memref<2x2x32xf32, #tpu.memory_space<vmem>>, %arg3: memref<4x128xbf16, #tpu.memory_space<vmem>>, %arg4: memref<16x128xf32, #tpu.memory_space<vmem>>, %arg5: memref<32x128xbf16, #tpu.memory_space<vmem>>, %arg6: memref<32x128xbf16, #tpu.memory_space<vmem>>, %arg7: memref<32x128xbf16, #tpu.memory_space<vmem>>, %arg8: memref<2x128xf32, #tpu.memory_space<vmem>>, %arg9: memref<32x128xbf16, #tpu.memory_space<vmem>>, %arg10: memref<2x128xf32, #tpu.memory_space<vmem>>, %arg11: memref<32x128xbf16, #tpu.memory_space<vmem>>, %arg12: memref<2x128xf32, #tpu.memory_space<vmem>>, %arg13: memref<32x128xbf16, #tpu.memory_space<vmem>>, %arg14: memref<32x128xbf16, #tpu.memory_space<vmem>>, %arg15: memref<32x128xbf16, #tpu.memory_space<vmem>>, %arg16: memref<2x128xf32, #tpu.memory_space<vmem>>, %arg17: memref<32x4xbf16, #tpu.memory_space<vmem>>, %arg18: memref<16x4xf32, #tpu.memory_space<vmem>>, %arg19: memref<16x4xf32, #tpu.memory_space<vmem>>, %arg20: memref<2x2x32xf32, #tpu.memory_space<vmem>>, %arg21: memref<2x2x32xf32, #tpu.memory_space<vmem>>, %arg22: memref<2x2x32xf32, #tpu.memory_space<vmem>>, %arg23: memref<2x2x32xf32, #tpu.memory_space<vmem>>, %arg24: memref<16x128xf32, #tpu.memory_space<vmem>>) attributes {dimension_semantics = [], scalar_prefetch = 0 : i64, scratch_operands = 1 : i64, tpu.core_type = #tpu.core_type<tc>} {
    %c0 = arith.constant 0 : index
    %c0_0 = arith.constant 0 : index
    %0 = vector.load %arg0[%c0, %c0_0] : memref<16x4xf32, #tpu.memory_space<vmem>>, vector<16x4xf32>
    %c0_1 = arith.constant 0 : index
    %c0_2 = arith.constant 0 : index
    %1 = vector.load %arg3[%c0_1, %c0_2] : memref<4x128xbf16, #tpu.memory_space<vmem>>, vector<4x128xbf16>
    %2 = arith.truncf %0 : vector<16x4xf32> to vector<16x4xbf16>
    %cst = arith.constant dense<0.000000e+00> : vector<16x128xf32>
    %3 = tpu.matmul %2, %1, %cst {dimension_numbers = #tpu.dot_dimension_numbers<[1], [0], [0], [1], [0, 0, 1, 1], [], []>} : vector<16x4xbf16>, vector<4x128xbf16>, vector<16x128xf32> -> vector<16x128xf32>
    %c0_3 = arith.constant 0 : index
    %c0_4 = arith.constant 0 : index
    %4 = vector.load %arg4[%c0_3, %c0_4] : memref<16x128xf32, #tpu.memory_space<vmem>>, vector<16x128xf32>
    %5 = arith.addf %3, %4 : vector<16x128xf32>
    %c0_5 = arith.constant 0 : index
    %c0_6 = arith.constant 0 : index
    %6 = vector.load %arg24[%c0_5, %c0_6] : memref<16x128xf32, #tpu.memory_space<vmem>>, vector<16x128xf32>
    tpu.vector_store %arg24[%c0_5, %c0_6], %5 {strides = array<i32>} : memref<16x128xf32, #tpu.memory_space<vmem>>, vector<16x128xf32>,
    %c0_7 = arith.constant 0 : index
    %c0_8 = arith.constant 0 : index
    %c0_9 = arith.constant 0 : index
    %7 = vector.load %arg1[%c0_7, %c0_8, %c0_9] : memref<2x2x32xf32, #tpu.memory_space<vmem>>, vector<1x2x32xf32>
    %8 = vector.shape_cast %7 : vector<1x2x32xf32> to vector<2x32xf32>
    %c1 = arith.constant 1 : index
    %c0_10 = arith.constant 0 : index
    %c0_11 = arith.constant 0 : index
    %9 = vector.load %arg1[%c1, %c0_10, %c0_11] : memref<2x2x32xf32, #tpu.memory_space<vmem>>, vector<1x2x32xf32>
    %10 = vector.shape_cast %9 : vector<1x2x32xf32> to vector<2x32xf32>
    %c0_12 = arith.constant 0 : index
    %c0_13 = arith.constant 0 : index
    %c0_14 = arith.constant 0 : index
    %11 = vector.load %arg2[%c0_12, %c0_13, %c0_14] : memref<2x2x32xf32, #tpu.memory_space<vmem>>, vector<1x2x32xf32>
    %12 = vector.shape_cast %11 : vector<1x2x32xf32> to vector<2x32xf32>
    %c1_15 = arith.constant 1 : index
    %c0_16 = arith.constant 0 : index
    %c0_17 = arith.constant 0 : index
    %13 = vector.load %arg2[%c1_15, %c0_16, %c0_17] : memref<2x2x32xf32, #tpu.memory_space<vmem>>, vector<1x2x32xf32>
    %14 = vector.shape_cast %13 : vector<1x2x32xf32> to vector<2x32xf32>
    %c0_18 = arith.constant 0 : index
    %c0_19 = arith.constant 0 : index
    %15 = vector.load %arg24[%c0_18, %c0_19] : memref<16x128xf32, #tpu.memory_space<vmem>>, vector<2x128xf32>
    %c0_20 = arith.constant 0 : index
    %c0_21 = arith.constant 0 : index
    %16 = vector.load %arg5[%c0_20, %c0_21] : memref<32x128xbf16, #tpu.memory_space<vmem>>, vector<32x128xbf16>
    %17 = arith.truncf %8 : vector<2x32xf32> to vector<2x32xbf16>
    %cst_22 = arith.constant dense<0.000000e+00> : vector<2x128xf32>
    %18 = tpu.matmul %17, %16, %cst_22 {dimension_numbers = #tpu.dot_dimension_numbers<[1], [0], [0], [1], [0, 0, 1, 1], [], []>} : vector<2x32xbf16>, vector<32x128xbf16>, vector<2x128xf32> -> vector<2x128xf32>
    %19 = arith.addf %15, %18 : vector<2x128xf32>
    %20 = arith.negf %19 : vector<2x128xf32>
    %21 = math.exp %20 : vector<2x128xf32>
    %cst_23 = arith.constant 1.000000e+00 : f32
    %22 = vector.broadcast %cst_23 : f32 to vector<2x128xf32>
    %23 = arith.addf %22, %21 : vector<2x128xf32>
    %24 = arith.divf %22, %23 : vector<2x128xf32>
    %25 = math.tanh %19 : vector<2x128xf32>
    %26 = vector.extract_strided_slice %24 {offsets = [0, 0], sizes = [2, 32], strides = [1, 1]} : vector<2x128xf32> to vector<2x32xf32>
    %27 = vector.extract_strided_slice %24 {offsets = [0, 32], sizes = [2, 32], strides = [1, 1]} : vector<2x128xf32> to vector<2x32xf32>
    %28 = vector.extract_strided_slice %24 {offsets = [0, 96], sizes = [2, 32], strides = [1, 1]} : vector<2x128xf32> to vector<2x32xf32>
    %29 = vector.extract_strided_slice %25 {offsets = [0, 64], sizes = [2, 32], strides = [1, 1]} : vector<2x128xf32> to vector<2x32xf32>
    %30 = arith.mulf %27, %12 : vector<2x32xf32>
    %31 = arith.mulf %26, %29 : vector<2x32xf32>
    %32 = arith.addf %30, %31 : vector<2x32xf32>
    %33 = math.tanh %32 : vector<2x32xf32>
    %34 = arith.mulf %28, %33 : vector<2x32xf32>
    %c0_24 = arith.constant 0 : index
    %c0_25 = arith.constant 0 : index
    %35 = vector.load %arg6[%c0_24, %c0_25] : memref<32x128xbf16, #tpu.memory_space<vmem>>, vector<32x128xbf16>
    %36 = arith.truncf %34 : vector<2x32xf32> to vector<2x32xbf16>
    %cst_26 = arith.constant dense<0.000000e+00> : vector<2x128xf32>
    %37 = tpu.matmul %36, %35, %cst_26 {dimension_numbers = #tpu.dot_dimension_numbers<[1], [0], [0], [1], [0, 0, 1, 1], [], []>} : vector<2x32xbf16>, vector<32x128xbf16>, vector<2x128xf32> -> vector<2x128xf32>
    %c0_27 = arith.constant 0 : index
    %c0_28 = arith.constant 0 : index
    %38 = vector.load %arg7[%c0_27, %c0_28] : memref<32x128xbf16, #tpu.memory_space<vmem>>, vector<32x128xbf16>
    %39 = arith.truncf %10 : vector<2x32xf32> to vector<2x32xbf16>
    %cst_29 = arith.constant dense<0.000000e+00> : vector<2x128xf32>
    %40 = tpu.matmul %39, %38, %cst_29 {dimension_numbers = #tpu.dot_dimension_numbers<[1], [0], [0], [1], [0, 0, 1, 1], [], []>} : vector<2x32xbf16>, vector<32x128xbf16>, vector<2x128xf32> -> vector<2x128xf32>
    %41 = arith.addf %37, %40 : vector<2x128xf32>
    %c0_30 = arith.constant 0 : index
    %c0_31 = arith.constant 0 : index
    %42 = vector.load %arg8[%c0_30, %c0_31] : memref<2x128xf32, #tpu.memory_space<vmem>>, vector<2x128xf32>
    %43 = arith.addf %41, %42 : vector<2x128xf32>
    %44 = arith.negf %43 : vector<2x128xf32>
    %45 = math.exp %44 : vector<2x128xf32>
    %cst_32 = arith.constant 1.000000e+00 : f32
    %46 = vector.broadcast %cst_32 : f32 to vector<2x128xf32>
    %47 = arith.addf %46, %45 : vector<2x128xf32>
    %48 = arith.divf %46, %47 : vector<2x128xf32>
    %49 = math.tanh %43 : vector<2x128xf32>
    %50 = vector.extract_strided_slice %48 {offsets = [0, 0], sizes = [2, 32], strides = [1, 1]} : vector<2x128xf32> to vector<2x32xf32>
    %51 = vector.extract_strided_slice %48 {offsets = [0, 32], sizes = [2, 32], strides = [1, 1]} : vector<2x128xf32> to vector<2x32xf32>
    %52 = vector.extract_strided_slice %48 {offsets = [0, 96], sizes = [2, 32], strides = [1, 1]} : vector<2x128xf32> to vector<2x32xf32>
    %53 = vector.extract_strided_slice %49 {offsets = [0, 64], sizes = [2, 32], strides = [1, 1]} : vector<2x128xf32> to vector<2x32xf32>
    %54 = arith.mulf %51, %14 : vector<2x32xf32>
    %55 = arith.mulf %50, %53 : vector<2x32xf32>
    %56 = arith.addf %54, %55 : vector<2x32xf32>
    %57 = math.tanh %56 : vector<2x32xf32>
    %58 = arith.mulf %52, %57 : vector<2x32xf32>
    %c2 = arith.constant 2 : index
    %c0_33 = arith.constant 0 : index
    %59 = vector.load %arg24[%c2, %c0_33] : memref<16x128xf32, #tpu.memory_space<vmem>>, vector<2x128xf32>
    %c0_34 = arith.constant 0 : index
    %c0_35 = arith.constant 0 : index
    %60 = vector.load %arg5[%c0_34, %c0_35] : memref<32x128xbf16, #tpu.memory_space<vmem>>, vector<32x128xbf16>
    %61 = arith.truncf %34 : vector<2x32xf32> to vector<2x32xbf16>
    %cst_36 = arith.constant dense<0.000000e+00> : vector<2x128xf32>
    %62 = tpu.matmul %61, %60, %cst_36 {dimension_numbers = #tpu.dot_dimension_numbers<[1], [0], [0], [1], [0, 0, 1, 1], [], []>} : vector<2x32xbf16>, vector<32x128xbf16>, vector<2x128xf32> -> vector<2x128xf32>
    %63 = arith.addf %59, %62 : vector<2x128xf32>
    %64 = arith.negf %63 : vector<2x128xf32>
    %65 = math.exp %64 : vector<2x128xf32>
    %cst_37 = arith.constant 1.000000e+00 : f32
    %66 = vector.broadcast %cst_37 : f32 to vector<2x128xf32>
    %67 = arith.addf %66, %65 : vector<2x128xf32>
    %68 = arith.divf %66, %67 : vector<2x128xf32>
    %69 = math.tanh %63 : vector<2x128xf32>
    %70 = vector.extract_strided_slice %68 {offsets = [0, 0], sizes = [2, 32], strides = [1, 1]} : vector<2x128xf32> to vector<2x32xf32>
    %71 = vector.extract_strided_slice %68 {offsets = [0, 32], sizes = [2, 32], strides = [1, 1]} : vector<2x128xf32> to vector<2x32xf32>
    %72 = vector.extract_strided_slice %68 {offsets = [0, 96], sizes = [2, 32], strides = [1, 1]} : vector<2x128xf32> to vector<2x32xf32>
    %73 = vector.extract_strided_slice %69 {offsets = [0, 64], sizes = [2, 32], strides = [1, 1]} : vector<2x128xf32> to vector<2x32xf32>
    %74 = arith.mulf %71, %32 : vector<2x32xf32>
    %75 = arith.mulf %70, %73 : vector<2x32xf32>
    %76 = arith.addf %74, %75 : vector<2x32xf32>
    %77 = math.tanh %76 : vector<2x32xf32>
    %78 = arith.mulf %72, %77 : vector<2x32xf32>
    %c0_38 = arith.constant 0 : index
    %c0_39 = arith.constant 0 : index
    %79 = vector.load %arg6[%c0_38, %c0_39] : memref<32x128xbf16, #tpu.memory_space<vmem>>, vector<32x128xbf16>
    %80 = arith.truncf %78 : vector<2x32xf32> to vector<2x32xbf16>
    %cst_40 = arith.constant dense<0.000000e+00> : vector<2x128xf32>
    %81 = tpu.matmul %80, %79, %cst_40 {dimension_numbers = #tpu.dot_dimension_numbers<[1], [0], [0], [1], [0, 0, 1, 1], [], []>} : vector<2x32xbf16>, vector<32x128xbf16>, vector<2x128xf32> -> vector<2x128xf32>
    %c0_41 = arith.constant 0 : index
    %c0_42 = arith.constant 0 : index
    %82 = vector.load %arg7[%c0_41, %c0_42] : memref<32x128xbf16, #tpu.memory_space<vmem>>, vector<32x128xbf16>
    %83 = arith.truncf %58 : vector<2x32xf32> to vector<2x32xbf16>
    %cst_43 = arith.constant dense<0.000000e+00> : vector<2x128xf32>
    %84 = tpu.matmul %83, %82, %cst_43 {dimension_numbers = #tpu.dot_dimension_numbers<[1], [0], [0], [1], [0, 0, 1, 1], [], []>} : vector<2x32xbf16>, vector<32x128xbf16>, vector<2x128xf32> -> vector<2x128xf32>
    %85 = arith.addf %81, %84 : vector<2x128xf32>
    %c0_44 = arith.constant 0 : index
    %c0_45 = arith.constant 0 : index
    %86 = vector.load %arg8[%c0_44, %c0_45] : memref<2x128xf32, #tpu.memory_space<vmem>>, vector<2x128xf32>
    %87 = arith.addf %85, %86 : vector<2x128xf32>
    %88 = arith.negf %87 : vector<2x128xf32>
    %89 = math.exp %88 : vector<2x128xf32>
    %cst_46 = arith.constant 1.000000e+00 : f32
    %90 = vector.broadcast %cst_46 : f32 to vector<2x128xf32>
    %91 = arith.addf %90, %89 : vector<2x128xf32>
    %92 = arith.divf %90, %91 : vector<2x128xf32>
    %93 = math.tanh %87 : vector<2x128xf32>
    %94 = vector.extract_strided_slice %92 {offsets = [0, 0], sizes = [2, 32], strides = [1, 1]} : vector<2x128xf32> to vector<2x32xf32>
    %95 = vector.extract_strided_slice %92 {offsets = [0, 32], sizes = [2, 32], strides = [1, 1]} : vector<2x128xf32> to vector<2x32xf32>
    %96 = vector.extract_strided_slice %92 {offsets = [0, 96], sizes = [2, 32], strides = [1, 1]} : vector<2x128xf32> to vector<2x32xf32>
    %97 = vector.extract_strided_slice %93 {offsets = [0, 64], sizes = [2, 32], strides = [1, 1]} : vector<2x128xf32> to vector<2x32xf32>
    %98 = arith.mulf %95, %56 : vector<2x32xf32>
    %99 = arith.mulf %94, %97 : vector<2x32xf32>
    %100 = arith.addf %98, %99 : vector<2x32xf32>
    %101 = math.tanh %100 : vector<2x32xf32>
    %102 = arith.mulf %96, %101 : vector<2x32xf32>
    %c4 = arith.constant 4 : index
    %c0_47 = arith.constant 0 : index
    %103 = vector.load %arg24[%c4, %c0_47] : memref<16x128xf32, #tpu.memory_space<vmem>>, vector<2x128xf32>
    %c0_48 = arith.constant 0 : index
    %c0_49 = arith.constant 0 : index
    %104 = vector.load %arg5[%c0_48, %c0_49] : memref<32x128xbf16, #tpu.memory_space<vmem>>, vector<32x128xbf16>
    %105 = arith.truncf %78 : vector<2x32xf32> to vector<2x32xbf16>
    %cst_50 = arith.constant dense<0.000000e+00> : vector<2x128xf32>
    %106 = tpu.matmul %105, %104, %cst_50 {dimension_numbers = #tpu.dot_dimension_numbers<[1], [0], [0], [1], [0, 0, 1, 1], [], []>} : vector<2x32xbf16>, vector<32x128xbf16>, vector<2x128xf32> -> vector<2x128xf32>
    %107 = arith.addf %103, %106 : vector<2x128xf32>
    %108 = arith.negf %107 : vector<2x128xf32>
    %109 = math.exp %108 : vector<2x128xf32>
    %cst_51 = arith.constant 1.000000e+00 : f32
    %110 = vector.broadcast %cst_51 : f32 to vector<2x128xf32>
    %111 = arith.addf %110, %109 : vector<2x128xf32>
    %112 = arith.divf %110, %111 : vector<2x128xf32>
    %113 = math.tanh %107 : vector<2x128xf32>
    %114 = vector.extract_strided_slice %112 {offsets = [0, 0], sizes = [2, 32], strides = [1, 1]} : vector<2x128xf32> to vector<2x32xf32>
    %115 = vector.extract_strided_slice %112 {offsets = [0, 32], sizes = [2, 32], strides = [1, 1]} : vector<2x128xf32> to vector<2x32xf32>
    %116 = vector.extract_strided_slice %112 {offsets = [0, 96], sizes = [2, 32], strides = [1, 1]} : vector<2x128xf32> to vector<2x32xf32>
    %117 = vector.extract_strided_slice %113 {offsets = [0, 64], sizes = [2, 32], strides = [1, 1]} : vector<2x128xf32> to vector<2x32xf32>
    %118 = arith.mulf %115, %76 : vector<2x32xf32>
    %119 = arith.mulf %114, %117 : vector<2x32xf32>
    %120 = arith.addf %118, %119 : vector<2x32xf32>
    %121 = math.tanh %120 : vector<2x32xf32>
    %122 = arith.mulf %116, %121 : vector<2x32xf32>
    %c0_52 = arith.constant 0 : index
    %c0_53 = arith.constant 0 : index
    %123 = vector.load %arg6[%c0_52, %c0_53] : memref<32x128xbf16, #tpu.memory_space<vmem>>, vector<32x128xbf16>
    %124 = arith.truncf %122 : vector<2x32xf32> to vector<2x32xbf16>
    %cst_54 = arith.constant dense<0.000000e+00> : vector<2x128xf32>
    %125 = tpu.matmul %124, %123, %cst_54 {dimension_numbers = #tpu.dot_dimension_numbers<[1], [0], [0], [1], [0, 0, 1, 1], [], []>} : vector<2x32xbf16>, vector<32x128xbf16>, vector<2x128xf32> -> vector<2x128xf32>
    %c0_55 = arith.constant 0 : index
    %c0_56 = arith.constant 0 : index
    %126 = vector.load %arg7[%c0_55, %c0_56] : memref<32x128xbf16, #tpu.memory_space<vmem>>, vector<32x128xbf16>
    %127 = arith.truncf %102 : vector<2x32xf32> to vector<2x32xbf16>
    %cst_57 = arith.constant dense<0.000000e+00> : vector<2x128xf32>
    %128 = tpu.matmul %127, %126, %cst_57 {dimension_numbers = #tpu.dot_dimension_numbers<[1], [0], [0], [1], [0, 0, 1, 1], [], []>} : vector<2x32xbf16>, vector<32x128xbf16>, vector<2x128xf32> -> vector<2x128xf32>
    %129 = arith.addf %125, %128 : vector<2x128xf32>
    %c0_58 = arith.constant 0 : index
    %c0_59 = arith.constant 0 : index
    %130 = vector.load %arg8[%c0_58, %c0_59] : memref<2x128xf32, #tpu.memory_space<vmem>>, vector<2x128xf32>
    %131 = arith.addf %129, %130 : vector<2x128xf32>
    %132 = arith.negf %131 : vector<2x128xf32>
    %133 = math.exp %132 : vector<2x128xf32>
    %cst_60 = arith.constant 1.000000e+00 : f32
    %134 = vector.broadcast %cst_60 : f32 to vector<2x128xf32>
    %135 = arith.addf %134, %133 : vector<2x128xf32>
    %136 = arith.divf %134, %135 : vector<2x128xf32>
    %137 = math.tanh %131 : vector<2x128xf32>
    %138 = vector.extract_strided_slice %136 {offsets = [0, 0], sizes = [2, 32], strides = [1, 1]} : vector<2x128xf32> to vector<2x32xf32>
    %139 = vector.extract_strided_slice %136 {offsets = [0, 32], sizes = [2, 32], strides = [1, 1]} : vector<2x128xf32> to vector<2x32xf32>
    %140 = vector.extract_strided_slice %136 {offsets = [0, 96], sizes = [2, 32], strides = [1, 1]} : vector<2x128xf32> to vector<2x32xf32>
    %141 = vector.extract_strided_slice %137 {offsets = [0, 64], sizes = [2, 32], strides = [1, 1]} : vector<2x128xf32> to vector<2x32xf32>
    %142 = arith.mulf %139, %100 : vector<2x32xf32>
    %143 = arith.mulf %138, %141 : vector<2x32xf32>
    %144 = arith.addf %142, %143 : vector<2x32xf32>
    %145 = math.tanh %144 : vector<2x32xf32>
    %146 = arith.mulf %140, %145 : vector<2x32xf32>
    %c6 = arith.constant 6 : index
    %c0_61 = arith.constant 0 : index
    %147 = vector.load %arg24[%c6, %c0_61] : memref<16x128xf32, #tpu.memory_space<vmem>>, vector<2x128xf32>
    %c0_62 = arith.constant 0 : index
    %c0_63 = arith.constant 0 : index
    %148 = vector.load %arg5[%c0_62, %c0_63] : memref<32x128xbf16, #tpu.memory_space<vmem>>, vector<32x128xbf16>
    %149 = arith.truncf %122 : vector<2x32xf32> to vector<2x32xbf16>
    %cst_64 = arith.constant dense<0.000000e+00> : vector<2x128xf32>
    %150 = tpu.matmul %149, %148, %cst_64 {dimension_numbers = #tpu.dot_dimension_numbers<[1], [0], [0], [1], [0, 0, 1, 1], [], []>} : vector<2x32xbf16>, vector<32x128xbf16>, vector<2x128xf32> -> vector<2x128xf32>
    %151 = arith.addf %147, %150 : vector<2x128xf32>
    %152 = arith.negf %151 : vector<2x128xf32>
    %153 = math.exp %152 : vector<2x128xf32>
    %cst_65 = arith.constant 1.000000e+00 : f32
    %154 = vector.broadcast %cst_65 : f32 to vector<2x128xf32>
    %155 = arith.addf %154, %153 : vector<2x128xf32>
    %156 = arith.divf %154, %155 : vector<2x128xf32>
    %157 = math.tanh %151 : vector<2x128xf32>
    %158 = vector.extract_strided_slice %156 {offsets = [0, 0], sizes = [2, 32], strides = [1, 1]} : vector<2x128xf32> to vector<2x32xf32>
    %159 = vector.extract_strided_slice %156 {offsets = [0, 32], sizes = [2, 32], strides = [1, 1]} : vector<2x128xf32> to vector<2x32xf32>
    %160 = vector.extract_strided_slice %156 {offsets = [0, 96], sizes = [2, 32], strides = [1, 1]} : vector<2x128xf32> to vector<2x32xf32>
    %161 = vector.extract_strided_slice %157 {offsets = [0, 64], sizes = [2, 32], strides = [1, 1]} : vector<2x128xf32> to vector<2x32xf32>
    %162 = arith.mulf %159, %120 : vector<2x32xf32>
    %163 = arith.mulf %158, %161 : vector<2x32xf32>
    %164 = arith.addf %162, %163 : vector<2x32xf32>
    %165 = math.tanh %164 : vector<2x32xf32>
    %166 = arith.mulf %160, %165 : vector<2x32xf32>
    %c0_66 = arith.constant 0 : index
    %c0_67 = arith.constant 0 : index
    %167 = vector.load %arg6[%c0_66, %c0_67] : memref<32x128xbf16, #tpu.memory_space<vmem>>, vector<32x128xbf16>
    %168 = arith.truncf %166 : vector<2x32xf32> to vector<2x32xbf16>
    %cst_68 = arith.constant dense<0.000000e+00> : vector<2x128xf32>
    %169 = tpu.matmul %168, %167, %cst_68 {dimension_numbers = #tpu.dot_dimension_numbers<[1], [0], [0], [1], [0, 0, 1, 1], [], []>} : vector<2x32xbf16>, vector<32x128xbf16>, vector<2x128xf32> -> vector<2x128xf32>
    %c0_69 = arith.constant 0 : index
    %c0_70 = arith.constant 0 : index
    %170 = vector.load %arg7[%c0_69, %c0_70] : memref<32x128xbf16, #tpu.memory_space<vmem>>, vector<32x128xbf16>
    %171 = arith.truncf %146 : vector<2x32xf32> to vector<2x32xbf16>
    %cst_71 = arith.constant dense<0.000000e+00> : vector<2x128xf32>
    %172 = tpu.matmul %171, %170, %cst_71 {dimension_numbers = #tpu.dot_dimension_numbers<[1], [0], [0], [1], [0, 0, 1, 1], [], []>} : vector<2x32xbf16>, vector<32x128xbf16>, vector<2x128xf32> -> vector<2x128xf32>
    %173 = arith.addf %169, %172 : vector<2x128xf32>
    %c0_72 = arith.constant 0 : index
    %c0_73 = arith.constant 0 : index
    %174 = vector.load %arg8[%c0_72, %c0_73] : memref<2x128xf32, #tpu.memory_space<vmem>>, vector<2x128xf32>
    %175 = arith.addf %173, %174 : vector<2x128xf32>
    %176 = arith.negf %175 : vector<2x128xf32>
    %177 = math.exp %176 : vector<2x128xf32>
    %cst_74 = arith.constant 1.000000e+00 : f32
    %178 = vector.broadcast %cst_74 : f32 to vector<2x128xf32>
    %179 = arith.addf %178, %177 : vector<2x128xf32>
    %180 = arith.divf %178, %179 : vector<2x128xf32>
    %181 = math.tanh %175 : vector<2x128xf32>
    %182 = vector.extract_strided_slice %180 {offsets = [0, 0], sizes = [2, 32], strides = [1, 1]} : vector<2x128xf32> to vector<2x32xf32>
    %183 = vector.extract_strided_slice %180 {offsets = [0, 32], sizes = [2, 32], strides = [1, 1]} : vector<2x128xf32> to vector<2x32xf32>
    %184 = vector.extract_strided_slice %180 {offsets = [0, 96], sizes = [2, 32], strides = [1, 1]} : vector<2x128xf32> to vector<2x32xf32>
    %185 = vector.extract_strided_slice %181 {offsets = [0, 64], sizes = [2, 32], strides = [1, 1]} : vector<2x128xf32> to vector<2x32xf32>
    %186 = arith.mulf %183, %144 : vector<2x32xf32>
    %187 = arith.mulf %182, %185 : vector<2x32xf32>
    %188 = arith.addf %186, %187 : vector<2x32xf32>
    %189 = math.tanh %188 : vector<2x32xf32>
    %190 = arith.mulf %184, %189 : vector<2x32xf32>
    %c8 = arith.constant 8 : index
    %c0_75 = arith.constant 0 : index
    %191 = vector.load %arg24[%c8, %c0_75] : memref<16x128xf32, #tpu.memory_space<vmem>>, vector<2x128xf32>
    %c0_76 = arith.constant 0 : index
    %c0_77 = arith.constant 0 : index
    %192 = vector.load %arg5[%c0_76, %c0_77] : memref<32x128xbf16, #tpu.memory_space<vmem>>, vector<32x128xbf16>
    %193 = arith.truncf %166 : vector<2x32xf32> to vector<2x32xbf16>
    %cst_78 = arith.constant dense<0.000000e+00> : vector<2x128xf32>
    %194 = tpu.matmul %193, %192, %cst_78 {dimension_numbers = #tpu.dot_dimension_numbers<[1], [0], [0], [1], [0, 0, 1, 1], [], []>} : vector<2x32xbf16>, vector<32x128xbf16>, vector<2x128xf32> -> vector<2x128xf32>
    %195 = arith.addf %191, %194 : vector<2x128xf32>
    %196 = arith.negf %195 : vector<2x128xf32>
    %197 = math.exp %196 : vector<2x128xf32>
    %cst_79 = arith.constant 1.000000e+00 : f32
    %198 = vector.broadcast %cst_79 : f32 to vector<2x128xf32>
    %199 = arith.addf %198, %197 : vector<2x128xf32>
    %200 = arith.divf %198, %199 : vector<2x128xf32>
    %201 = math.tanh %195 : vector<2x128xf32>
    %202 = vector.extract_strided_slice %200 {offsets = [0, 0], sizes = [2, 32], strides = [1, 1]} : vector<2x128xf32> to vector<2x32xf32>
    %203 = vector.extract_strided_slice %200 {offsets = [0, 32], sizes = [2, 32], strides = [1, 1]} : vector<2x128xf32> to vector<2x32xf32>
    %204 = vector.extract_strided_slice %200 {offsets = [0, 96], sizes = [2, 32], strides = [1, 1]} : vector<2x128xf32> to vector<2x32xf32>
    %205 = vector.extract_strided_slice %201 {offsets = [0, 64], sizes = [2, 32], strides = [1, 1]} : vector<2x128xf32> to vector<2x32xf32>
    %206 = arith.mulf %203, %164 : vector<2x32xf32>
    %207 = arith.mulf %202, %205 : vector<2x32xf32>
    %208 = arith.addf %206, %207 : vector<2x32xf32>
    %209 = math.tanh %208 : vector<2x32xf32>
    %210 = arith.mulf %204, %209 : vector<2x32xf32>
    %c0_80 = arith.constant 0 : index
    %c0_81 = arith.constant 0 : index
    %211 = vector.load %arg6[%c0_80, %c0_81] : memref<32x128xbf16, #tpu.memory_space<vmem>>, vector<32x128xbf16>
    %212 = arith.truncf %210 : vector<2x32xf32> to vector<2x32xbf16>
    %cst_82 = arith.constant dense<0.000000e+00> : vector<2x128xf32>
    %213 = tpu.matmul %212, %211, %cst_82 {dimension_numbers = #tpu.dot_dimension_numbers<[1], [0], [0], [1], [0, 0, 1, 1], [], []>} : vector<2x32xbf16>, vector<32x128xbf16>, vector<2x128xf32> -> vector<2x128xf32>
    %c0_83 = arith.constant 0 : index
    %c0_84 = arith.constant 0 : index
    %214 = vector.load %arg7[%c0_83, %c0_84] : memref<32x128xbf16, #tpu.memory_space<vmem>>, vector<32x128xbf16>
    %215 = arith.truncf %190 : vector<2x32xf32> to vector<2x32xbf16>
    %cst_85 = arith.constant dense<0.000000e+00> : vector<2x128xf32>
    %216 = tpu.matmul %215, %214, %cst_85 {dimension_numbers = #tpu.dot_dimension_numbers<[1], [0], [0], [1], [0, 0, 1, 1], [], []>} : vector<2x32xbf16>, vector<32x128xbf16>, vector<2x128xf32> -> vector<2x128xf32>
    %217 = arith.addf %213, %216 : vector<2x128xf32>
    %c0_86 = arith.constant 0 : index
    %c0_87 = arith.constant 0 : index
    %218 = vector.load %arg8[%c0_86, %c0_87] : memref<2x128xf32, #tpu.memory_space<vmem>>, vector<2x128xf32>
    %219 = arith.addf %217, %218 : vector<2x128xf32>
    %220 = arith.negf %219 : vector<2x128xf32>
    %221 = math.exp %220 : vector<2x128xf32>
    %cst_88 = arith.constant 1.000000e+00 : f32
    %222 = vector.broadcast %cst_88 : f32 to vector<2x128xf32>
    %223 = arith.addf %222, %221 : vector<2x128xf32>
    %224 = arith.divf %222, %223 : vector<2x128xf32>
    %225 = math.tanh %219 : vector<2x128xf32>
    %226 = vector.extract_strided_slice %224 {offsets = [0, 0], sizes = [2, 32], strides = [1, 1]} : vector<2x128xf32> to vector<2x32xf32>
    %227 = vector.extract_strided_slice %224 {offsets = [0, 32], sizes = [2, 32], strides = [1, 1]} : vector<2x128xf32> to vector<2x32xf32>
    %228 = vector.extract_strided_slice %224 {offsets = [0, 96], sizes = [2, 32], strides = [1, 1]} : vector<2x128xf32> to vector<2x32xf32>
    %229 = vector.extract_strided_slice %225 {offsets = [0, 64], sizes = [2, 32], strides = [1, 1]} : vector<2x128xf32> to vector<2x32xf32>
    %230 = arith.mulf %227, %188 : vector<2x32xf32>
    %231 = arith.mulf %226, %229 : vector<2x32xf32>
    %232 = arith.addf %230, %231 : vector<2x32xf32>
    %233 = math.tanh %232 : vector<2x32xf32>
    %234 = arith.mulf %228, %233 : vector<2x32xf32>
    %c10 = arith.constant 10 : index
    %c0_89 = arith.constant 0 : index
    %235 = vector.load %arg24[%c10, %c0_89] : memref<16x128xf32, #tpu.memory_space<vmem>>, vector<2x128xf32>
    %c0_90 = arith.constant 0 : index
    %c0_91 = arith.constant 0 : index
    %236 = vector.load %arg5[%c0_90, %c0_91] : memref<32x128xbf16, #tpu.memory_space<vmem>>, vector<32x128xbf16>
    %237 = arith.truncf %210 : vector<2x32xf32> to vector<2x32xbf16>
    %cst_92 = arith.constant dense<0.000000e+00> : vector<2x128xf32>
    %238 = tpu.matmul %237, %236, %cst_92 {dimension_numbers = #tpu.dot_dimension_numbers<[1], [0], [0], [1], [0, 0, 1, 1], [], []>} : vector<2x32xbf16>, vector<32x128xbf16>, vector<2x128xf32> -> vector<2x128xf32>
    %239 = arith.addf %235, %238 : vector<2x128xf32>
    %240 = arith.negf %239 : vector<2x128xf32>
    %241 = math.exp %240 : vector<2x128xf32>
    %cst_93 = arith.constant 1.000000e+00 : f32
    %242 = vector.broadcast %cst_93 : f32 to vector<2x128xf32>
    %243 = arith.addf %242, %241 : vector<2x128xf32>
    %244 = arith.divf %242, %243 : vector<2x128xf32>
    %245 = math.tanh %239 : vector<2x128xf32>
    %246 = vector.extract_strided_slice %244 {offsets = [0, 0], sizes = [2, 32], strides = [1, 1]} : vector<2x128xf32> to vector<2x32xf32>
    %247 = vector.extract_strided_slice %244 {offsets = [0, 32], sizes = [2, 32], strides = [1, 1]} : vector<2x128xf32> to vector<2x32xf32>
    %248 = vector.extract_strided_slice %244 {offsets = [0, 96], sizes = [2, 32], strides = [1, 1]} : vector<2x128xf32> to vector<2x32xf32>
    %249 = vector.extract_strided_slice %245 {offsets = [0, 64], sizes = [2, 32], strides = [1, 1]} : vector<2x128xf32> to vector<2x32xf32>
    %250 = arith.mulf %247, %208 : vector<2x32xf32>
    %251 = arith.mulf %246, %249 : vector<2x32xf32>
    %252 = arith.addf %250, %251 : vector<2x32xf32>
    %253 = math.tanh %252 : vector<2x32xf32>
    %254 = arith.mulf %248, %253 : vector<2x32xf32>
    %c0_94 = arith.constant 0 : index
    %c0_95 = arith.constant 0 : index
    %255 = vector.load %arg6[%c0_94, %c0_95] : memref<32x128xbf16, #tpu.memory_space<vmem>>, vector<32x128xbf16>
    %256 = arith.truncf %254 : vector<2x32xf32> to vector<2x32xbf16>
    %cst_96 = arith.constant dense<0.000000e+00> : vector<2x128xf32>
    %257 = tpu.matmul %256, %255, %cst_96 {dimension_numbers = #tpu.dot_dimension_numbers<[1], [0], [0], [1], [0, 0, 1, 1], [], []>} : vector<2x32xbf16>, vector<32x128xbf16>, vector<2x128xf32> -> vector<2x128xf32>
    %c0_97 = arith.constant 0 : index
    %c0_98 = arith.constant 0 : index
    %258 = vector.load %arg7[%c0_97, %c0_98] : memref<32x128xbf16, #tpu.memory_space<vmem>>, vector<32x128xbf16>
    %259 = arith.truncf %234 : vector<2x32xf32> to vector<2x32xbf16>
    %cst_99 = arith.constant dense<0.000000e+00> : vector<2x128xf32>
    %260 = tpu.matmul %259, %258, %cst_99 {dimension_numbers = #tpu.dot_dimension_numbers<[1], [0], [0], [1], [0, 0, 1, 1], [], []>} : vector<2x32xbf16>, vector<32x128xbf16>, vector<2x128xf32> -> vector<2x128xf32>
    %261 = arith.addf %257, %260 : vector<2x128xf32>
    %c0_100 = arith.constant 0 : index
    %c0_101 = arith.constant 0 : index
    %262 = vector.load %arg8[%c0_100, %c0_101] : memref<2x128xf32, #tpu.memory_space<vmem>>, vector<2x128xf32>
    %263 = arith.addf %261, %262 : vector<2x128xf32>
    %264 = arith.negf %263 : vector<2x128xf32>
    %265 = math.exp %264 : vector<2x128xf32>
    %cst_102 = arith.constant 1.000000e+00 : f32
    %266 = vector.broadcast %cst_102 : f32 to vector<2x128xf32>
    %267 = arith.addf %266, %265 : vector<2x128xf32>
    %268 = arith.divf %266, %267 : vector<2x128xf32>
    %269 = math.tanh %263 : vector<2x128xf32>
    %270 = vector.extract_strided_slice %268 {offsets = [0, 0], sizes = [2, 32], strides = [1, 1]} : vector<2x128xf32> to vector<2x32xf32>
    %271 = vector.extract_strided_slice %268 {offsets = [0, 32], sizes = [2, 32], strides = [1, 1]} : vector<2x128xf32> to vector<2x32xf32>
    %272 = vector.extract_strided_slice %268 {offsets = [0, 96], sizes = [2, 32], strides = [1, 1]} : vector<2x128xf32> to vector<2x32xf32>
    %273 = vector.extract_strided_slice %269 {offsets = [0, 64], sizes = [2, 32], strides = [1, 1]} : vector<2x128xf32> to vector<2x32xf32>
    %274 = arith.mulf %271, %232 : vector<2x32xf32>
    %275 = arith.mulf %270, %273 : vector<2x32xf32>
    %276 = arith.addf %274, %275 : vector<2x32xf32>
    %277 = math.tanh %276 : vector<2x32xf32>
    %278 = arith.mulf %272, %277 : vector<2x32xf32>
    %c12 = arith.constant 12 : index
    %c0_103 = arith.constant 0 : index
    %279 = vector.load %arg24[%c12, %c0_103] : memref<16x128xf32, #tpu.memory_space<vmem>>, vector<2x128xf32>
    %c0_104 = arith.constant 0 : index
    %c0_105 = arith.constant 0 : index
    %280 = vector.load %arg5[%c0_104, %c0_105] : memref<32x128xbf16, #tpu.memory_space<vmem>>, vector<32x128xbf16>
    %281 = arith.truncf %254 : vector<2x32xf32> to vector<2x32xbf16>
    %cst_106 = arith.constant dense<0.000000e+00> : vector<2x128xf32>
    %282 = tpu.matmul %281, %280, %cst_106 {dimension_numbers = #tpu.dot_dimension_numbers<[1], [0], [0], [1], [0, 0, 1, 1], [], []>} : vector<2x32xbf16>, vector<32x128xbf16>, vector<2x128xf32> -> vector<2x128xf32>
    %283 = arith.addf %279, %282 : vector<2x128xf32>
    %284 = arith.negf %283 : vector<2x128xf32>
    %285 = math.exp %284 : vector<2x128xf32>
    %cst_107 = arith.constant 1.000000e+00 : f32
    %286 = vector.broadcast %cst_107 : f32 to vector<2x128xf32>
    %287 = arith.addf %286, %285 : vector<2x128xf32>
    %288 = arith.divf %286, %287 : vector<2x128xf32>
    %289 = math.tanh %283 : vector<2x128xf32>
    %290 = vector.extract_strided_slice %288 {offsets = [0, 0], sizes = [2, 32], strides = [1, 1]} : vector<2x128xf32> to vector<2x32xf32>
    %291 = vector.extract_strided_slice %288 {offsets = [0, 32], sizes = [2, 32], strides = [1, 1]} : vector<2x128xf32> to vector<2x32xf32>
    %292 = vector.extract_strided_slice %288 {offsets = [0, 96], sizes = [2, 32], strides = [1, 1]} : vector<2x128xf32> to vector<2x32xf32>
    %293 = vector.extract_strided_slice %289 {offsets = [0, 64], sizes = [2, 32], strides = [1, 1]} : vector<2x128xf32> to vector<2x32xf32>
    %294 = arith.mulf %291, %252 : vector<2x32xf32>
    %295 = arith.mulf %290, %293 : vector<2x32xf32>
    %296 = arith.addf %294, %295 : vector<2x32xf32>
    %297 = math.tanh %296 : vector<2x32xf32>
    %298 = arith.mulf %292, %297 : vector<2x32xf32>
    %c0_108 = arith.constant 0 : index
    %c0_109 = arith.constant 0 : index
    %299 = vector.load %arg6[%c0_108, %c0_109] : memref<32x128xbf16, #tpu.memory_space<vmem>>, vector<32x128xbf16>
    %300 = arith.truncf %298 : vector<2x32xf32> to vector<2x32xbf16>
    %cst_110 = arith.constant dense<0.000000e+00> : vector<2x128xf32>
    %301 = tpu.matmul %300, %299, %cst_110 {dimension_numbers = #tpu.dot_dimension_numbers<[1], [0], [0], [1], [0, 0, 1, 1], [], []>} : vector<2x32xbf16>, vector<32x128xbf16>, vector<2x128xf32> -> vector<2x128xf32>
    %c0_111 = arith.constant 0 : index
    %c0_112 = arith.constant 0 : index
    %302 = vector.load %arg7[%c0_111, %c0_112] : memref<32x128xbf16, #tpu.memory_space<vmem>>, vector<32x128xbf16>
    %303 = arith.truncf %278 : vector<2x32xf32> to vector<2x32xbf16>
    %cst_113 = arith.constant dense<0.000000e+00> : vector<2x128xf32>
    %304 = tpu.matmul %303, %302, %cst_113 {dimension_numbers = #tpu.dot_dimension_numbers<[1], [0], [0], [1], [0, 0, 1, 1], [], []>} : vector<2x32xbf16>, vector<32x128xbf16>, vector<2x128xf32> -> vector<2x128xf32>
    %305 = arith.addf %301, %304 : vector<2x128xf32>
    %c0_114 = arith.constant 0 : index
    %c0_115 = arith.constant 0 : index
    %306 = vector.load %arg8[%c0_114, %c0_115] : memref<2x128xf32, #tpu.memory_space<vmem>>, vector<2x128xf32>
    %307 = arith.addf %305, %306 : vector<2x128xf32>
    %308 = arith.negf %307 : vector<2x128xf32>
    %309 = math.exp %308 : vector<2x128xf32>
    %cst_116 = arith.constant 1.000000e+00 : f32
    %310 = vector.broadcast %cst_116 : f32 to vector<2x128xf32>
    %311 = arith.addf %310, %309 : vector<2x128xf32>
    %312 = arith.divf %310, %311 : vector<2x128xf32>
    %313 = math.tanh %307 : vector<2x128xf32>
    %314 = vector.extract_strided_slice %312 {offsets = [0, 0], sizes = [2, 32], strides = [1, 1]} : vector<2x128xf32> to vector<2x32xf32>
    %315 = vector.extract_strided_slice %312 {offsets = [0, 32], sizes = [2, 32], strides = [1, 1]} : vector<2x128xf32> to vector<2x32xf32>
    %316 = vector.extract_strided_slice %312 {offsets = [0, 96], sizes = [2, 32], strides = [1, 1]} : vector<2x128xf32> to vector<2x32xf32>
    %317 = vector.extract_strided_slice %313 {offsets = [0, 64], sizes = [2, 32], strides = [1, 1]} : vector<2x128xf32> to vector<2x32xf32>
    %318 = arith.mulf %315, %276 : vector<2x32xf32>
    %319 = arith.mulf %314, %317 : vector<2x32xf32>
    %320 = arith.addf %318, %319 : vector<2x32xf32>
    %321 = math.tanh %320 : vector<2x32xf32>
    %322 = arith.mulf %316, %321 : vector<2x32xf32>
    %c14 = arith.constant 14 : index
    %c0_117 = arith.constant 0 : index
    %323 = vector.load %arg24[%c14, %c0_117] : memref<16x128xf32, #tpu.memory_space<vmem>>, vector<2x128xf32>
    %c0_118 = arith.constant 0 : index
    %c0_119 = arith.constant 0 : index
    %324 = vector.load %arg5[%c0_118, %c0_119] : memref<32x128xbf16, #tpu.memory_space<vmem>>, vector<32x128xbf16>
    %325 = arith.truncf %298 : vector<2x32xf32> to vector<2x32xbf16>
    %cst_120 = arith.constant dense<0.000000e+00> : vector<2x128xf32>
    %326 = tpu.matmul %325, %324, %cst_120 {dimension_numbers = #tpu.dot_dimension_numbers<[1], [0], [0], [1], [0, 0, 1, 1], [], []>} : vector<2x32xbf16>, vector<32x128xbf16>, vector<2x128xf32> -> vector<2x128xf32>
    %327 = arith.addf %323, %326 : vector<2x128xf32>
    %328 = arith.negf %327 : vector<2x128xf32>
    %329 = math.exp %328 : vector<2x128xf32>
    %cst_121 = arith.constant 1.000000e+00 : f32
    %330 = vector.broadcast %cst_121 : f32 to vector<2x128xf32>
    %331 = arith.addf %330, %329 : vector<2x128xf32>
    %332 = arith.divf %330, %331 : vector<2x128xf32>
    %333 = math.tanh %327 : vector<2x128xf32>
    %334 = vector.extract_strided_slice %332 {offsets = [0, 0], sizes = [2, 32], strides = [1, 1]} : vector<2x128xf32> to vector<2x32xf32>
    %335 = vector.extract_strided_slice %332 {offsets = [0, 32], sizes = [2, 32], strides = [1, 1]} : vector<2x128xf32> to vector<2x32xf32>
    %336 = vector.extract_strided_slice %332 {offsets = [0, 96], sizes = [2, 32], strides = [1, 1]} : vector<2x128xf32> to vector<2x32xf32>
    %337 = vector.extract_strided_slice %333 {offsets = [0, 64], sizes = [2, 32], strides = [1, 1]} : vector<2x128xf32> to vector<2x32xf32>
    %338 = arith.mulf %335, %296 : vector<2x32xf32>
    %339 = arith.mulf %334, %337 : vector<2x32xf32>
    %340 = arith.addf %338, %339 : vector<2x32xf32>
    %341 = math.tanh %340 : vector<2x32xf32>
    %342 = arith.mulf %336, %341 : vector<2x32xf32>
    %c0_122 = arith.constant 0 : index
    %c0_123 = arith.constant 0 : index
    %343 = vector.load %arg6[%c0_122, %c0_123] : memref<32x128xbf16, #tpu.memory_space<vmem>>, vector<32x128xbf16>
    %344 = arith.truncf %342 : vector<2x32xf32> to vector<2x32xbf16>
    %cst_124 = arith.constant dense<0.000000e+00> : vector<2x128xf32>
    %345 = tpu.matmul %344, %343, %cst_124 {dimension_numbers = #tpu.dot_dimension_numbers<[1], [0], [0], [1], [0, 0, 1, 1], [], []>} : vector<2x32xbf16>, vector<32x128xbf16>, vector<2x128xf32> -> vector<2x128xf32>
    %c0_125 = arith.constant 0 : index
    %c0_126 = arith.constant 0 : index
    %346 = vector.load %arg7[%c0_125, %c0_126] : memref<32x128xbf16, #tpu.memory_space<vmem>>, vector<32x128xbf16>
    %347 = arith.truncf %322 : vector<2x32xf32> to vector<2x32xbf16>
    %cst_127 = arith.constant dense<0.000000e+00> : vector<2x128xf32>
    %348 = tpu.matmul %347, %346, %cst_127 {dimension_numbers = #tpu.dot_dimension_numbers<[1], [0], [0], [1], [0, 0, 1, 1], [], []>} : vector<2x32xbf16>, vector<32x128xbf16>, vector<2x128xf32> -> vector<2x128xf32>
    %349 = arith.addf %345, %348 : vector<2x128xf32>
    %c0_128 = arith.constant 0 : index
    %c0_129 = arith.constant 0 : index
    %350 = vector.load %arg8[%c0_128, %c0_129] : memref<2x128xf32, #tpu.memory_space<vmem>>, vector<2x128xf32>
    %351 = arith.addf %349, %350 : vector<2x128xf32>
    %352 = arith.negf %351 : vector<2x128xf32>
    %353 = math.exp %352 : vector<2x128xf32>
    %cst_130 = arith.constant 1.000000e+00 : f32
    %354 = vector.broadcast %cst_130 : f32 to vector<2x128xf32>
    %355 = arith.addf %354, %353 : vector<2x128xf32>
    %356 = arith.divf %354, %355 : vector<2x128xf32>
    %357 = math.tanh %351 : vector<2x128xf32>
    %358 = vector.extract_strided_slice %356 {offsets = [0, 0], sizes = [2, 32], strides = [1, 1]} : vector<2x128xf32> to vector<2x32xf32>
    %359 = vector.extract_strided_slice %356 {offsets = [0, 32], sizes = [2, 32], strides = [1, 1]} : vector<2x128xf32> to vector<2x32xf32>
    %360 = vector.extract_strided_slice %356 {offsets = [0, 96], sizes = [2, 32], strides = [1, 1]} : vector<2x128xf32> to vector<2x32xf32>
    %361 = vector.extract_strided_slice %357 {offsets = [0, 64], sizes = [2, 32], strides = [1, 1]} : vector<2x128xf32> to vector<2x32xf32>
    %362 = arith.mulf %359, %320 : vector<2x32xf32>
    %363 = arith.mulf %358, %361 : vector<2x32xf32>
    %364 = arith.addf %362, %363 : vector<2x32xf32>
    %365 = math.tanh %364 : vector<2x32xf32>
    %366 = arith.mulf %360, %365 : vector<2x32xf32>
    %c0_131 = arith.constant 0 : index
    %c0_132 = arith.constant 0 : index
    %c0_133 = arith.constant 0 : index
    %367 = vector.load %arg20[%c0_131, %c0_132, %c0_133] : memref<2x2x32xf32, #tpu.memory_space<vmem>>, vector<1x2x32xf32>
    %368 = vector.shape_cast %367 : vector<1x2x32xf32> to vector<2x32xf32>
    %369 = vector.shape_cast %342 : vector<2x32xf32> to vector<1x2x32xf32>
    tpu.vector_store %arg20[%c0_131, %c0_132, %c0_133], %369 {strides = array<i32>} : memref<2x2x32xf32, #tpu.memory_space<vmem>>, vector<1x2x32xf32>,
    %c0_134 = arith.constant 0 : index
    %c0_135 = arith.constant 0 : index
    %c0_136 = arith.constant 0 : index
    %370 = vector.load %arg21[%c0_134, %c0_135, %c0_136] : memref<2x2x32xf32, #tpu.memory_space<vmem>>, vector<1x2x32xf32>
    %371 = vector.shape_cast %370 : vector<1x2x32xf32> to vector<2x32xf32>
    %372 = vector.shape_cast %340 : vector<2x32xf32> to vector<1x2x32xf32>
    tpu.vector_store %arg21[%c0_134, %c0_135, %c0_136], %372 {strides = array<i32>} : memref<2x2x32xf32, #tpu.memory_space<vmem>>, vector<1x2x32xf32>,
    %c1_137 = arith.constant 1 : index
    %c0_138 = arith.constant 0 : index
    %c0_139 = arith.constant 0 : index
    %373 = vector.load %arg20[%c1_137, %c0_138, %c0_139] : memref<2x2x32xf32, #tpu.memory_space<vmem>>, vector<1x2x32xf32>
    %374 = vector.shape_cast %373 : vector<1x2x32xf32> to vector<2x32xf32>
    %375 = vector.shape_cast %366 : vector<2x32xf32> to vector<1x2x32xf32>
    tpu.vector_store %arg20[%c1_137, %c0_138, %c0_139], %375 {strides = array<i32>} : memref<2x2x32xf32, #tpu.memory_space<vmem>>, vector<1x2x32xf32>,
    %c1_140 = arith.constant 1 : index
    %c0_141 = arith.constant 0 : index
    %c0_142 = arith.constant 0 : index
    %376 = vector.load %arg21[%c1_140, %c0_141, %c0_142] : memref<2x2x32xf32, #tpu.memory_space<vmem>>, vector<1x2x32xf32>
    %377 = vector.shape_cast %376 : vector<1x2x32xf32> to vector<2x32xf32>
    %378 = vector.shape_cast %364 : vector<2x32xf32> to vector<1x2x32xf32>
    tpu.vector_store %arg21[%c1_140, %c0_141, %c0_142], %378 {strides = array<i32>} : memref<2x2x32xf32, #tpu.memory_space<vmem>>, vector<1x2x32xf32>,
    %c0_143 = arith.constant 0 : index
    %c0_144 = arith.constant 0 : index
    %379 = vector.load %arg9[%c0_143, %c0_144] : memref<32x128xbf16, #tpu.memory_space<vmem>>, vector<32x128xbf16>
    %380 = arith.truncf %366 : vector<2x32xf32> to vector<2x32xbf16>
    %cst_145 = arith.constant dense<0.000000e+00> : vector<2x128xf32>
    %381 = tpu.matmul %380, %379, %cst_145 {dimension_numbers = #tpu.dot_dimension_numbers<[1], [0], [0], [1], [0, 0, 1, 1], [], []>} : vector<2x32xbf16>, vector<32x128xbf16>, vector<2x128xf32> -> vector<2x128xf32>
    %c0_146 = arith.constant 0 : index
    %c0_147 = arith.constant 0 : index
    %382 = vector.load %arg13[%c0_146, %c0_147] : memref<32x128xbf16, #tpu.memory_space<vmem>>, vector<32x128xbf16>
    %383 = arith.truncf %342 : vector<2x32xf32> to vector<2x32xbf16>
    %cst_148 = arith.constant dense<0.000000e+00> : vector<2x128xf32>
    %384 = tpu.matmul %383, %382, %cst_148 {dimension_numbers = #tpu.dot_dimension_numbers<[1], [0], [0], [1], [0, 0, 1, 1], [], []>} : vector<2x32xbf16>, vector<32x128xbf16>, vector<2x128xf32> -> vector<2x128xf32>
    %385 = arith.addf %381, %384 : vector<2x128xf32>
    %c0_149 = arith.constant 0 : index
    %c0_150 = arith.constant 0 : index
    %386 = vector.load %arg10[%c0_149, %c0_150] : memref<2x128xf32, #tpu.memory_space<vmem>>, vector<2x128xf32>
    %387 = arith.addf %385, %386 : vector<2x128xf32>
    %388 = arith.negf %387 : vector<2x128xf32>
    %389 = math.exp %388 : vector<2x128xf32>
    %cst_151 = arith.constant 1.000000e+00 : f32
    %390 = vector.broadcast %cst_151 : f32 to vector<2x128xf32>
    %391 = arith.addf %390, %389 : vector<2x128xf32>
    %392 = arith.divf %390, %391 : vector<2x128xf32>
    %393 = math.tanh %387 : vector<2x128xf32>
    %394 = vector.extract_strided_slice %392 {offsets = [0, 0], sizes = [2, 32], strides = [1, 1]} : vector<2x128xf32> to vector<2x32xf32>
    %395 = vector.extract_strided_slice %392 {offsets = [0, 32], sizes = [2, 32], strides = [1, 1]} : vector<2x128xf32> to vector<2x32xf32>
    %396 = vector.extract_strided_slice %392 {offsets = [0, 96], sizes = [2, 32], strides = [1, 1]} : vector<2x128xf32> to vector<2x32xf32>
    %397 = vector.extract_strided_slice %393 {offsets = [0, 64], sizes = [2, 32], strides = [1, 1]} : vector<2x128xf32> to vector<2x32xf32>
    %398 = arith.mulf %395, %340 : vector<2x32xf32>
    %399 = arith.mulf %394, %397 : vector<2x32xf32>
    %400 = arith.addf %398, %399 : vector<2x32xf32>
    %401 = math.tanh %400 : vector<2x32xf32>
    %402 = arith.mulf %396, %401 : vector<2x32xf32>
    %c0_152 = arith.constant 0 : index
    %c0_153 = arith.constant 0 : index
    %403 = vector.load %arg14[%c0_152, %c0_153] : memref<32x128xbf16, #tpu.memory_space<vmem>>, vector<32x128xbf16>
    %404 = arith.truncf %402 : vector<2x32xf32> to vector<2x32xbf16>
    %cst_154 = arith.constant dense<0.000000e+00> : vector<2x128xf32>
    %405 = tpu.matmul %404, %403, %cst_154 {dimension_numbers = #tpu.dot_dimension_numbers<[1], [0], [0], [1], [0, 0, 1, 1], [], []>} : vector<2x32xbf16>, vector<32x128xbf16>, vector<2x128xf32> -> vector<2x128xf32>
    %c0_155 = arith.constant 0 : index
    %c0_156 = arith.constant 0 : index
    %406 = vector.load %arg15[%c0_155, %c0_156] : memref<32x128xbf16, #tpu.memory_space<vmem>>, vector<32x128xbf16>
    %407 = arith.truncf %366 : vector<2x32xf32> to vector<2x32xbf16>
    %cst_157 = arith.constant dense<0.000000e+00> : vector<2x128xf32>
    %408 = tpu.matmul %407, %406, %cst_157 {dimension_numbers = #tpu.dot_dimension_numbers<[1], [0], [0], [1], [0, 0, 1, 1], [], []>} : vector<2x32xbf16>, vector<32x128xbf16>, vector<2x128xf32> -> vector<2x128xf32>
    %409 = arith.addf %405, %408 : vector<2x128xf32>
    %c0_158 = arith.constant 0 : index
    %c0_159 = arith.constant 0 : index
    %410 = vector.load %arg16[%c0_158, %c0_159] : memref<2x128xf32, #tpu.memory_space<vmem>>, vector<2x128xf32>
    %411 = arith.addf %409, %410 : vector<2x128xf32>
    %412 = arith.negf %411 : vector<2x128xf32>
    %413 = math.exp %412 : vector<2x128xf32>
    %cst_160 = arith.constant 1.000000e+00 : f32
    %414 = vector.broadcast %cst_160 : f32 to vector<2x128xf32>
    %415 = arith.addf %414, %413 : vector<2x128xf32>
    %416 = arith.divf %414, %415 : vector<2x128xf32>
    %417 = math.tanh %411 : vector<2x128xf32>
    %418 = vector.extract_strided_slice %416 {offsets = [0, 0], sizes = [2, 32], strides = [1, 1]} : vector<2x128xf32> to vector<2x32xf32>
    %419 = vector.extract_strided_slice %416 {offsets = [0, 32], sizes = [2, 32], strides = [1, 1]} : vector<2x128xf32> to vector<2x32xf32>
    %420 = vector.extract_strided_slice %416 {offsets = [0, 96], sizes = [2, 32], strides = [1, 1]} : vector<2x128xf32> to vector<2x32xf32>
    %421 = vector.extract_strided_slice %417 {offsets = [0, 64], sizes = [2, 32], strides = [1, 1]} : vector<2x128xf32> to vector<2x32xf32>
    %422 = arith.mulf %419, %364 : vector<2x32xf32>
    %423 = arith.mulf %418, %421 : vector<2x32xf32>
    %424 = arith.addf %422, %423 : vector<2x32xf32>
    %425 = math.tanh %424 : vector<2x32xf32>
    %426 = arith.mulf %420, %425 : vector<2x32xf32>
    %c0_161 = arith.constant 0 : index
    %c0_162 = arith.constant 0 : index
    %427 = vector.load %arg11[%c0_161, %c0_162] : memref<32x128xbf16, #tpu.memory_space<vmem>>, vector<32x128xbf16>
    %428 = arith.truncf %426 : vector<2x32xf32> to vector<2x32xbf16>
    %cst_163 = arith.constant dense<0.000000e+00> : vector<2x128xf32>
    %429 = tpu.matmul %428, %427, %cst_163 {dimension_numbers = #tpu.dot_dimension_numbers<[1], [0], [0], [1], [0, 0, 1, 1], [], []>} : vector<2x32xbf16>, vector<32x128xbf16>, vector<2x128xf32> -> vector<2x128xf32>
    %c0_164 = arith.constant 0 : index
    %c0_165 = arith.constant 0 : index
    %430 = vector.load %arg13[%c0_164, %c0_165] : memref<32x128xbf16, #tpu.memory_space<vmem>>, vector<32x128xbf16>
    %431 = arith.truncf %402 : vector<2x32xf32> to vector<2x32xbf16>
    %cst_166 = arith.constant dense<0.000000e+00> : vector<2x128xf32>
    %432 = tpu.matmul %431, %430, %cst_166 {dimension_numbers = #tpu.dot_dimension_numbers<[1], [0], [0], [1], [0, 0, 1, 1], [], []>} : vector<2x32xbf16>, vector<32x128xbf16>, vector<2x128xf32> -> vector<2x128xf32>
    %433 = arith.addf %429, %432 : vector<2x128xf32>
    %c0_167 = arith.constant 0 : index
    %c0_168 = arith.constant 0 : index
    %434 = vector.load %arg12[%c0_167, %c0_168] : memref<2x128xf32, #tpu.memory_space<vmem>>, vector<2x128xf32>
    %435 = arith.addf %433, %434 : vector<2x128xf32>
    %436 = arith.negf %435 : vector<2x128xf32>
    %437 = math.exp %436 : vector<2x128xf32>
    %cst_169 = arith.constant 1.000000e+00 : f32
    %438 = vector.broadcast %cst_169 : f32 to vector<2x128xf32>
    %439 = arith.addf %438, %437 : vector<2x128xf32>
    %440 = arith.divf %438, %439 : vector<2x128xf32>
    %441 = math.tanh %435 : vector<2x128xf32>
    %442 = vector.extract_strided_slice %440 {offsets = [0, 0], sizes = [2, 32], strides = [1, 1]} : vector<2x128xf32> to vector<2x32xf32>
    %443 = vector.extract_strided_slice %440 {offsets = [0, 32], sizes = [2, 32], strides = [1, 1]} : vector<2x128xf32> to vector<2x32xf32>
    %444 = vector.extract_strided_slice %440 {offsets = [0, 96], sizes = [2, 32], strides = [1, 1]} : vector<2x128xf32> to vector<2x32xf32>
    %445 = vector.extract_strided_slice %441 {offsets = [0, 64], sizes = [2, 32], strides = [1, 1]} : vector<2x128xf32> to vector<2x32xf32>
    %446 = arith.mulf %443, %400 : vector<2x32xf32>
    %447 = arith.mulf %442, %445 : vector<2x32xf32>
    %448 = arith.addf %446, %447 : vector<2x32xf32>
    %449 = math.tanh %448 : vector<2x32xf32>
    %450 = arith.mulf %444, %449 : vector<2x32xf32>
    %c0_170 = arith.constant 0 : index
    %c0_171 = arith.constant 0 : index
    %451 = vector.load %arg14[%c0_170, %c0_171] : memref<32x128xbf16, #tpu.memory_space<vmem>>, vector<32x128xbf16>
    %452 = arith.truncf %450 : vector<2x32xf32> to vector<2x32xbf16>
    %cst_172 = arith.constant dense<0.000000e+00> : vector<2x128xf32>
    %453 = tpu.matmul %452, %451, %cst_172 {dimension_numbers = #tpu.dot_dimension_numbers<[1], [0], [0], [1], [0, 0, 1, 1], [], []>} : vector<2x32xbf16>, vector<32x128xbf16>, vector<2x128xf32> -> vector<2x128xf32>
    %c0_173 = arith.constant 0 : index
    %c0_174 = arith.constant 0 : index
    %454 = vector.load %arg15[%c0_173, %c0_174] : memref<32x128xbf16, #tpu.memory_space<vmem>>, vector<32x128xbf16>
    %455 = arith.truncf %426 : vector<2x32xf32> to vector<2x32xbf16>
    %cst_175 = arith.constant dense<0.000000e+00> : vector<2x128xf32>
    %456 = tpu.matmul %455, %454, %cst_175 {dimension_numbers = #tpu.dot_dimension_numbers<[1], [0], [0], [1], [0, 0, 1, 1], [], []>} : vector<2x32xbf16>, vector<32x128xbf16>, vector<2x128xf32> -> vector<2x128xf32>
    %457 = arith.addf %453, %456 : vector<2x128xf32>
    %c0_176 = arith.constant 0 : index
    %c0_177 = arith.constant 0 : index
    %458 = vector.load %arg16[%c0_176, %c0_177] : memref<2x128xf32, #tpu.memory_space<vmem>>, vector<2x128xf32>
    %459 = arith.addf %457, %458 : vector<2x128xf32>
    %460 = arith.negf %459 : vector<2x128xf32>
    %461 = math.exp %460 : vector<2x128xf32>
    %cst_178 = arith.constant 1.000000e+00 : f32
    %462 = vector.broadcast %cst_178 : f32 to vector<2x128xf32>
    %463 = arith.addf %462, %461 : vector<2x128xf32>
    %464 = arith.divf %462, %463 : vector<2x128xf32>
    %465 = math.tanh %459 : vector<2x128xf32>
    %466 = vector.extract_strided_slice %464 {offsets = [0, 0], sizes = [2, 32], strides = [1, 1]} : vector<2x128xf32> to vector<2x32xf32>
    %467 = vector.extract_strided_slice %464 {offsets = [0, 32], sizes = [2, 32], strides = [1, 1]} : vector<2x128xf32> to vector<2x32xf32>
    %468 = vector.extract_strided_slice %464 {offsets = [0, 96], sizes = [2, 32], strides = [1, 1]} : vector<2x128xf32> to vector<2x32xf32>
    %469 = vector.extract_strided_slice %465 {offsets = [0, 64], sizes = [2, 32], strides = [1, 1]} : vector<2x128xf32> to vector<2x32xf32>
    %470 = arith.mulf %467, %424 : vector<2x32xf32>
    %471 = arith.mulf %466, %469 : vector<2x32xf32>
    %472 = arith.addf %470, %471 : vector<2x32xf32>
    %473 = math.tanh %472 : vector<2x32xf32>
    %474 = arith.mulf %468, %473 : vector<2x32xf32>
    %c0_179 = arith.constant 0 : index
    %c0_180 = arith.constant 0 : index
    %475 = vector.load %arg11[%c0_179, %c0_180] : memref<32x128xbf16, #tpu.memory_space<vmem>>, vector<32x128xbf16>
    %476 = arith.truncf %474 : vector<2x32xf32> to vector<2x32xbf16>
    %cst_181 = arith.constant dense<0.000000e+00> : vector<2x128xf32>
    %477 = tpu.matmul %476, %475, %cst_181 {dimension_numbers = #tpu.dot_dimension_numbers<[1], [0], [0], [1], [0, 0, 1, 1], [], []>} : vector<2x32xbf16>, vector<32x128xbf16>, vector<2x128xf32> -> vector<2x128xf32>
    %c0_182 = arith.constant 0 : index
    %c0_183 = arith.constant 0 : index
    %478 = vector.load %arg13[%c0_182, %c0_183] : memref<32x128xbf16, #tpu.memory_space<vmem>>, vector<32x128xbf16>
    %479 = arith.truncf %450 : vector<2x32xf32> to vector<2x32xbf16>
    %cst_184 = arith.constant dense<0.000000e+00> : vector<2x128xf32>
    %480 = tpu.matmul %479, %478, %cst_184 {dimension_numbers = #tpu.dot_dimension_numbers<[1], [0], [0], [1], [0, 0, 1, 1], [], []>} : vector<2x32xbf16>, vector<32x128xbf16>, vector<2x128xf32> -> vector<2x128xf32>
    %481 = arith.addf %477, %480 : vector<2x128xf32>
    %c0_185 = arith.constant 0 : index
    %c0_186 = arith.constant 0 : index
    %482 = vector.load %arg12[%c0_185, %c0_186] : memref<2x128xf32, #tpu.memory_space<vmem>>, vector<2x128xf32>
    %483 = arith.addf %481, %482 : vector<2x128xf32>
    %484 = arith.negf %483 : vector<2x128xf32>
    %485 = math.exp %484 : vector<2x128xf32>
    %cst_187 = arith.constant 1.000000e+00 : f32
    %486 = vector.broadcast %cst_187 : f32 to vector<2x128xf32>
    %487 = arith.addf %486, %485 : vector<2x128xf32>
    %488 = arith.divf %486, %487 : vector<2x128xf32>
    %489 = math.tanh %483 : vector<2x128xf32>
    %490 = vector.extract_strided_slice %488 {offsets = [0, 0], sizes = [2, 32], strides = [1, 1]} : vector<2x128xf32> to vector<2x32xf32>
    %491 = vector.extract_strided_slice %488 {offsets = [0, 32], sizes = [2, 32], strides = [1, 1]} : vector<2x128xf32> to vector<2x32xf32>
    %492 = vector.extract_strided_slice %488 {offsets = [0, 96], sizes = [2, 32], strides = [1, 1]} : vector<2x128xf32> to vector<2x32xf32>
    %493 = vector.extract_strided_slice %489 {offsets = [0, 64], sizes = [2, 32], strides = [1, 1]} : vector<2x128xf32> to vector<2x32xf32>
    %494 = arith.mulf %491, %448 : vector<2x32xf32>
    %495 = arith.mulf %490, %493 : vector<2x32xf32>
    %496 = arith.addf %494, %495 : vector<2x32xf32>
    %497 = math.tanh %496 : vector<2x32xf32>
    %498 = arith.mulf %492, %497 : vector<2x32xf32>
    %c0_188 = arith.constant 0 : index
    %c0_189 = arith.constant 0 : index
    %499 = vector.load %arg14[%c0_188, %c0_189] : memref<32x128xbf16, #tpu.memory_space<vmem>>, vector<32x128xbf16>
    %500 = arith.truncf %498 : vector<2x32xf32> to vector<2x32xbf16>
    %cst_190 = arith.constant dense<0.000000e+00> : vector<2x128xf32>
    %501 = tpu.matmul %500, %499, %cst_190 {dimension_numbers = #tpu.dot_dimension_numbers<[1], [0], [0], [1], [0, 0, 1, 1], [], []>} : vector<2x32xbf16>, vector<32x128xbf16>, vector<2x128xf32> -> vector<2x128xf32>
    %c0_191 = arith.constant 0 : index
    %c0_192 = arith.constant 0 : index
    %502 = vector.load %arg15[%c0_191, %c0_192] : memref<32x128xbf16, #tpu.memory_space<vmem>>, vector<32x128xbf16>
    %503 = arith.truncf %474 : vector<2x32xf32> to vector<2x32xbf16>
    %cst_193 = arith.constant dense<0.000000e+00> : vector<2x128xf32>
    %504 = tpu.matmul %503, %502, %cst_193 {dimension_numbers = #tpu.dot_dimension_numbers<[1], [0], [0], [1], [0, 0, 1, 1], [], []>} : vector<2x32xbf16>, vector<32x128xbf16>, vector<2x128xf32> -> vector<2x128xf32>
    %505 = arith.addf %501, %504 : vector<2x128xf32>
    %c0_194 = arith.constant 0 : index
    %c0_195 = arith.constant 0 : index
    %506 = vector.load %arg16[%c0_194, %c0_195] : memref<2x128xf32, #tpu.memory_space<vmem>>, vector<2x128xf32>
    %507 = arith.addf %505, %506 : vector<2x128xf32>
    %508 = arith.negf %507 : vector<2x128xf32>
    %509 = math.exp %508 : vector<2x128xf32>
    %cst_196 = arith.constant 1.000000e+00 : f32
    %510 = vector.broadcast %cst_196 : f32 to vector<2x128xf32>
    %511 = arith.addf %510, %509 : vector<2x128xf32>
    %512 = arith.divf %510, %511 : vector<2x128xf32>
    %513 = math.tanh %507 : vector<2x128xf32>
    %514 = vector.extract_strided_slice %512 {offsets = [0, 0], sizes = [2, 32], strides = [1, 1]} : vector<2x128xf32> to vector<2x32xf32>
    %515 = vector.extract_strided_slice %512 {offsets = [0, 32], sizes = [2, 32], strides = [1, 1]} : vector<2x128xf32> to vector<2x32xf32>
    %516 = vector.extract_strided_slice %512 {offsets = [0, 96], sizes = [2, 32], strides = [1, 1]} : vector<2x128xf32> to vector<2x32xf32>
    %517 = vector.extract_strided_slice %513 {offsets = [0, 64], sizes = [2, 32], strides = [1, 1]} : vector<2x128xf32> to vector<2x32xf32>
    %518 = arith.mulf %515, %472 : vector<2x32xf32>
    %519 = arith.mulf %514, %517 : vector<2x32xf32>
    %520 = arith.addf %518, %519 : vector<2x32xf32>
    %521 = math.tanh %520 : vector<2x32xf32>
    %522 = arith.mulf %516, %521 : vector<2x32xf32>
    %c0_197 = arith.constant 0 : index
    %c0_198 = arith.constant 0 : index
    %523 = vector.load %arg11[%c0_197, %c0_198] : memref<32x128xbf16, #tpu.memory_space<vmem>>, vector<32x128xbf16>
    %524 = arith.truncf %522 : vector<2x32xf32> to vector<2x32xbf16>
    %cst_199 = arith.constant dense<0.000000e+00> : vector<2x128xf32>
    %525 = tpu.matmul %524, %523, %cst_199 {dimension_numbers = #tpu.dot_dimension_numbers<[1], [0], [0], [1], [0, 0, 1, 1], [], []>} : vector<2x32xbf16>, vector<32x128xbf16>, vector<2x128xf32> -> vector<2x128xf32>
    %c0_200 = arith.constant 0 : index
    %c0_201 = arith.constant 0 : index
    %526 = vector.load %arg13[%c0_200, %c0_201] : memref<32x128xbf16, #tpu.memory_space<vmem>>, vector<32x128xbf16>
    %527 = arith.truncf %498 : vector<2x32xf32> to vector<2x32xbf16>
    %cst_202 = arith.constant dense<0.000000e+00> : vector<2x128xf32>
    %528 = tpu.matmul %527, %526, %cst_202 {dimension_numbers = #tpu.dot_dimension_numbers<[1], [0], [0], [1], [0, 0, 1, 1], [], []>} : vector<2x32xbf16>, vector<32x128xbf16>, vector<2x128xf32> -> vector<2x128xf32>
    %529 = arith.addf %525, %528 : vector<2x128xf32>
    %c0_203 = arith.constant 0 : index
    %c0_204 = arith.constant 0 : index
    %530 = vector.load %arg12[%c0_203, %c0_204] : memref<2x128xf32, #tpu.memory_space<vmem>>, vector<2x128xf32>
    %531 = arith.addf %529, %530 : vector<2x128xf32>
    %532 = arith.negf %531 : vector<2x128xf32>
    %533 = math.exp %532 : vector<2x128xf32>
    %cst_205 = arith.constant 1.000000e+00 : f32
    %534 = vector.broadcast %cst_205 : f32 to vector<2x128xf32>
    %535 = arith.addf %534, %533 : vector<2x128xf32>
    %536 = arith.divf %534, %535 : vector<2x128xf32>
    %537 = math.tanh %531 : vector<2x128xf32>
    %538 = vector.extract_strided_slice %536 {offsets = [0, 0], sizes = [2, 32], strides = [1, 1]} : vector<2x128xf32> to vector<2x32xf32>
    %539 = vector.extract_strided_slice %536 {offsets = [0, 32], sizes = [2, 32], strides = [1, 1]} : vector<2x128xf32> to vector<2x32xf32>
    %540 = vector.extract_strided_slice %536 {offsets = [0, 96], sizes = [2, 32], strides = [1, 1]} : vector<2x128xf32> to vector<2x32xf32>
    %541 = vector.extract_strided_slice %537 {offsets = [0, 64], sizes = [2, 32], strides = [1, 1]} : vector<2x128xf32> to vector<2x32xf32>
    %542 = arith.mulf %539, %496 : vector<2x32xf32>
    %543 = arith.mulf %538, %541 : vector<2x32xf32>
    %544 = arith.addf %542, %543 : vector<2x32xf32>
    %545 = math.tanh %544 : vector<2x32xf32>
    %546 = arith.mulf %540, %545 : vector<2x32xf32>
    %c0_206 = arith.constant 0 : index
    %c0_207 = arith.constant 0 : index
    %547 = vector.load %arg14[%c0_206, %c0_207] : memref<32x128xbf16, #tpu.memory_space<vmem>>, vector<32x128xbf16>
    %548 = arith.truncf %546 : vector<2x32xf32> to vector<2x32xbf16>
    %cst_208 = arith.constant dense<0.000000e+00> : vector<2x128xf32>
    %549 = tpu.matmul %548, %547, %cst_208 {dimension_numbers = #tpu.dot_dimension_numbers<[1], [0], [0], [1], [0, 0, 1, 1], [], []>} : vector<2x32xbf16>, vector<32x128xbf16>, vector<2x128xf32> -> vector<2x128xf32>
    %c0_209 = arith.constant 0 : index
    %c0_210 = arith.constant 0 : index
    %550 = vector.load %arg15[%c0_209, %c0_210] : memref<32x128xbf16, #tpu.memory_space<vmem>>, vector<32x128xbf16>
    %551 = arith.truncf %522 : vector<2x32xf32> to vector<2x32xbf16>
    %cst_211 = arith.constant dense<0.000000e+00> : vector<2x128xf32>
    %552 = tpu.matmul %551, %550, %cst_211 {dimension_numbers = #tpu.dot_dimension_numbers<[1], [0], [0], [1], [0, 0, 1, 1], [], []>} : vector<2x32xbf16>, vector<32x128xbf16>, vector<2x128xf32> -> vector<2x128xf32>
    %553 = arith.addf %549, %552 : vector<2x128xf32>
    %c0_212 = arith.constant 0 : index
    %c0_213 = arith.constant 0 : index
    %554 = vector.load %arg16[%c0_212, %c0_213] : memref<2x128xf32, #tpu.memory_space<vmem>>, vector<2x128xf32>
    %555 = arith.addf %553, %554 : vector<2x128xf32>
    %556 = arith.negf %555 : vector<2x128xf32>
    %557 = math.exp %556 : vector<2x128xf32>
    %cst_214 = arith.constant 1.000000e+00 : f32
    %558 = vector.broadcast %cst_214 : f32 to vector<2x128xf32>
    %559 = arith.addf %558, %557 : vector<2x128xf32>
    %560 = arith.divf %558, %559 : vector<2x128xf32>
    %561 = math.tanh %555 : vector<2x128xf32>
    %562 = vector.extract_strided_slice %560 {offsets = [0, 0], sizes = [2, 32], strides = [1, 1]} : vector<2x128xf32> to vector<2x32xf32>
    %563 = vector.extract_strided_slice %560 {offsets = [0, 32], sizes = [2, 32], strides = [1, 1]} : vector<2x128xf32> to vector<2x32xf32>
    %564 = vector.extract_strided_slice %560 {offsets = [0, 96], sizes = [2, 32], strides = [1, 1]} : vector<2x128xf32> to vector<2x32xf32>
    %565 = vector.extract_strided_slice %561 {offsets = [0, 64], sizes = [2, 32], strides = [1, 1]} : vector<2x128xf32> to vector<2x32xf32>
    %566 = arith.mulf %563, %520 : vector<2x32xf32>
    %567 = arith.mulf %562, %565 : vector<2x32xf32>
    %568 = arith.addf %566, %567 : vector<2x32xf32>
    %569 = math.tanh %568 : vector<2x32xf32>
    %570 = arith.mulf %564, %569 : vector<2x32xf32>
    %c0_215 = arith.constant 0 : index
    %c0_216 = arith.constant 0 : index
    %571 = vector.load %arg11[%c0_215, %c0_216] : memref<32x128xbf16, #tpu.memory_space<vmem>>, vector<32x128xbf16>
    %572 = arith.truncf %570 : vector<2x32xf32> to vector<2x32xbf16>
    %cst_217 = arith.constant dense<0.000000e+00> : vector<2x128xf32>
    %573 = tpu.matmul %572, %571, %cst_217 {dimension_numbers = #tpu.dot_dimension_numbers<[1], [0], [0], [1], [0, 0, 1, 1], [], []>} : vector<2x32xbf16>, vector<32x128xbf16>, vector<2x128xf32> -> vector<2x128xf32>
    %c0_218 = arith.constant 0 : index
    %c0_219 = arith.constant 0 : index
    %574 = vector.load %arg13[%c0_218, %c0_219] : memref<32x128xbf16, #tpu.memory_space<vmem>>, vector<32x128xbf16>
    %575 = arith.truncf %546 : vector<2x32xf32> to vector<2x32xbf16>
    %cst_220 = arith.constant dense<0.000000e+00> : vector<2x128xf32>
    %576 = tpu.matmul %575, %574, %cst_220 {dimension_numbers = #tpu.dot_dimension_numbers<[1], [0], [0], [1], [0, 0, 1, 1], [], []>} : vector<2x32xbf16>, vector<32x128xbf16>, vector<2x128xf32> -> vector<2x128xf32>
    %577 = arith.addf %573, %576 : vector<2x128xf32>
    %c0_221 = arith.constant 0 : index
    %c0_222 = arith.constant 0 : index
    %578 = vector.load %arg12[%c0_221, %c0_222] : memref<2x128xf32, #tpu.memory_space<vmem>>, vector<2x128xf32>
    %579 = arith.addf %577, %578 : vector<2x128xf32>
    %580 = arith.negf %579 : vector<2x128xf32>
    %581 = math.exp %580 : vector<2x128xf32>
    %cst_223 = arith.constant 1.000000e+00 : f32
    %582 = vector.broadcast %cst_223 : f32 to vector<2x128xf32>
    %583 = arith.addf %582, %581 : vector<2x128xf32>
    %584 = arith.divf %582, %583 : vector<2x128xf32>
    %585 = math.tanh %579 : vector<2x128xf32>
    %586 = vector.extract_strided_slice %584 {offsets = [0, 0], sizes = [2, 32], strides = [1, 1]} : vector<2x128xf32> to vector<2x32xf32>
    %587 = vector.extract_strided_slice %584 {offsets = [0, 32], sizes = [2, 32], strides = [1, 1]} : vector<2x128xf32> to vector<2x32xf32>
    %588 = vector.extract_strided_slice %584 {offsets = [0, 96], sizes = [2, 32], strides = [1, 1]} : vector<2x128xf32> to vector<2x32xf32>
    %589 = vector.extract_strided_slice %585 {offsets = [0, 64], sizes = [2, 32], strides = [1, 1]} : vector<2x128xf32> to vector<2x32xf32>
    %590 = arith.mulf %587, %544 : vector<2x32xf32>
    %591 = arith.mulf %586, %589 : vector<2x32xf32>
    %592 = arith.addf %590, %591 : vector<2x32xf32>
    %593 = math.tanh %592 : vector<2x32xf32>
    %594 = arith.mulf %588, %593 : vector<2x32xf32>
    %c0_224 = arith.constant 0 : index
    %c0_225 = arith.constant 0 : index
    %595 = vector.load %arg14[%c0_224, %c0_225] : memref<32x128xbf16, #tpu.memory_space<vmem>>, vector<32x128xbf16>
    %596 = arith.truncf %594 : vector<2x32xf32> to vector<2x32xbf16>
    %cst_226 = arith.constant dense<0.000000e+00> : vector<2x128xf32>
    %597 = tpu.matmul %596, %595, %cst_226 {dimension_numbers = #tpu.dot_dimension_numbers<[1], [0], [0], [1], [0, 0, 1, 1], [], []>} : vector<2x32xbf16>, vector<32x128xbf16>, vector<2x128xf32> -> vector<2x128xf32>
    %c0_227 = arith.constant 0 : index
    %c0_228 = arith.constant 0 : index
    %598 = vector.load %arg15[%c0_227, %c0_228] : memref<32x128xbf16, #tpu.memory_space<vmem>>, vector<32x128xbf16>
    %599 = arith.truncf %570 : vector<2x32xf32> to vector<2x32xbf16>
    %cst_229 = arith.constant dense<0.000000e+00> : vector<2x128xf32>
    %600 = tpu.matmul %599, %598, %cst_229 {dimension_numbers = #tpu.dot_dimension_numbers<[1], [0], [0], [1], [0, 0, 1, 1], [], []>} : vector<2x32xbf16>, vector<32x128xbf16>, vector<2x128xf32> -> vector<2x128xf32>
    %601 = arith.addf %597, %600 : vector<2x128xf32>
    %c0_230 = arith.constant 0 : index
    %c0_231 = arith.constant 0 : index
    %602 = vector.load %arg16[%c0_230, %c0_231] : memref<2x128xf32, #tpu.memory_space<vmem>>, vector<2x128xf32>
    %603 = arith.addf %601, %602 : vector<2x128xf32>
    %604 = arith.negf %603 : vector<2x128xf32>
    %605 = math.exp %604 : vector<2x128xf32>
    %cst_232 = arith.constant 1.000000e+00 : f32
    %606 = vector.broadcast %cst_232 : f32 to vector<2x128xf32>
    %607 = arith.addf %606, %605 : vector<2x128xf32>
    %608 = arith.divf %606, %607 : vector<2x128xf32>
    %609 = math.tanh %603 : vector<2x128xf32>
    %610 = vector.extract_strided_slice %608 {offsets = [0, 0], sizes = [2, 32], strides = [1, 1]} : vector<2x128xf32> to vector<2x32xf32>
    %611 = vector.extract_strided_slice %608 {offsets = [0, 32], sizes = [2, 32], strides = [1, 1]} : vector<2x128xf32> to vector<2x32xf32>
    %612 = vector.extract_strided_slice %608 {offsets = [0, 96], sizes = [2, 32], strides = [1, 1]} : vector<2x128xf32> to vector<2x32xf32>
    %613 = vector.extract_strided_slice %609 {offsets = [0, 64], sizes = [2, 32], strides = [1, 1]} : vector<2x128xf32> to vector<2x32xf32>
    %614 = arith.mulf %611, %568 : vector<2x32xf32>
    %615 = arith.mulf %610, %613 : vector<2x32xf32>
    %616 = arith.addf %614, %615 : vector<2x32xf32>
    %617 = math.tanh %616 : vector<2x32xf32>
    %618 = arith.mulf %612, %617 : vector<2x32xf32>
    %c0_233 = arith.constant 0 : index
    %c0_234 = arith.constant 0 : index
    %619 = vector.load %arg11[%c0_233, %c0_234] : memref<32x128xbf16, #tpu.memory_space<vmem>>, vector<32x128xbf16>
    %620 = arith.truncf %618 : vector<2x32xf32> to vector<2x32xbf16>
    %cst_235 = arith.constant dense<0.000000e+00> : vector<2x128xf32>
    %621 = tpu.matmul %620, %619, %cst_235 {dimension_numbers = #tpu.dot_dimension_numbers<[1], [0], [0], [1], [0, 0, 1, 1], [], []>} : vector<2x32xbf16>, vector<32x128xbf16>, vector<2x128xf32> -> vector<2x128xf32>
    %c0_236 = arith.constant 0 : index
    %c0_237 = arith.constant 0 : index
    %622 = vector.load %arg13[%c0_236, %c0_237] : memref<32x128xbf16, #tpu.memory_space<vmem>>, vector<32x128xbf16>
    %623 = arith.truncf %594 : vector<2x32xf32> to vector<2x32xbf16>
    %cst_238 = arith.constant dense<0.000000e+00> : vector<2x128xf32>
    %624 = tpu.matmul %623, %622, %cst_238 {dimension_numbers = #tpu.dot_dimension_numbers<[1], [0], [0], [1], [0, 0, 1, 1], [], []>} : vector<2x32xbf16>, vector<32x128xbf16>, vector<2x128xf32> -> vector<2x128xf32>
    %625 = arith.addf %621, %624 : vector<2x128xf32>
    %c0_239 = arith.constant 0 : index
    %c0_240 = arith.constant 0 : index
    %626 = vector.load %arg12[%c0_239, %c0_240] : memref<2x128xf32, #tpu.memory_space<vmem>>, vector<2x128xf32>
    %627 = arith.addf %625, %626 : vector<2x128xf32>
    %628 = arith.negf %627 : vector<2x128xf32>
    %629 = math.exp %628 : vector<2x128xf32>
    %cst_241 = arith.constant 1.000000e+00 : f32
    %630 = vector.broadcast %cst_241 : f32 to vector<2x128xf32>
    %631 = arith.addf %630, %629 : vector<2x128xf32>
    %632 = arith.divf %630, %631 : vector<2x128xf32>
    %633 = math.tanh %627 : vector<2x128xf32>
    %634 = vector.extract_strided_slice %632 {offsets = [0, 0], sizes = [2, 32], strides = [1, 1]} : vector<2x128xf32> to vector<2x32xf32>
    %635 = vector.extract_strided_slice %632 {offsets = [0, 32], sizes = [2, 32], strides = [1, 1]} : vector<2x128xf32> to vector<2x32xf32>
    %636 = vector.extract_strided_slice %632 {offsets = [0, 96], sizes = [2, 32], strides = [1, 1]} : vector<2x128xf32> to vector<2x32xf32>
    %637 = vector.extract_strided_slice %633 {offsets = [0, 64], sizes = [2, 32], strides = [1, 1]} : vector<2x128xf32> to vector<2x32xf32>
    %638 = arith.mulf %635, %592 : vector<2x32xf32>
    %639 = arith.mulf %634, %637 : vector<2x32xf32>
    %640 = arith.addf %638, %639 : vector<2x32xf32>
    %641 = math.tanh %640 : vector<2x32xf32>
    %642 = arith.mulf %636, %641 : vector<2x32xf32>
    %c0_242 = arith.constant 0 : index
    %c0_243 = arith.constant 0 : index
    %643 = vector.load %arg14[%c0_242, %c0_243] : memref<32x128xbf16, #tpu.memory_space<vmem>>, vector<32x128xbf16>
    %644 = arith.truncf %642 : vector<2x32xf32> to vector<2x32xbf16>
    %cst_244 = arith.constant dense<0.000000e+00> : vector<2x128xf32>
    %645 = tpu.matmul %644, %643, %cst_244 {dimension_numbers = #tpu.dot_dimension_numbers<[1], [0], [0], [1], [0, 0, 1, 1], [], []>} : vector<2x32xbf16>, vector<32x128xbf16>, vector<2x128xf32> -> vector<2x128xf32>
    %c0_245 = arith.constant 0 : index
    %c0_246 = arith.constant 0 : index
    %646 = vector.load %arg15[%c0_245, %c0_246] : memref<32x128xbf16, #tpu.memory_space<vmem>>, vector<32x128xbf16>
    %647 = arith.truncf %618 : vector<2x32xf32> to vector<2x32xbf16>
    %cst_247 = arith.constant dense<0.000000e+00> : vector<2x128xf32>
    %648 = tpu.matmul %647, %646, %cst_247 {dimension_numbers = #tpu.dot_dimension_numbers<[1], [0], [0], [1], [0, 0, 1, 1], [], []>} : vector<2x32xbf16>, vector<32x128xbf16>, vector<2x128xf32> -> vector<2x128xf32>
    %649 = arith.addf %645, %648 : vector<2x128xf32>
    %c0_248 = arith.constant 0 : index
    %c0_249 = arith.constant 0 : index
    %650 = vector.load %arg16[%c0_248, %c0_249] : memref<2x128xf32, #tpu.memory_space<vmem>>, vector<2x128xf32>
    %651 = arith.addf %649, %650 : vector<2x128xf32>
    %652 = arith.negf %651 : vector<2x128xf32>
    %653 = math.exp %652 : vector<2x128xf32>
    %cst_250 = arith.constant 1.000000e+00 : f32
    %654 = vector.broadcast %cst_250 : f32 to vector<2x128xf32>
    %655 = arith.addf %654, %653 : vector<2x128xf32>
    %656 = arith.divf %654, %655 : vector<2x128xf32>
    %657 = math.tanh %651 : vector<2x128xf32>
    %658 = vector.extract_strided_slice %656 {offsets = [0, 0], sizes = [2, 32], strides = [1, 1]} : vector<2x128xf32> to vector<2x32xf32>
    %659 = vector.extract_strided_slice %656 {offsets = [0, 32], sizes = [2, 32], strides = [1, 1]} : vector<2x128xf32> to vector<2x32xf32>
    %660 = vector.extract_strided_slice %656 {offsets = [0, 96], sizes = [2, 32], strides = [1, 1]} : vector<2x128xf32> to vector<2x32xf32>
    %661 = vector.extract_strided_slice %657 {offsets = [0, 64], sizes = [2, 32], strides = [1, 1]} : vector<2x128xf32> to vector<2x32xf32>
    %662 = arith.mulf %659, %616 : vector<2x32xf32>
    %663 = arith.mulf %658, %661 : vector<2x32xf32>
    %664 = arith.addf %662, %663 : vector<2x32xf32>
    %665 = math.tanh %664 : vector<2x32xf32>
    %666 = arith.mulf %660, %665 : vector<2x32xf32>
    %c0_251 = arith.constant 0 : index
    %c0_252 = arith.constant 0 : index
    %667 = vector.load %arg11[%c0_251, %c0_252] : memref<32x128xbf16, #tpu.memory_space<vmem>>, vector<32x128xbf16>
    %668 = arith.truncf %666 : vector<2x32xf32> to vector<2x32xbf16>
    %cst_253 = arith.constant dense<0.000000e+00> : vector<2x128xf32>
    %669 = tpu.matmul %668, %667, %cst_253 {dimension_numbers = #tpu.dot_dimension_numbers<[1], [0], [0], [1], [0, 0, 1, 1], [], []>} : vector<2x32xbf16>, vector<32x128xbf16>, vector<2x128xf32> -> vector<2x128xf32>
    %c0_254 = arith.constant 0 : index
    %c0_255 = arith.constant 0 : index
    %670 = vector.load %arg13[%c0_254, %c0_255] : memref<32x128xbf16, #tpu.memory_space<vmem>>, vector<32x128xbf16>
    %671 = arith.truncf %642 : vector<2x32xf32> to vector<2x32xbf16>
    %cst_256 = arith.constant dense<0.000000e+00> : vector<2x128xf32>
    %672 = tpu.matmul %671, %670, %cst_256 {dimension_numbers = #tpu.dot_dimension_numbers<[1], [0], [0], [1], [0, 0, 1, 1], [], []>} : vector<2x32xbf16>, vector<32x128xbf16>, vector<2x128xf32> -> vector<2x128xf32>
    %673 = arith.addf %669, %672 : vector<2x128xf32>
    %c0_257 = arith.constant 0 : index
    %c0_258 = arith.constant 0 : index
    %674 = vector.load %arg12[%c0_257, %c0_258] : memref<2x128xf32, #tpu.memory_space<vmem>>, vector<2x128xf32>
    %675 = arith.addf %673, %674 : vector<2x128xf32>
    %676 = arith.negf %675 : vector<2x128xf32>
    %677 = math.exp %676 : vector<2x128xf32>
    %cst_259 = arith.constant 1.000000e+00 : f32
    %678 = vector.broadcast %cst_259 : f32 to vector<2x128xf32>
    %679 = arith.addf %678, %677 : vector<2x128xf32>
    %680 = arith.divf %678, %679 : vector<2x128xf32>
    %681 = math.tanh %675 : vector<2x128xf32>
    %682 = vector.extract_strided_slice %680 {offsets = [0, 0], sizes = [2, 32], strides = [1, 1]} : vector<2x128xf32> to vector<2x32xf32>
    %683 = vector.extract_strided_slice %680 {offsets = [0, 32], sizes = [2, 32], strides = [1, 1]} : vector<2x128xf32> to vector<2x32xf32>
    %684 = vector.extract_strided_slice %680 {offsets = [0, 96], sizes = [2, 32], strides = [1, 1]} : vector<2x128xf32> to vector<2x32xf32>
    %685 = vector.extract_strided_slice %681 {offsets = [0, 64], sizes = [2, 32], strides = [1, 1]} : vector<2x128xf32> to vector<2x32xf32>
    %686 = arith.mulf %683, %640 : vector<2x32xf32>
    %687 = arith.mulf %682, %685 : vector<2x32xf32>
    %688 = arith.addf %686, %687 : vector<2x32xf32>
    %689 = math.tanh %688 : vector<2x32xf32>
    %690 = arith.mulf %684, %689 : vector<2x32xf32>
    %c0_260 = arith.constant 0 : index
    %c0_261 = arith.constant 0 : index
    %691 = vector.load %arg14[%c0_260, %c0_261] : memref<32x128xbf16, #tpu.memory_space<vmem>>, vector<32x128xbf16>
    %692 = arith.truncf %690 : vector<2x32xf32> to vector<2x32xbf16>
    %cst_262 = arith.constant dense<0.000000e+00> : vector<2x128xf32>
    %693 = tpu.matmul %692, %691, %cst_262 {dimension_numbers = #tpu.dot_dimension_numbers<[1], [0], [0], [1], [0, 0, 1, 1], [], []>} : vector<2x32xbf16>, vector<32x128xbf16>, vector<2x128xf32> -> vector<2x128xf32>
    %c0_263 = arith.constant 0 : index
    %c0_264 = arith.constant 0 : index
    %694 = vector.load %arg15[%c0_263, %c0_264] : memref<32x128xbf16, #tpu.memory_space<vmem>>, vector<32x128xbf16>
    %695 = arith.truncf %666 : vector<2x32xf32> to vector<2x32xbf16>
    %cst_265 = arith.constant dense<0.000000e+00> : vector<2x128xf32>
    %696 = tpu.matmul %695, %694, %cst_265 {dimension_numbers = #tpu.dot_dimension_numbers<[1], [0], [0], [1], [0, 0, 1, 1], [], []>} : vector<2x32xbf16>, vector<32x128xbf16>, vector<2x128xf32> -> vector<2x128xf32>
    %697 = arith.addf %693, %696 : vector<2x128xf32>
    %c0_266 = arith.constant 0 : index
    %c0_267 = arith.constant 0 : index
    %698 = vector.load %arg16[%c0_266, %c0_267] : memref<2x128xf32, #tpu.memory_space<vmem>>, vector<2x128xf32>
    %699 = arith.addf %697, %698 : vector<2x128xf32>
    %700 = arith.negf %699 : vector<2x128xf32>
    %701 = math.exp %700 : vector<2x128xf32>
    %cst_268 = arith.constant 1.000000e+00 : f32
    %702 = vector.broadcast %cst_268 : f32 to vector<2x128xf32>
    %703 = arith.addf %702, %701 : vector<2x128xf32>
    %704 = arith.divf %702, %703 : vector<2x128xf32>
    %705 = math.tanh %699 : vector<2x128xf32>
    %706 = vector.extract_strided_slice %704 {offsets = [0, 0], sizes = [2, 32], strides = [1, 1]} : vector<2x128xf32> to vector<2x32xf32>
    %707 = vector.extract_strided_slice %704 {offsets = [0, 32], sizes = [2, 32], strides = [1, 1]} : vector<2x128xf32> to vector<2x32xf32>
    %708 = vector.extract_strided_slice %704 {offsets = [0, 96], sizes = [2, 32], strides = [1, 1]} : vector<2x128xf32> to vector<2x32xf32>
    %709 = vector.extract_strided_slice %705 {offsets = [0, 64], sizes = [2, 32], strides = [1, 1]} : vector<2x128xf32> to vector<2x32xf32>
    %710 = arith.mulf %707, %664 : vector<2x32xf32>
    %711 = arith.mulf %706, %709 : vector<2x32xf32>
    %712 = arith.addf %710, %711 : vector<2x32xf32>
    %713 = math.tanh %712 : vector<2x32xf32>
    %714 = arith.mulf %708, %713 : vector<2x32xf32>
    %c0_269 = arith.constant 0 : index
    %c0_270 = arith.constant 0 : index
    %715 = vector.load %arg11[%c0_269, %c0_270] : memref<32x128xbf16, #tpu.memory_space<vmem>>, vector<32x128xbf16>
    %716 = arith.truncf %714 : vector<2x32xf32> to vector<2x32xbf16>
    %cst_271 = arith.constant dense<0.000000e+00> : vector<2x128xf32>
    %717 = tpu.matmul %716, %715, %cst_271 {dimension_numbers = #tpu.dot_dimension_numbers<[1], [0], [0], [1], [0, 0, 1, 1], [], []>} : vector<2x32xbf16>, vector<32x128xbf16>, vector<2x128xf32> -> vector<2x128xf32>
    %c0_272 = arith.constant 0 : index
    %c0_273 = arith.constant 0 : index
    %718 = vector.load %arg13[%c0_272, %c0_273] : memref<32x128xbf16, #tpu.memory_space<vmem>>, vector<32x128xbf16>
    %719 = arith.truncf %690 : vector<2x32xf32> to vector<2x32xbf16>
    %cst_274 = arith.constant dense<0.000000e+00> : vector<2x128xf32>
    %720 = tpu.matmul %719, %718, %cst_274 {dimension_numbers = #tpu.dot_dimension_numbers<[1], [0], [0], [1], [0, 0, 1, 1], [], []>} : vector<2x32xbf16>, vector<32x128xbf16>, vector<2x128xf32> -> vector<2x128xf32>
    %721 = arith.addf %717, %720 : vector<2x128xf32>
    %c0_275 = arith.constant 0 : index
    %c0_276 = arith.constant 0 : index
    %722 = vector.load %arg12[%c0_275, %c0_276] : memref<2x128xf32, #tpu.memory_space<vmem>>, vector<2x128xf32>
    %723 = arith.addf %721, %722 : vector<2x128xf32>
    %724 = arith.negf %723 : vector<2x128xf32>
    %725 = math.exp %724 : vector<2x128xf32>
    %cst_277 = arith.constant 1.000000e+00 : f32
    %726 = vector.broadcast %cst_277 : f32 to vector<2x128xf32>
    %727 = arith.addf %726, %725 : vector<2x128xf32>
    %728 = arith.divf %726, %727 : vector<2x128xf32>
    %729 = math.tanh %723 : vector<2x128xf32>
    %730 = vector.extract_strided_slice %728 {offsets = [0, 0], sizes = [2, 32], strides = [1, 1]} : vector<2x128xf32> to vector<2x32xf32>
    %731 = vector.extract_strided_slice %728 {offsets = [0, 32], sizes = [2, 32], strides = [1, 1]} : vector<2x128xf32> to vector<2x32xf32>
    %732 = vector.extract_strided_slice %728 {offsets = [0, 96], sizes = [2, 32], strides = [1, 1]} : vector<2x128xf32> to vector<2x32xf32>
    %733 = vector.extract_strided_slice %729 {offsets = [0, 64], sizes = [2, 32], strides = [1, 1]} : vector<2x128xf32> to vector<2x32xf32>
    %734 = arith.mulf %731, %688 : vector<2x32xf32>
    %735 = arith.mulf %730, %733 : vector<2x32xf32>
    %736 = arith.addf %734, %735 : vector<2x32xf32>
    %737 = math.tanh %736 : vector<2x32xf32>
    %738 = arith.mulf %732, %737 : vector<2x32xf32>
    %c0_278 = arith.constant 0 : index
    %c0_279 = arith.constant 0 : index
    %739 = vector.load %arg14[%c0_278, %c0_279] : memref<32x128xbf16, #tpu.memory_space<vmem>>, vector<32x128xbf16>
    %740 = arith.truncf %738 : vector<2x32xf32> to vector<2x32xbf16>
    %cst_280 = arith.constant dense<0.000000e+00> : vector<2x128xf32>
    %741 = tpu.matmul %740, %739, %cst_280 {dimension_numbers = #tpu.dot_dimension_numbers<[1], [0], [0], [1], [0, 0, 1, 1], [], []>} : vector<2x32xbf16>, vector<32x128xbf16>, vector<2x128xf32> -> vector<2x128xf32>
    %c0_281 = arith.constant 0 : index
    %c0_282 = arith.constant 0 : index
    %742 = vector.load %arg15[%c0_281, %c0_282] : memref<32x128xbf16, #tpu.memory_space<vmem>>, vector<32x128xbf16>
    %743 = arith.truncf %714 : vector<2x32xf32> to vector<2x32xbf16>
    %cst_283 = arith.constant dense<0.000000e+00> : vector<2x128xf32>
    %744 = tpu.matmul %743, %742, %cst_283 {dimension_numbers = #tpu.dot_dimension_numbers<[1], [0], [0], [1], [0, 0, 1, 1], [], []>} : vector<2x32xbf16>, vector<32x128xbf16>, vector<2x128xf32> -> vector<2x128xf32>
    %745 = arith.addf %741, %744 : vector<2x128xf32>
    %c0_284 = arith.constant 0 : index
    %c0_285 = arith.constant 0 : index
    %746 = vector.load %arg16[%c0_284, %c0_285] : memref<2x128xf32, #tpu.memory_space<vmem>>, vector<2x128xf32>
    %747 = arith.addf %745, %746 : vector<2x128xf32>
    %748 = arith.negf %747 : vector<2x128xf32>
    %749 = math.exp %748 : vector<2x128xf32>
    %cst_286 = arith.constant 1.000000e+00 : f32
    %750 = vector.broadcast %cst_286 : f32 to vector<2x128xf32>
    %751 = arith.addf %750, %749 : vector<2x128xf32>
    %752 = arith.divf %750, %751 : vector<2x128xf32>
    %753 = math.tanh %747 : vector<2x128xf32>
    %754 = vector.extract_strided_slice %752 {offsets = [0, 0], sizes = [2, 32], strides = [1, 1]} : vector<2x128xf32> to vector<2x32xf32>
    %755 = vector.extract_strided_slice %752 {offsets = [0, 32], sizes = [2, 32], strides = [1, 1]} : vector<2x128xf32> to vector<2x32xf32>
    %756 = vector.extract_strided_slice %752 {offsets = [0, 96], sizes = [2, 32], strides = [1, 1]} : vector<2x128xf32> to vector<2x32xf32>
    %757 = vector.extract_strided_slice %753 {offsets = [0, 64], sizes = [2, 32], strides = [1, 1]} : vector<2x128xf32> to vector<2x32xf32>
    %758 = arith.mulf %755, %712 : vector<2x32xf32>
    %759 = arith.mulf %754, %757 : vector<2x32xf32>
    %760 = arith.addf %758, %759 : vector<2x32xf32>
    %761 = math.tanh %760 : vector<2x32xf32>
    %762 = arith.mulf %756, %761 : vector<2x32xf32>
    %c0_287 = arith.constant 0 : index
    %c0_288 = arith.constant 0 : index
    %c0_289 = arith.constant 0 : index
    %763 = vector.load %arg22[%c0_287, %c0_288, %c0_289] : memref<2x2x32xf32, #tpu.memory_space<vmem>>, vector<1x2x32xf32>
    %764 = vector.shape_cast %763 : vector<1x2x32xf32> to vector<2x32xf32>
    %765 = vector.shape_cast %738 : vector<2x32xf32> to vector<1x2x32xf32>
    tpu.vector_store %arg22[%c0_287, %c0_288, %c0_289], %765 {strides = array<i32>} : memref<2x2x32xf32, #tpu.memory_space<vmem>>, vector<1x2x32xf32>,
    %c0_290 = arith.constant 0 : index
    %c0_291 = arith.constant 0 : index
    %c0_292 = arith.constant 0 : index
    %766 = vector.load %arg23[%c0_290, %c0_291, %c0_292] : memref<2x2x32xf32, #tpu.memory_space<vmem>>, vector<1x2x32xf32>
    %767 = vector.shape_cast %766 : vector<1x2x32xf32> to vector<2x32xf32>
    %768 = vector.shape_cast %736 : vector<2x32xf32> to vector<1x2x32xf32>
    tpu.vector_store %arg23[%c0_290, %c0_291, %c0_292], %768 {strides = array<i32>} : memref<2x2x32xf32, #tpu.memory_space<vmem>>, vector<1x2x32xf32>,
    %c1_293 = arith.constant 1 : index
    %c0_294 = arith.constant 0 : index
    %c0_295 = arith.constant 0 : index
    %769 = vector.load %arg22[%c1_293, %c0_294, %c0_295] : memref<2x2x32xf32, #tpu.memory_space<vmem>>, vector<1x2x32xf32>
    %770 = vector.shape_cast %769 : vector<1x2x32xf32> to vector<2x32xf32>
    %771 = vector.shape_cast %762 : vector<2x32xf32> to vector<1x2x32xf32>
    tpu.vector_store %arg22[%c1_293, %c0_294, %c0_295], %771 {strides = array<i32>} : memref<2x2x32xf32, #tpu.memory_space<vmem>>, vector<1x2x32xf32>,
    %c1_296 = arith.constant 1 : index
    %c0_297 = arith.constant 0 : index
    %c0_298 = arith.constant 0 : index
    %772 = vector.load %arg23[%c1_296, %c0_297, %c0_298] : memref<2x2x32xf32, #tpu.memory_space<vmem>>, vector<1x2x32xf32>
    %773 = vector.shape_cast %772 : vector<1x2x32xf32> to vector<2x32xf32>
    %774 = vector.shape_cast %760 : vector<2x32xf32> to vector<1x2x32xf32>
    tpu.vector_store %arg23[%c1_296, %c0_297, %c0_298], %774 {strides = array<i32>} : memref<2x2x32xf32, #tpu.memory_space<vmem>>, vector<1x2x32xf32>,
    %775 = tpu.concatenate %426, %474, %522, %570, %618, %666, %714, %762 in 0 : vector<2x32xf32>, vector<2x32xf32>, vector<2x32xf32>, vector<2x32xf32>, vector<2x32xf32>, vector<2x32xf32>, vector<2x32xf32>, vector<2x32xf32> -> vector<16x32xf32>
    %c0_299 = arith.constant 0 : index
    %c0_300 = arith.constant 0 : index
    %776 = vector.load %arg17[%c0_299, %c0_300] : memref<32x4xbf16, #tpu.memory_space<vmem>>, vector<32x4xbf16>
    %777 = arith.truncf %775 : vector<16x32xf32> to vector<16x32xbf16>
    %cst_301 = arith.constant dense<0.000000e+00> : vector<16x4xf32>
    %778 = tpu.matmul %777, %776, %cst_301 {dimension_numbers = #tpu.dot_dimension_numbers<[1], [0], [0], [1], [0, 0, 1, 1], [], []>} : vector<16x32xbf16>, vector<32x4xbf16>, vector<16x4xf32> -> vector<16x4xf32>
    %c0_302 = arith.constant 0 : index
    %c0_303 = arith.constant 0 : index
    %779 = vector.load %arg18[%c0_302, %c0_303] : memref<16x4xf32, #tpu.memory_space<vmem>>, vector<16x4xf32>
    %780 = arith.addf %778, %779 : vector<16x4xf32>
    %c0_304 = arith.constant 0 : index
    %c0_305 = arith.constant 0 : index
    %781 = vector.load %arg19[%c0_304, %c0_305] : memref<16x4xf32, #tpu.memory_space<vmem>>, vector<16x4xf32>
    tpu.vector_store %arg19[%c0_304, %c0_305], %780 {strides = array<i32>} : memref<16x4xf32, #tpu.memory_space<vmem>>, vector<16x4xf32>,
    return
  }
}

</mosaic_0001>

<llo_original>
// kernel: sequence2_forward.1
$region0: #{sequence2_forward.1}
  #allocation0 [shape = 'u32[]', space=smem, size = 0x4, offset = 0x4, fixed_abs, tag = 'smem constant byte address 0x4 - core index']
  #allocation1 [shape = 'u32[144,128]{1,0:T(1,128)}', space=vmem, size = 0x12000, scoped, tag = 'internal scratch']
  #allocation2 [shape = 'f32[16,128]{1,0:T(8,128)}', space=vmem, size = 0x2000, scoped, tag = 'scratch operand']
  %s0 = inlined_call_operand.vmem [shape: f32[16,4], index: 0, kind: input, shape index: {}]
  %s1 = inlined_call_operand.hbm [shape: f32[2,2,32], index: 1, kind: input, shape index: {}]
  %s2 = inlined_call_operand.hbm [shape: f32[2,2,32], index: 2, kind: input, shape index: {}]
  %s3 = inlined_call_operand.hbm [shape: bf16[4,128], index: 3, kind: input, shape index: {}]
  %s4 = inlined_call_operand.vmem [shape: f32[16,128], index: 4, kind: input, shape index: {}]
  %s5 = inlined_call_operand.vmem [shape: bf16[32,128], index: 5, kind: input, shape index: {}]
  %s6 = inlined_call_operand.vmem [shape: bf16[32,128], index: 6, kind: input, shape index: {}]
  %s7 = inlined_call_operand.vmem [shape: bf16[32,128], index: 7, kind: input, shape index: {}]
  %s8 = inlined_call_operand.hbm [shape: f32[2,128], index: 8, kind: input, shape index: {}]
  %s9 = inlined_call_operand.vmem [shape: bf16[32,128], index: 9, kind: input, shape index: {}]
  %s10 = inlined_call_operand.vmem [shape: f32[2,128], index: 10, kind: input, shape index: {}]
  %s11 = inlined_call_operand.vmem [shape: bf16[32,128], index: 11, kind: input, shape index: {}]
  %s12 = inlined_call_operand.hbm [shape: f32[2,128], index: 12, kind: input, shape index: {}]
  %s13 = inlined_call_operand.vmem [shape: bf16[32,128], index: 13, kind: input, shape index: {}]
  %s14 = inlined_call_operand.hbm [shape: bf16[32,128], index: 14, kind: input, shape index: {}]
  %s15 = inlined_call_operand.hbm [shape: bf16[32,128], index: 15, kind: input, shape index: {}]
  %s16 = inlined_call_operand.vmem [shape: f32[2,128], index: 16, kind: input, shape index: {}]
  %s17 = inlined_call_operand.vmem [shape: bf16[32,4], index: 17, kind: input, shape index: {}]
  %s18 = inlined_call_operand.vmem [shape: f32[16,4], index: 18, kind: input, shape index: {}]
  %s19 = inlined_call_operand.vmem [shape: f32[16,4], index: 19, kind: output, shape index: {0}]
  %s20 = inlined_call_operand.hbm [shape: f32[2,2,32], index: 20, kind: output, shape index: {1}]
  %s21 = inlined_call_operand.hbm [shape: f32[2,2,32], index: 21, kind: output, shape index: {2}]
  %s22 = inlined_call_operand.hbm [shape: f32[2,2,32], index: 22, kind: output, shape index: {3}]
  %s23 = inlined_call_operand.hbm [shape: f32[2,2,32], index: 23, kind: output, shape index: {4}]
  %24 = xla_tuple %s19, %s20, %s21, %s22, %s23
  %s25 = sld [smem:[#allocation0]]
  $region146: #{sequence2_forward.1} parent=0
    _
  %s27 = ssub.s32 1, %s25
  %s28 = scalar_select 0, %s27, %s25
  $region1: #{sequence2_forward.1} parent=0
    #allocation3 [shape = 'u8[2048]{0}', space=vmem, size = 0x800, scoped, tag = 'input window, operand 1, single buffered']
    #allocation4 [shape = 's32[1]{0}', space=sflag, size = 0x4, scoped, tag = 'scoped memory for sequence2_forward.1']
    #allocation5 [shape = 's32[1]{0}', space=sflag, size = 0x4, scoped, tag = 'scoped memory for sequence2_forward.1']
    #allocation6 [shape = 'u8[2048]{0}', space=vmem, size = 0x800, scoped, tag = 'input window, operand 2, single buffered']
    #allocation7 [shape = 's32[1]{0}', space=sflag, size = 0x4, scoped, tag = 'scoped memory for sequence2_forward.1']
    #allocation8 [shape = 'u8[1024]{0}', space=vmem, size = 0x400, scoped, tag = 'input window, operand 3, single buffered']
    #allocation9 [shape = 'u8[1024]{0}', space=vmem, size = 0x400, scoped, tag = 'input window, operand 8, single buffered']
    #allocation10 [shape = 's32[1]{0}', space=sflag, size = 0x4, scoped, tag = 'scoped memory for sequence2_forward.1']
    #allocation11 [shape = 'u8[1024]{0}', space=vmem, size = 0x400, scoped, tag = 'input window, operand 12, single buffered']
    #allocation12 [shape = 'u8[8192]{0}', space=vmem, size = 0x2000, scoped, tag = 'input window, operand 14, single buffered']
    #allocation13 [shape = 's32[1]{0}', space=sflag, size = 0x4, scoped, tag = 'scoped memory for sequence2_forward.1']
    #allocation14 [shape = 'u8[8192]{0}', space=vmem, size = 0x2000, scoped, tag = 'input window, operand 15, single buffered']
    #allocation15 [shape = 'u8[2048]{0}', space=vmem, size = 0x800, scoped, tag = 'output window, operand 1, single buffered']
    #allocation16 [shape = 'u8[2048]{0}', space=vmem, size = 0x800, scoped, tag = 'output window, operand 2, single buffered']
    #allocation17 [shape = 's32[1]{0}', space=sflag, size = 0x4, scoped, tag = 'scoped memory for sequence2_forward.1']
    #allocation18 [shape = 'u8[2048]{0}', space=vmem, size = 0x800, scoped, tag = 'output window, operand 3, single buffered']
    #allocation19 [shape = 'u8[2048]{0}', space=vmem, size = 0x800, scoped, tag = 'output window, operand 4, single buffered']
    #allocation20 [shape = 's32[1]{0}', space=sflag, size = 0x4, scoped, tag = 'scoped memory for sequence2_forward.1']
    %29 = vsyncpa [#allocation4], 0
    %30 = vsyncpa [#allocation7], 0
    %31 = vsyncpa [#allocation10], 0
    %32 = vsyncpa [#allocation13], 0
    %33 = vsyncpa [#allocation5], 0
    %34 = vsyncpa [#allocation17], 0
    %35 = vsyncpa [#allocation20], 0
    // Predicated region
    $region2: #{sequence2_forward.1} parent=1 // pred_check
      _
    $region3: #{sequence2_forward.1} parent=1 // pred_check_branch
      %37 = sbr.rel (0) target = $region5
    $region4: #{sequence2_forward.1} parent=1 // pred_region
      _
    $region5: #{sequence2_forward.1} parent=1 // pred_fallthru
      _
    // Predicated region
    $region6: #{sequence2_forward.1} parent=1 // pred_check
      _
    $region7: #{sequence2_forward.1} parent=1 // pred_check_branch
      %39 = sbr.rel (0) target = $region9
    $region8: #{sequence2_forward.1} parent=1 // pred_region
      %s41 = ssub.s32 64, 64
      %42 = vsyncadd [#allocation4], %s41
      %s43 = sshll.u32 [#allocation3], 4
      %s44 = int_to_ptr.vmem [resolvable:$true] %s43
      %49 = dma.hbm_to_vmem [thread:$0]  %s1, 64, %s44, [#allocation4], 32, 32, 2
    $region9: #{sequence2_forward.1} parent=1 // pred_fallthru
      _
    // Predicated region
    $region10: #{sequence2_forward.1} parent=1 // pred_check
      _
    $region11: #{sequence2_forward.1} parent=1 // pred_check_branch
      %51 = sbr.rel (0) target = $region13
    $region12: #{sequence2_forward.1} parent=1 // pred_region
      %s53 = ssub.s32 64, 64
      %54 = vsyncadd [#allocation7], %s53
      %s55 = sshll.u32 [#allocation6], 4
      %s56 = int_to_ptr.vmem [resolvable:$true] %s55
      %61 = dma.hbm_to_vmem [thread:$0]  %s2, 64, %s56, [#allocation7], 32, 32, 2
    $region13: #{sequence2_forward.1} parent=1 // pred_fallthru
      _
    // Predicated region
    $region14: #{sequence2_forward.1} parent=1 // pred_check
      _
    $region15: #{sequence2_forward.1} parent=1 // pred_check_branch
      %63 = sbr.rel (0) target = $region17
    $region16: #{sequence2_forward.1} parent=1 // pred_region
      %s65 = ssub.s32 32, 32
      %66 = vsyncadd [#allocation7], %s65
      %s68 = sshll.u32 [#allocation8], 4
      %s69 = int_to_ptr.vmem [resolvable:$true] %s68
      %71 = dma.hbm_to_vmem [thread:$0]  %s3, 32, %s69, [#allocation7]
    $region17: #{sequence2_forward.1} parent=1 // pred_fallthru
      _
    // Predicated region
    $region18: #{sequence2_forward.1} parent=1 // pred_check
      _
    $region19: #{sequence2_forward.1} parent=1 // pred_check_branch
      %73 = sbr.rel (0) target = $region21
    $region20: #{sequence2_forward.1} parent=1 // pred_region
      _
    $region21: #{sequence2_forward.1} parent=1 // pred_fallthru
      _
    // Predicated region
    $region22: #{sequence2_forward.1} parent=1 // pred_check
      _
    $region23: #{sequence2_forward.1} parent=1 // pred_check_branch
      %75 = sbr.rel (0) target = $region25
    $region24: #{sequence2_forward.1} parent=1 // pred_region
      _
    $region25: #{sequence2_forward.1} parent=1 // pred_fallthru
      _
    // Predicated region
    $region26: #{sequence2_forward.1} parent=1 // pred_check
      _
    $region27: #{sequence2_forward.1} parent=1 // pred_check_branch
      %77 = sbr.rel (0) target = $region29
    $region28: #{sequence2_forward.1} parent=1 // pred_region
      _
    $region29: #{sequence2_forward.1} parent=1 // pred_fallthru
      _
    // Predicated region
    $region30: #{sequence2_forward.1} parent=1 // pred_check
      _
    $region31: #{sequence2_forward.1} parent=1 // pred_check_branch
      %79 = sbr.rel (0) target = $region33
    $region32: #{sequence2_forward.1} parent=1 // pred_region
      _
    $region33: #{sequence2_forward.1} parent=1 // pred_fallthru
      _
    // Predicated region
    $region34: #{sequence2_forward.1} parent=1 // pred_check
      _
    $region35: #{sequence2_forward.1} parent=1 // pred_check_branch
      %81 = sbr.rel (0) target = $region37
    $region36: #{sequence2_forward.1} parent=1 // pred_region
      %s83 = ssub.s32 32, 32
      %84 = vsyncadd [#allocation10], %s83
      %s86 = sshll.u32 [#allocation9], 4
      %s87 = int_to_ptr.vmem [resolvable:$true] %s86
      %89 = dma.hbm_to_vmem [thread:$0]  %s8, 32, %s87, [#allocation10]
    $region37: #{sequence2_forward.1} parent=1 // pred_fallthru
      _
    // Predicated region
    $region38: #{sequence2_forward.1} parent=1 // pred_check
      _
    $region39: #{sequence2_forward.1} parent=1 // pred_check_branch
      %91 = sbr.rel (0) target = $region41
    $region40: #{sequence2_forward.1} parent=1 // pred_region
      _
    $region41: #{sequence2_forward.1} parent=1 // pred_fallthru
      _
    // Predicated region
    $region42: #{sequence2_forward.1} parent=1 // pred_check
      _
    $region43: #{sequence2_forward.1} parent=1 // pred_check_branch
      %93 = sbr.rel (0) target = $region45
    $region44: #{sequence2_forward.1} parent=1 // pred_region
      _
    $region45: #{sequence2_forward.1} parent=1 // pred_fallthru
      _
    // Predicated region
    $region46: #{sequence2_forward.1} parent=1 // pred_check
      _
    $region47: #{sequence2_forward.1} parent=1 // pred_check_branch
      %95 = sbr.rel (0) target = $region49
    $region48: #{sequence2_forward.1} parent=1 // pred_region
      _
    $region49: #{sequence2_forward.1} parent=1 // pred_fallthru
      _
    // Predicated region
    $region50: #{sequence2_forward.1} parent=1 // pred_check
      _
    $region51: #{sequence2_forward.1} parent=1 // pred_check_branch
      %97 = sbr.rel (0) target = $region53
    $region52: #{sequence2_forward.1} parent=1 // pred_region
      %s99 = ssub.s32 32, 32
      %100 = vsyncadd [#allocation10], %s99
      %s102 = sshll.u32 [#allocation11], 4
      %s103 = int_to_ptr.vmem [resolvable:$true] %s102
      %105 = dma.hbm_to_vmem [thread:$0]  %s12, 32, %s103, [#allocation10]
    $region53: #{sequence2_forward.1} parent=1 // pred_fallthru
      _
    // Predicated region
    $region54: #{sequence2_forward.1} parent=1 // pred_check
      _
    $region55: #{sequence2_forward.1} parent=1 // pred_check_branch
      %107 = sbr.rel (0) target = $region57
    $region56: #{sequence2_forward.1} parent=1 // pred_region
      _
    $region57: #{sequence2_forward.1} parent=1 // pred_fallthru
      _
    // Predicated region
    $region58: #{sequence2_forward.1} parent=1 // pred_check
      _
    $region59: #{sequence2_forward.1} parent=1 // pred_check_branch
      %109 = sbr.rel (0) target = $region61
    $region60: #{sequence2_forward.1} parent=1 // pred_region
      %s111 = ssub.s32 256, 256
      %112 = vsyncadd [#allocation13], %s111
      %s113 = sshll.u32 [#allocation12], 4
      %s114 = int_to_ptr.vmem [resolvable:$true] %s113
      %119 = dma.hbm_to_vmem [thread:$0]  %s14, 256, %s114, [#allocation13], 64, 64, 4
    $region61: #{sequence2_forward.1} parent=1 // pred_fallthru
      _
    // Predicated region
    $region62: #{sequence2_forward.1} parent=1 // pred_check
      _
    $region63: #{sequence2_forward.1} parent=1 // pred_check_branch
      %121 = sbr.rel (0) target = $region65
    $region64: #{sequence2_forward.1} parent=1 // pred_region
      %s123 = ssub.s32 256, 256
      %124 = vsyncadd [#allocation13], %s123
      %s125 = sshll.u32 [#allocation14], 4
      %s126 = int_to_ptr.vmem [resolvable:$true] %s125
      %131 = dma.hbm_to_vmem [thread:$0]  %s15, 256, %s126, [#allocation13], 64, 64, 4
    $region65: #{sequence2_forward.1} parent=1 // pred_fallthru
      _
    // Predicated region
    $region66: #{sequence2_forward.1} parent=1 // pred_check
      _
    $region67: #{sequence2_forward.1} parent=1 // pred_check_branch
      %133 = sbr.rel (0) target = $region69
    $region68: #{sequence2_forward.1} parent=1 // pred_region
      _
    $region69: #{sequence2_forward.1} parent=1 // pred_fallthru
      _
    // Predicated region
    $region70: #{sequence2_forward.1} parent=1 // pred_check
      _
    $region71: #{sequence2_forward.1} parent=1 // pred_check_branch
      %135 = sbr.rel (0) target = $region73
    $region72: #{sequence2_forward.1} parent=1 // pred_region
      _
    $region73: #{sequence2_forward.1} parent=1 // pred_fallthru
      _
    // Predicated region
    $region74: #{sequence2_forward.1} parent=1 // pred_check
      _
    $region75: #{sequence2_forward.1} parent=1 // pred_check_branch
      %137 = sbr.rel (0) target = $region77
    $region76: #{sequence2_forward.1} parent=1 // pred_region
      _
    $region77: #{sequence2_forward.1} parent=1 // pred_fallthru
      _
    // Predicated region
    $region78: #{sequence2_forward.1} parent=1 // pred_check
      _
    $region79: #{sequence2_forward.1} parent=1 // pred_check_branch
      %139 = sbr.rel (0) target = $region81
    $region80: #{sequence2_forward.1} parent=1 // pred_region
      %140 = dma.done [#allocation4], 64
    $region81: #{sequence2_forward.1} parent=1 // pred_fallthru
      _
    // Predicated region
    $region82: #{sequence2_forward.1} parent=1 // pred_check
      _
    $region83: #{sequence2_forward.1} parent=1 // pred_check_branch
      %142 = sbr.rel (0) target = $region85
    $region84: #{sequence2_forward.1} parent=1 // pred_region
      %143 = dma.done [#allocation7], 64
    $region85: #{sequence2_forward.1} parent=1 // pred_fallthru
      _
    // Predicated region
    $region86: #{sequence2_forward.1} parent=1 // pred_check
      _
    $region87: #{sequence2_forward.1} parent=1 // pred_check_branch
      %145 = sbr.rel (0) target = $region89
    $region88: #{sequence2_forward.1} parent=1 // pred_region
      %146 = dma.done [#allocation7], 32
    $region89: #{sequence2_forward.1} parent=1 // pred_fallthru
      _
    // Predicated region
    $region90: #{sequence2_forward.1} parent=1 // pred_check
      _
    $region91: #{sequence2_forward.1} parent=1 // pred_check_branch
      %148 = sbr.rel (0) target = $region93
    $region92: #{sequence2_forward.1} parent=1 // pred_region
      %149 = dma.done [#allocation10], 32
    $region93: #{sequence2_forward.1} parent=1 // pred_fallthru
      _
    // Predicated region
    $region94: #{sequence2_forward.1} parent=1 // pred_check
      _
    $region95: #{sequence2_forward.1} parent=1 // pred_check_branch
      %151 = sbr.rel (0) target = $region97
    $region96: #{sequence2_forward.1} parent=1 // pred_region
      %152 = dma.done [#allocation10], 32
    $region97: #{sequence2_forward.1} parent=1 // pred_fallthru
      _
    // Predicated region
    $region98: #{sequence2_forward.1} parent=1 // pred_check
      _
    $region99: #{sequence2_forward.1} parent=1 // pred_check_branch
      %154 = sbr.rel (0) target = $region101
    $region100: #{sequence2_forward.1} parent=1 // pred_region
      %155 = dma.done [#allocation13], 256
    $region101: #{sequence2_forward.1} parent=1 // pred_fallthru
      _
    // Predicated region
    $region102: #{sequence2_forward.1} parent=1 // pred_check
      _
    $region103: #{sequence2_forward.1} parent=1 // pred_check_branch
      %157 = sbr.rel (0) target = $region105
    $region104: #{sequence2_forward.1} parent=1 // pred_region
      %158 = dma.done [#allocation13], 256
    $region105: #{sequence2_forward.1} parent=1 // pred_fallthru
      _
    %v160 = vld [vmem:[%s0] sm:$0xff]
    %v161 = vld [vmem:[%s0 + $0x8] sm:$0xff]
    %v162 = vld [vmem:[#allocation8] sm:$0x3]
    %v163 = vpack.c.bf16 %v161, %v160
    %v164 = vld [vmem:[%s4] sm:$0xff]
    %v165 = vld [vmem:[%s4 + $0x8] sm:$0xff]
    %vm166 = vcmask 31744
    %v168 = vsel %vm166, %v163, 0
    %vm170 = vcmask 1041408
    %v172 = vsel %vm170, %v162, 0
    %174 = vmatprep.subr.bf16.mxu0 0
    %175 = vmatpush1.bf16.msra.mxu0 %v172
    %176 = vmatprep.subr.bf16.mxu0 0
    %177 = vmatpush1.bf16.msra.mxu0 0
    %178 = vmatprep.subr.bf16.mxu0 0
    %179 = vmatpush1.bf16.msra.mxu0 0
    %180 = vmatprep.subr.bf16.mxu0 0
    %181 = vmatpush1.bf16.msra.mxu0 0
    %182 = vmatprep.subr.bf16.mxu0 0
    %183 = vmatpush1.bf16.msra.mxu0 0
    %184 = vmatprep.subr.bf16.mxu0 0
    %185 = vmatpush1.bf16.msra.mxu0 0
    %186 = vmatprep.subr.bf16.mxu0 0
    %187 = vmatpush1.bf16.msra.mxu0 0
    %188 = vmatprep.subr.bf16.mxu0 0
    %189 = vmatpush1.bf16.msra.mxu0 0
    %190 = vmatprep.subr.bf16.mxu0 0
    %191 = vmatpush1.bf16.msra.mxu0 0
    %192 = vmatprep.subr.bf16.mxu0 0
    %193 = vmatpush1.bf16.msra.mxu0 0
    %194 = vmatprep.subr.bf16.mxu0 0
    %195 = vmatpush1.bf16.msra.mxu0 0
    %196 = vmatprep.subr.bf16.mxu0 0
    %197 = vmatpush1.bf16.msra.mxu0 0
    %198 = vmatprep.subr.bf16.mxu0 0
    %199 = vmatpush1.bf16.msra.mxu0 0
    %200 = vmatprep.subr.bf16.mxu0 0
    %201 = vmatpush1.bf16.msra.mxu0 0
    %202 = vmatprep.subr.bf16.mxu0 0
    %203 = vmatpush1.bf16.msra.mxu0 0
    %204 = vmatprep.subr.bf16.mxu0 0
    %205 = vmatpush1.bf16.msra.mxu0 0
    %206 = vmatprep.mubr.bf16.mxu0 0
    %207 = vmatmul.mubr.bf16.gmra.mrb[0].mxu0 %v168
    %v208 = vpop.f32.mrb[0].mxu0
    %v209 = vadd.f32 %v164, %v208
    %v210 = vpop.f32.mrb[0].mxu0
    %v211 = vpop.f32.mrb[0].mxu0
    %v212 = vadd.f32 %v165, %v211
    %v213 = vpop.f32.mrb[0].mxu0
    %214 = vdwg.mxu0
    %215 = vst [vmem:[#allocation2] sm:$0xff] %v209
    %216 = vst [vmem:[#allocation2 + $0x8] sm:$0xff] %v212
    %v217 = vld [vmem:[#allocation3] sm:$0x3]
    %s218 = scalar_lea.vmem [#allocation3], 2
    %v219 = vld [vmem:[%s218] sm:$0x3]
    %v220 = vld [vmem:[#allocation6] sm:$0x3]
    %s221 = scalar_lea.vmem [#allocation6], 2
    %v222 = vld [vmem:[%s221] sm:$0x3]
    %v223 = vld [vmem:[#allocation2] sm:$0x3]
    %v224 = vld [vmem:[%s5] sm:$0xf]
    %v225 = vld [vmem:[%s5 + $0x4] sm:$0xf]
    %v226 = vld [vmem:[%s5 + $0x8] sm:$0xf]
    %v227 = vld [vmem:[%s5 + $0xc] sm:$0xf]
    %v228 = vpack.c.bf16 %v217, %v217
    %v233 = vunpack.c.l.b16 %v224
    %v234 = vunpack.c.l.b16 %v225
    %v235 = vunpack.c.l.b16 %v226
    %v236 = vunpack.c.l.b16 %v227
    %v237 = vpack.c.b16 %v234, %v233
    %v238 = vpack.c.b16 %v236, %v235
    %vm241 = vcmask 261120
    %v243 = vsel %vm241, %v228, 0
    %245 = vmatprep.subr.bf16.mxu0 0
    %246 = vmatpush1.bf16.msra.mxu0 %v237
    %247 = vmatprep.subr.bf16.mxu0 0
    %248 = vmatpush1.bf16.msra.mxu0 %v238
    %249 = vmatprep.subr.bf16.mxu0 0
    %250 = vmatpush1.bf16.msra.mxu0 0
    %251 = vmatprep.subr.bf16.mxu0 0
    %252 = vmatpush1.bf16.msra.mxu0 0
    %253 = vmatprep.subr.bf16.mxu0 0
    %254 = vmatpush1.bf16.msra.mxu0 0
    %255 = vmatprep.subr.bf16.mxu0 0
    %256 = vmatpush1.bf16.msra.mxu0 0
    %257 = vmatprep.subr.bf16.mxu0 0
    %258 = vmatpush1.bf16.msra.mxu0 0
    %259 = vmatprep.subr.bf16.mxu0 0
    %260 = vmatpush1.bf16.msra.mxu0 0
    %261 = vmatprep.subr.bf16.mxu0 0
    %262 = vmatpush1.bf16.msra.mxu0 0
    %263 = vmatprep.subr.bf16.mxu0 0
    %264 = vmatpush1.bf16.msra.mxu0 0
    %265 = vmatprep.subr.bf16.mxu0 0
    %266 = vmatpush1.bf16.msra.mxu0 0
    %267 = vmatprep.subr.bf16.mxu0 0
    %268 = vmatpush1.bf16.msra.mxu0 0
    %269 = vmatprep.subr.bf16.mxu0 0
    %270 = vmatpush1.bf16.msra.mxu0 0
    %271 = vmatprep.subr.bf16.mxu0 0
    %272 = vmatpush1.bf16.msra.mxu0 0
    %273 = vmatprep.subr.bf16.mxu0 0
    %274 = vmatpush1.bf16.msra.mxu0 0
    %275 = vmatprep.subr.bf16.mxu0 0
    %276 = vmatpush1.bf16.msra.mxu0 0
    %277 = vmatprep.mubr.bf16.mxu0 0
    %278 = vmatmul.mubr.bf16.gmra.mrb[0].mxu0 %v243
    %v279 = vpop.f32.mrb[0].mxu0
    %v280 = vadd.f32 0.0, %v279
    %v281 = vpop.f32.mrb[0].mxu0
    %v282 = vpop.f32.mrb[0].mxu0
    %v283 = vpop.f32.mrb[0].mxu0
    %284 = vdwg.mxu0
    %v285 = vadd.f32 %v223, %v280
    %v286 = vxor.u32 %v285, 2147483648
    %v287 = vmul.f32 %v286, 1.442695
    %v288 = vpow.pop %v287
    %v289 = vadd.f32 %v288, 1.0
    %v290 = vrcp.pop %v289
    %v291 = vmul.f32 1.0, %v290
    %v292 = vtanh.pop %v285
    %294 = vrot.lane.b32.xlu0 %v220, 32
    %v295 = vpop.permute.xlu0 %294
    %v297 = vmul.f32 %v291, %v295
    %299 = vrot.lane.b32.xlu0 %v292, 64
    %v300 = vpop.permute.xlu0 %299
    %v302 = vmul.f32 %v291, %v300
    %304 = vrot.lane.b32.xlu0 %v302, 32
    %v305 = vpop.permute.xlu0 %304
    %v307 = vadd.f32 %v297, %v305
    %v308 = vtanh.pop %v307
    %310 = vrot.lane.b32.xlu0 %v308, 64
    %v311 = vpop.permute.xlu0 %310
    %v313 = vmul.f32 %v291, %v311
    %v314 = vld [vmem:[%s6] sm:$0xf]
    %v315 = vld [vmem:[%s6 + $0x4] sm:$0xf]
    %v316 = vld [vmem:[%s6 + $0x8] sm:$0xf]
    %v317 = vld [vmem:[%s6 + $0xc] sm:$0xf]
    %v318 = vpack.c.bf16 %v313, %v313
    %v319 = vld [vmem:[%s7] sm:$0xf]
    %v320 = vld [vmem:[%s7 + $0x4] sm:$0xf]
    %v321 = vld [vmem:[%s7 + $0x8] sm:$0xf]
    %v322 = vld [vmem:[%s7 + $0xc] sm:$0xf]
    %v323 = vpack.c.bf16 %v219, %v219
    %v328 = vunpack.c.l.b16 %v319
    %v329 = vunpack.c.l.b16 %v320
    %v330 = vunpack.c.l.b16 %v321
    %v331 = vunpack.c.l.b16 %v322
    %v332 = vpack.c.b16 %v329, %v328
    %v333 = vpack.c.b16 %v331, %v330
    %v337 = vsel %vm241, %v323, 0
    %339 = vmatprep.subr.bf16.mxu0 0
    %340 = vmatpush1.bf16.msra.mxu0 %v332
    %341 = vmatprep.subr.bf16.mxu0 0
    %342 = vmatpush1.bf16.msra.mxu0 %v333
    %343 = vmatprep.subr.bf16.mxu0 0
    %344 = vmatpush1.bf16.msra.mxu0 0
    %345 = vmatprep.subr.bf16.mxu0 0
    %346 = vmatpush1.bf16.msra.mxu0 0
    %347 = vmatprep.subr.bf16.mxu0 0
    %348 = vmatpush1.bf16.msra.mxu0 0
    %349 = vmatprep.subr.bf16.mxu0 0
    %350 = vmatpush1.bf16.msra.mxu0 0
    %351 = vmatprep.subr.bf16.mxu0 0
    %352 = vmatpush1.bf16.msra.mxu0 0
    %353 = vmatprep.subr.bf16.mxu0 0
    %354 = vmatpush1.bf16.msra.mxu0 0
    %355 = vmatprep.subr.bf16.mxu0 0
    %356 = vmatpush1.bf16.msra.mxu0 0
    %357 = vmatprep.subr.bf16.mxu0 0
    %358 = vmatpush1.bf16.msra.mxu0 0
    %359 = vmatprep.subr.bf16.mxu0 0
    %360 = vmatpush1.bf16.msra.mxu0 0
    %361 = vmatprep.subr.bf16.mxu0 0
    %362 = vmatpush1.bf16.msra.mxu0 0
    %363 = vmatprep.subr.bf16.mxu0 0
    %364 = vmatpush1.bf16.msra.mxu0 0
    %365 = vmatprep.subr.bf16.mxu0 0
    %366 = vmatpush1.bf16.msra.mxu0 0
    %367 = vmatprep.subr.bf16.mxu0 0
    %368 = vmatpush1.bf16.msra.mxu0 0
    %369 = vmatprep.subr.bf16.mxu0 0
    %370 = vmatpush1.bf16.msra.mxu0 0
    %371 = vmatprep.mubr.bf16.mxu0 0
    %372 = vmatmul.mubr.bf16.gmra.mrb[0].mxu0 %v337
    %v373 = vpop.f32.mrb[0].mxu0
    %v374 = vadd.f32 0.0, %v373
    %v375 = vpop.f32.mrb[0].mxu0
    %v376 = vpop.f32.mrb[0].mxu0
    %v377 = vpop.f32.mrb[0].mxu0
    %378 = vdwg.mxu0
    %380 = vrot.lane.b32.xlu0 %v318, 32
    %v381 = vpop.permute.xlu0 %380
    %v386 = vunpack.c.l.b16 %v314
    %v387 = vunpack.c.l.b16 %v315
    %v388 = vunpack.c.l.b16 %v316
    %v389 = vunpack.c.l.b16 %v317
    %v390 = vpack.c.b16 %v387, %v386
    %v391 = vpack.c.b16 %v389, %v388
    %v395 = vsel %vm241, %v381, 0
    %397 = vmatprep.subr.bf16.mxu0 0
    %398 = vmatpush1.bf16.msra.mxu0 %v390
    %399 = vmatprep.subr.bf16.mxu0 0
    %400 = vmatpush1.bf16.msra.mxu0 %v391
    %401 = vmatprep.subr.bf16.mxu0 0
    %402 = vmatpush1.bf16.msra.mxu0 0
    %403 = vmatprep.subr.bf16.mxu0 0
    %404 = vmatpush1.bf16.msra.mxu0 0
    %405 = vmatprep.subr.bf16.mxu0 0
    %406 = vmatpush1.bf16.msra.mxu0 0
    %407 = vmatprep.subr.bf16.mxu0 0
    %408 = vmatpush1.bf16.msra.mxu0 0
    %409 = vmatprep.subr.bf16.mxu0 0
    %410 = vmatpush1.bf16.msra.mxu0 0
    %411 = vmatprep.subr.bf16.mxu0 0
    %412 = vmatpush1.bf16.msra.mxu0 0
    %413 = vmatprep.subr.bf16.mxu0 0
    %414 = vmatpush1.bf16.msra.mxu0 0
    %415 = vmatprep.subr.bf16.mxu0 0
    %416 = vmatpush1.bf16.msra.mxu0 0
    %417 = vmatprep.subr.bf16.mxu0 0
    %418 = vmatpush1.bf16.msra.mxu0 0
    %419 = vmatprep.subr.bf16.mxu0 0
    %420 = vmatpush1.bf16.msra.mxu0 0
    %421 = vmatprep.subr.bf16.mxu0 0
    %422 = vmatpush1.bf16.msra.mxu0 0
    %423 = vmatprep.subr.bf16.mxu0 0
    %424 = vmatpush1.bf16.msra.mxu0 0
    %425 = vmatprep.subr.bf16.mxu0 0
    %426 = vmatpush1.bf16.msra.mxu0 0
    %427 = vmatprep.subr.bf16.mxu0 0
    %428 = vmatpush1.bf16.msra.mxu0 0
    %429 = vmatprep.mubr.bf16.mxu0 0
    %430 = vmatmul.mubr.bf16.gmra.mrb[0].mxu0 %v395
    %v431 = vpop.f32.mrb[0].mxu0
    %v432 = vadd.f32 %v374, %v431
    %v433 = vpop.f32.mrb[0].mxu0
    %v434 = vpop.f32.mrb[0].mxu0
    %v435 = vpop.f32.mrb[0].mxu0
    %436 = vdwg.mxu0
    %v437 = vld [vmem:[#allocation9] sm:$0x3]
    %v438 = vadd.f32 %v432, %v437
    %v439 = vxor.u32 %v438, 2147483648
    %v440 = vmul.f32 %v439, 1.442695
    %v441 = vpow.pop %v440
    %v442 = vadd.f32 %v441, 1.0
    %v443 = vrcp.pop %v442
    %v444 = vmul.f32 1.0, %v443
    %v445 = vtanh.pop %v438
    %447 = vrot.lane.b32.xlu0 %v222, 32
    %v448 = vpop.permute.xlu0 %447
    %v450 = vmul.f32 %v444, %v448
    %452 = vrot.lane.b32.xlu0 %v445, 64
    %v453 = vpop.permute.xlu0 %452
    %v455 = vmul.f32 %v444, %v453
    %457 = vrot.lane.b32.xlu0 %v455, 32
    %v458 = vpop.permute.xlu0 %457
    %v460 = vadd.f32 %v450, %v458
    %v461 = vtanh.pop %v460
    %463 = vrot.lane.b32.xlu0 %v461, 64
    %v464 = vpop.permute.xlu0 %463
    %v466 = vmul.f32 %v444, %v464
    %v467 = vld [vmem:[#allocation2 + $0x2] sm:$0x3]
    %468 = vmatprep.subr.bf16.mxu0 0
    %469 = vmatpush1.bf16.msra.mxu0 %v237
    %470 = vmatprep.subr.bf16.mxu0 0
    %471 = vmatpush1.bf16.msra.mxu0 %v238
    %472 = vmatprep.subr.bf16.mxu0 0
    %473 = vmatpush1.bf16.msra.mxu0 0
    %474 = vmatprep.subr.bf16.mxu0 0
    %475 = vmatpush1.bf16.msra.mxu0 0
    %476 = vmatprep.subr.bf16.mxu0 0
    %477 = vmatpush1.bf16.msra.mxu0 0
    %478 = vmatprep.subr.bf16.mxu0 0
    %479 = vmatpush1.bf16.msra.mxu0 0
    %480 = vmatprep.subr.bf16.mxu0 0
    %481 = vmatpush1.bf16.msra.mxu0 0
    %482 = vmatprep.subr.bf16.mxu0 0
    %483 = vmatpush1.bf16.msra.mxu0 0
    %484 = vmatprep.subr.bf16.mxu0 0
    %485 = vmatpush1.bf16.msra.mxu0 0
    %486 = vmatprep.subr.bf16.mxu0 0
    %487 = vmatpush1.bf16.msra.mxu0 0
    %488 = vmatprep.subr.bf16.mxu0 0
    %489 = vmatpush1.bf16.msra.mxu0 0
    %490 = vmatprep.subr.bf16.mxu0 0
    %491 = vmatpush1.bf16.msra.mxu0 0
    %492 = vmatprep.subr.bf16.mxu0 0
    %493 = vmatpush1.bf16.msra.mxu0 0
    %494 = vmatprep.subr.bf16.mxu0 0
    %495 = vmatpush1.bf16.msra.mxu0 0
    %496 = vmatprep.subr.bf16.mxu0 0
    %497 = vmatpush1.bf16.msra.mxu0 0
    %498 = vmatprep.subr.bf16.mxu0 0
    %499 = vmatpush1.bf16.msra.mxu0 0
    %500 = vmatprep.mubr.bf16.mxu0 0
    %501 = vmatmul.mubr.bf16.gmra.mrb[0].mxu0 %v395
    %v502 = vpop.f32.mrb[0].mxu0
    %v503 = vadd.f32 0.0, %v502
    %v504 = vpop.f32.mrb[0].mxu0
    %v505 = vpop.f32.mrb[0].mxu0
    %v506 = vpop.f32.mrb[0].mxu0
    %507 = vdwg.mxu0
    %v508 = vadd.f32 %v467, %v503
    %v509 = vxor.u32 %v508, 2147483648
    %v510 = vmul.f32 %v509, 1.442695
    %v511 = vpow.pop %v510
    %v512 = vadd.f32 %v511, 1.0
    %v513 = vrcp.pop %v512
    %v514 = vmul.f32 1.0, %v513
    %v515 = vtanh.pop %v508
    %v516 = vmul.f32 %v514, %v307
    %518 = vrot.lane.b32.xlu0 %v515, 64
    %v519 = vpop.permute.xlu0 %518
    %v521 = vmul.f32 %v514, %v519
    %523 = vrot.lane.b32.xlu0 %v521, 32
    %v524 = vpop.permute.xlu0 %523
    %v526 = vadd.f32 %v516, %v524
    %v527 = vtanh.pop %v526
    %529 = vrot.lane.b32.xlu0 %v527, 64
    %v530 = vpop.permute.xlu0 %529
    %v532 = vmul.f32 %v514, %v530
    %v533 = vpack.c.bf16 %v532, %v532
    %v534 = vpack.c.bf16 %v466, %v466
    %536 = vrot.lane.b32.xlu0 %v534, 32
    %v537 = vpop.permute.xlu0 %536
    %v539 = vsel %vm241, %v537, 0
    %541 = vmatprep.subr.bf16.mxu0 0
    %542 = vmatpush1.bf16.msra.mxu0 %v332
    %543 = vmatprep.subr.bf16.mxu0 0
    %544 = vmatpush1.bf16.msra.mxu0 %v333
    %545 = vmatprep.subr.bf16.mxu0 0
    %546 = vmatpush1.bf16.msra.mxu0 0
    %547 = vmatprep.subr.bf16.mxu0 0
    %548 = vmatpush1.bf16.msra.mxu0 0
    %549 = vmatprep.subr.bf16.mxu0 0
    %550 = vmatpush1.bf16.msra.mxu0 0
    %551 = vmatprep.subr.bf16.mxu0 0
    %552 = vmatpush1.bf16.msra.mxu0 0
    %553 = vmatprep.subr.bf16.mxu0 0
    %554 = vmatpush1.bf16.msra.mxu0 0
    %555 = vmatprep.subr.bf16.mxu0 0
    %556 = vmatpush1.bf16.msra.mxu0 0
    %557 = vmatprep.subr.bf16.mxu0 0
    %558 = vmatpush1.bf16.msra.mxu0 0
    %559 = vmatprep.subr.bf16.mxu0 0
    %560 = vmatpush1.bf16.msra.mxu0 0
    %561 = vmatprep.subr.bf16.mxu0 0
    %562 = vmatpush1.bf16.msra.mxu0 0
    %563 = vmatprep.subr.bf16.mxu0 0
    %564 = vmatpush1.bf16.msra.mxu0 0
    %565 = vmatprep.subr.bf16.mxu0 0
    %566 = vmatpush1.bf16.msra.mxu0 0
    %567 = vmatprep.subr.bf16.mxu0 0
    %568 = vmatpush1.bf16.msra.mxu0 0
    %569 = vmatprep.subr.bf16.mxu0 0
    %570 = vmatpush1.bf16.msra.mxu0 0
    %571 = vmatprep.subr.bf16.mxu0 0
    %572 = vmatpush1.bf16.msra.mxu0 0
    %573 = vmatprep.mubr.bf16.mxu0 0
    %574 = vmatmul.mubr.bf16.gmra.mrb[0].mxu0 %v539
    %v575 = vpop.f32.mrb[0].mxu0
    %v576 = vadd.f32 0.0, %v575
    %v577 = vpop.f32.mrb[0].mxu0
    %v578 = vpop.f32.mrb[0].mxu0
    %v579 = vpop.f32.mrb[0].mxu0
    %580 = vdwg.mxu0
    %582 = vrot.lane.b32.xlu0 %v533, 32
    %v583 = vpop.permute.xlu0 %582
    %v585 = vsel %vm241, %v583, 0
    %587 = vmatprep.subr.bf16.mxu0 0
    %588 = vmatpush1.bf16.msra.mxu0 %v390
    %589 = vmatprep.subr.bf16.mxu0 0
    %590 = vmatpush1.bf16.msra.mxu0 %v391
    %591 = vmatprep.subr.bf16.mxu0 0
    %592 = vmatpush1.bf16.msra.mxu0 0
    %593 = vmatprep.subr.bf16.mxu0 0
    %594 = vmatpush1.bf16.msra.mxu0 0
    %595 = vmatprep.subr.bf16.mxu0 0
    %596 = vmatpush1.bf16.msra.mxu0 0
    %597 = vmatprep.subr.bf16.mxu0 0
    %598 = vmatpush1.bf16.msra.mxu0 0
    %599 = vmatprep.subr.bf16.mxu0 0
    %600 = vmatpush1.bf16.msra.mxu0 0
    %601 = vmatprep.subr.bf16.mxu0 0
    %602 = vmatpush1.bf16.msra.mxu0 0
    %603 = vmatprep.subr.bf16.mxu0 0
    %604 = vmatpush1.bf16.msra.mxu0 0
    %605 = vmatprep.subr.bf16.mxu0 0
    %606 = vmatpush1.bf16.msra.mxu0 0
    %607 = vmatprep.subr.bf16.mxu0 0
    %608 = vmatpush1.bf16.msra.mxu0 0
    %609 = vmatprep.subr.bf16.mxu0 0
    %610 = vmatpush1.bf16.msra.mxu0 0
    %611 = vmatprep.subr.bf16.mxu0 0
    %612 = vmatpush1.bf16.msra.mxu0 0
    %613 = vmatprep.subr.bf16.mxu0 0
    %614 = vmatpush1.bf16.msra.mxu0 0
    %615 = vmatprep.subr.bf16.mxu0 0
    %616 = vmatpush1.bf16.msra.mxu0 0
    %617 = vmatprep.subr.bf16.mxu0 0
    %618 = vmatpush1.bf16.msra.mxu0 0
    %619 = vmatprep.mubr.bf16.mxu0 0
    %620 = vmatmul.mubr.bf16.gmra.mrb[0].mxu0 %v585
    %v621 = vpop.f32.mrb[0].mxu0
    %v622 = vadd.f32 %v576, %v621
    %v623 = vpop.f32.mrb[0].mxu0
    %v624 = vpop.f32.mrb[0].mxu0
    %v625 = vpop.f32.mrb[0].mxu0
    %626 = vdwg.mxu0
    %v627 = vadd.f32 %v622, %v437
    %v628 = vxor.u32 %v627, 2147483648
    %v629 = vmul.f32 %v628, 1.442695
    %v630 = vpow.pop %v629
    %v631 = vadd.f32 %v630, 1.0
    %v632 = vrcp.pop %v631
    %v633 = vmul.f32 1.0, %v632
    %v634 = vtanh.pop %v627
    %v635 = vmul.f32 %v633, %v460
    %637 = vrot.lane.b32.xlu0 %v634, 64
    %v638 = vpop.permute.xlu0 %637
    %v640 = vmul.f32 %v633, %v638
    %642 = vrot.lane.b32.xlu0 %v640, 32
    %v643 = vpop.permute.xlu0 %642
    %v645 = vadd.f32 %v635, %v643
    %v646 = vtanh.pop %v645
    %648 = vrot.lane.b32.xlu0 %v646, 64
    %v649 = vpop.permute.xlu0 %648
    %v651 = vmul.f32 %v633, %v649
    %v652 = vld [vmem:[#allocation2 + $0x4] sm:$0x3]
    %653 = vmatprep.subr.bf16.mxu0 0
    %654 = vmatpush1.bf16.msra.mxu0 %v237
    %655 = vmatprep.subr.bf16.mxu0 0
    %656 = vmatpush1.bf16.msra.mxu0 %v238
    %657 = vmatprep.subr.bf16.mxu0 0
    %658 = vmatpush1.bf16.msra.mxu0 0
    %659 = vmatprep.subr.bf16.mxu0 0
    %660 = vmatpush1.bf16.msra.mxu0 0
    %661 = vmatprep.subr.bf16.mxu0 0
    %662 = vmatpush1.bf16.msra.mxu0 0
    %663 = vmatprep.subr.bf16.mxu0 0
    %664 = vmatpush1.bf16.msra.mxu0 0
    %665 = vmatprep.subr.bf16.mxu0 0
    %666 = vmatpush1.bf16.msra.mxu0 0
    %667 = vmatprep.subr.bf16.mxu0 0
    %668 = vmatpush1.bf16.msra.mxu0 0
    %669 = vmatprep.subr.bf16.mxu0 0
    %670 = vmatpush1.bf16.msra.mxu0 0
    %671 = vmatprep.subr.bf16.mxu0 0
    %672 = vmatpush1.bf16.msra.mxu0 0
    %673 = vmatprep.subr.bf16.mxu0 0
    %674 = vmatpush1.bf16.msra.mxu0 0
    %675 = vmatprep.subr.bf16.mxu0 0
    %676 = vmatpush1.bf16.msra.mxu0 0
    %677 = vmatprep.subr.bf16.mxu0 0
    %678 = vmatpush1.bf16.msra.mxu0 0
    %679 = vmatprep.subr.bf16.mxu0 0
    %680 = vmatpush1.bf16.msra.mxu0 0
    %681 = vmatprep.subr.bf16.mxu0 0
    %682 = vmatpush1.bf16.msra.mxu0 0
    %683 = vmatprep.subr.bf16.mxu0 0
    %684 = vmatpush1.bf16.msra.mxu0 0
    %685 = vmatprep.mubr.bf16.mxu0 0
    %686 = vmatmul.mubr.bf16.gmra.mrb[0].mxu0 %v585
    %v687 = vpop.f32.mrb[0].mxu0
    %v688 = vadd.f32 0.0, %v687
    %v689 = vpop.f32.mrb[0].mxu0
    %v690 = vpop.f32.mrb[0].mxu0
    %v691 = vpop.f32.mrb[0].mxu0
    %692 = vdwg.mxu0
    %v693 = vadd.f32 %v652, %v688
    %v694 = vxor.u32 %v693, 2147483648
    %v695 = vmul.f32 %v694, 1.442695
    %v696 = vpow.pop %v695
    %v697 = vadd.f32 %v696, 1.0
    %v698 = vrcp.pop %v697
    %v699 = vmul.f32 1.0, %v698
    %v700 = vtanh.pop %v693
    %v701 = vmul.f32 %v699, %v526
    %703 = vrot.lane.b32.xlu0 %v700, 64
    %v704 = vpop.permute.xlu0 %703
    %v706 = vmul.f32 %v699, %v704
    %708 = vrot.lane.b32.xlu0 %v706, 32
    %v709 = vpop.permute.xlu0 %708
    %v711 = vadd.f32 %v701, %v709
    %v712 = vtanh.pop %v711
    %714 = vrot.lane.b32.xlu0 %v712, 64
    %v715 = vpop.permute.xlu0 %714
    %v717 = vmul.f32 %v699, %v715
    %v718 = vpack.c.bf16 %v717, %v717
    %v719 = vpack.c.bf16 %v651, %v651
    %721 = vrot.lane.b32.xlu0 %v719, 32
    %v722 = vpop.permute.xlu0 %721
    %v724 = vsel %vm241, %v722, 0
    %726 = vmatprep.subr.bf16.mxu0 0
    %727 = vmatpush1.bf16.msra.mxu0 %v332
    %728 = vmatprep.subr.bf16.mxu0 0
    %729 = vmatpush1.bf16.msra.mxu0 %v333
    %730 = vmatprep.subr.bf16.mxu0 0
    %731 = vmatpush1.bf16.msra.mxu0 0
    %732 = vmatprep.subr.bf16.mxu0 0
    %733 = vmatpush1.bf16.msra.mxu0 0
    %734 = vmatprep.subr.bf16.mxu0 0
    %735 = vmatpush1.bf16.msra.mxu0 0
    %736 = vmatprep.subr.bf16.mxu0 0
    %737 = vmatpush1.bf16.msra.mxu0 0
    %738 = vmatprep.subr.bf16.mxu0 0
    %739 = vmatpush1.bf16.msra.mxu0 0
    %740 = vmatprep.subr.bf16.mxu0 0
    %741 = vmatpush1.bf16.msra.mxu0 0
    %742 = vmatprep.subr.bf16.mxu0 0
    %743 = vmatpush1.bf16.msra.mxu0 0
    %744 = vmatprep.subr.bf16.mxu0 0
    %745 = vmatpush1.bf16.msra.mxu0 0
    %746 = vmatprep.subr.bf16.mxu0 0
    %747 = vmatpush1.bf16.msra.mxu0 0
    %748 = vmatprep.subr.bf16.mxu0 0
    %749 = vmatpush1.bf16.msra.mxu0 0
    %750 = vmatprep.subr.bf16.mxu0 0
    %751 = vmatpush1.bf16.msra.mxu0 0
    %752 = vmatprep.subr.bf16.mxu0 0
    %753 = vmatpush1.bf16.msra.mxu0 0
    %754 = vmatprep.subr.bf16.mxu0 0
    %755 = vmatpush1.bf16.msra.mxu0 0
    %756 = vmatprep.subr.bf16.mxu0 0
    %757 = vmatpush1.bf16.msra.mxu0 0
    %758 = vmatprep.mubr.bf16.mxu0 0
    %759 = vmatmul.mubr.bf16.gmra.mrb[0].mxu0 %v724
    %v760 = vpop.f32.mrb[0].mxu0
    %v761 = vadd.f32 0.0, %v760
    %v762 = vpop.f32.mrb[0].mxu0
    %v763 = vpop.f32.mrb[0].mxu0
    %v764 = vpop.f32.mrb[0].mxu0
    %765 = vdwg.mxu0
    %767 = vrot.lane.b32.xlu0 %v718, 32
    %v768 = vpop.permute.xlu0 %767
    %v770 = vsel %vm241, %v768, 0
    %772 = vmatprep.subr.bf16.mxu0 0
    %773 = vmatpush1.bf16.msra.mxu0 %v390
    %774 = vmatprep.subr.bf16.mxu0 0
    %775 = vmatpush1.bf16.msra.mxu0 %v391
    %776 = vmatprep.subr.bf16.mxu0 0
    %777 = vmatpush1.bf16.msra.mxu0 0
    %778 = vmatprep.subr.bf16.mxu0 0
    %779 = vmatpush1.bf16.msra.mxu0 0
    %780 = vmatprep.subr.bf16.mxu0 0
    %781 = vmatpush1.bf16.msra.mxu0 0
    %782 = vmatprep.subr.bf16.mxu0 0
    %783 = vmatpush1.bf16.msra.mxu0 0
    %784 = vmatprep.subr.bf16.mxu0 0
    %785 = vmatpush1.bf16.msra.mxu0 0
    %786 = vmatprep.subr.bf16.mxu0 0
    %787 = vmatpush1.bf16.msra.mxu0 0
    %788 = vmatprep.subr.bf16.mxu0 0
    %789 = vmatpush1.bf16.msra.mxu0 0
    %790 = vmatprep.subr.bf16.mxu0 0
    %791 = vmatpush1.bf16.msra.mxu0 0
    %792 = vmatprep.subr.bf16.mxu0 0
    %793 = vmatpush1.bf16.msra.mxu0 0
    %794 = vmatprep.subr.bf16.mxu0 0
    %795 = vmatpush1.bf16.msra.mxu0 0
    %796 = vmatprep.subr.bf16.mxu0 0
    %797 = vmatpush1.bf16.msra.mxu0 0
    %798 = vmatprep.subr.bf16.mxu0 0
    %799 = vmatpush1.bf16.msra.mxu0 0
    %800 = vmatprep.subr.bf16.mxu0 0
    %801 = vmatpush1.bf16.msra.mxu0 0
    %802 = vmatprep.subr.bf16.mxu0 0
    %803 = vmatpush1.bf16.msra.mxu0 0
    %804 = vmatprep.mubr.bf16.mxu0 0
    %805 = vmatmul.mubr.bf16.gmra.mrb[0].mxu0 %v770
    %v806 = vpop.f32.mrb[0].mxu0
    %v807 = vadd.f32 %v761, %v806
    %v808 = vpop.f32.mrb[0].mxu0
    %v809 = vpop.f32.mrb[0].mxu0
    %v810 = vpop.f32.mrb[0].mxu0
    %811 = vdwg.mxu0
    %v812 = vadd.f32 %v807, %v437
    %v813 = vxor.u32 %v812, 2147483648
    %v814 = vmul.f32 %v813, 1.442695
    %v815 = vpow.pop %v814
    %v816 = vadd.f32 %v815, 1.0
    %v817 = vrcp.pop %v816
    %v818 = vmul.f32 1.0, %v817
    %v819 = vtanh.pop %v812
    %v820 = vmul.f32 %v818, %v645
    %822 = vrot.lane.b32.xlu0 %v819, 64
    %v823 = vpop.permute.xlu0 %822
    %v825 = vmul.f32 %v818, %v823
    %827 = vrot.lane.b32.xlu0 %v825, 32
    %v828 = vpop.permute.xlu0 %827
    %v830 = vadd.f32 %v820, %v828
    %v831 = vtanh.pop %v830
    %833 = vrot.lane.b32.xlu0 %v831, 64
    %v834 = vpop.permute.xlu0 %833
    %v836 = vmul.f32 %v818, %v834
    %v837 = vld [vmem:[#allocation2 + $0x6] sm:$0x3]
    %838 = vmatprep.subr.bf16.mxu0 0
    %839 = vmatpush1.bf16.msra.mxu0 %v237
    %840 = vmatprep.subr.bf16.mxu0 0
    %841 = vmatpush1.bf16.msra.mxu0 %v238
    %842 = vmatprep.subr.bf16.mxu0 0
    %843 = vmatpush1.bf16.msra.mxu0 0
    %844 = vmatprep.subr.bf16.mxu0 0
    %845 = vmatpush1.bf16.msra.mxu0 0
    %846 = vmatprep.subr.bf16.mxu0 0
    %847 = vmatpush1.bf16.msra.mxu0 0
    %848 = vmatprep.subr.bf16.mxu0 0
    %849 = vmatpush1.bf16.msra.mxu0 0
    %850 = vmatprep.subr.bf16.mxu0 0
    %851 = vmatpush1.bf16.msra.mxu0 0
    %852 = vmatprep.subr.bf16.mxu0 0
    %853 = vmatpush1.bf16.msra.mxu0 0
    %854 = vmatprep.subr.bf16.mxu0 0
    %855 = vmatpush1.bf16.msra.mxu0 0
    %856 = vmatprep.subr.bf16.mxu0 0
    %857 = vmatpush1.bf16.msra.mxu0 0
    %858 = vmatprep.subr.bf16.mxu0 0
    %859 = vmatpush1.bf16.msra.mxu0 0
    %860 = vmatprep.subr.bf16.mxu0 0
    %861 = vmatpush1.bf16.msra.mxu0 0
    %862 = vmatprep.subr.bf16.mxu0 0
    %863 = vmatpush1.bf16.msra.mxu0 0
    %864 = vmatprep.subr.bf16.mxu0 0
    %865 = vmatpush1.bf16.msra.mxu0 0
    %866 = vmatprep.subr.bf16.mxu0 0
    %867 = vmatpush1.bf16.msra.mxu0 0
    %868 = vmatprep.subr.bf16.mxu0 0
    %869 = vmatpush1.bf16.msra.mxu0 0
    %870 = vmatprep.mubr.bf16.mxu0 0
    %871 = vmatmul.mubr.bf16.gmra.mrb[0].mxu0 %v770
    %v872 = vpop.f32.mrb[0].mxu0
    %v873 = vadd.f32 0.0, %v872
    %v874 = vpop.f32.mrb[0].mxu0
    %v875 = vpop.f32.mrb[0].mxu0
    %v876 = vpop.f32.mrb[0].mxu0
    %877 = vdwg.mxu0
    %v878 = vadd.f32 %v837, %v873
    %v879 = vxor.u32 %v878, 2147483648
    %v880 = vmul.f32 %v879, 1.442695
    %v881 = vpow.pop %v880
    %v882 = vadd.f32 %v881, 1.0
    %v883 = vrcp.pop %v882
    %v884 = vmul.f32 1.0, %v883
    %v885 = vtanh.pop %v878
    %v886 = vmul.f32 %v884, %v711
    %888 = vrot.lane.b32.xlu0 %v885, 64
    %v889 = vpop.permute.xlu0 %888
    %v891 = vmul.f32 %v884, %v889
    %893 = vrot.lane.b32.xlu0 %v891, 32
    %v894 = vpop.permute.xlu0 %893
    %v896 = vadd.f32 %v886, %v894
    %v897 = vtanh.pop %v896
    %899 = vrot.lane.b32.xlu0 %v897, 64
    %v900 = vpop.permute.xlu0 %899
    %v902 = vmul.f32 %v884, %v900
    %v903 = vpack.c.bf16 %v902, %v902
    %v904 = vpack.c.bf16 %v836, %v836
    %906 = vrot.lane.b32.xlu0 %v904, 32
    %v907 = vpop.permute.xlu0 %906
    %v909 = vsel %vm241, %v907, 0
    %911 = vmatprep.subr.bf16.mxu0 0
    %912 = vmatpush1.bf16.msra.mxu0 %v332
    %913 = vmatprep.subr.bf16.mxu0 0
    %914 = vmatpush1.bf16.msra.mxu0 %v333
    %915 = vmatprep.subr.bf16.mxu0 0
    %916 = vmatpush1.bf16.msra.mxu0 0
    %917 = vmatprep.subr.bf16.mxu0 0
    %918 = vmatpush1.bf16.msra.mxu0 0
    %919 = vmatprep.subr.bf16.mxu0 0
    %920 = vmatpush1.bf16.msra.mxu0 0
    %921 = vmatprep.subr.bf16.mxu0 0
    %922 = vmatpush1.bf16.msra.mxu0 0
    %923 = vmatprep.subr.bf16.mxu0 0
    %924 = vmatpush1.bf16.msra.mxu0 0
    %925 = vmatprep.subr.bf16.mxu0 0
    %926 = vmatpush1.bf16.msra.mxu0 0
    %927 = vmatprep.subr.bf16.mxu0 0
    %928 = vmatpush1.bf16.msra.mxu0 0
    %929 = vmatprep.subr.bf16.mxu0 0
    %930 = vmatpush1.bf16.msra.mxu0 0
    %931 = vmatprep.subr.bf16.mxu0 0
    %932 = vmatpush1.bf16.msra.mxu0 0
    %933 = vmatprep.subr.bf16.mxu0 0
    %934 = vmatpush1.bf16.msra.mxu0 0
    %935 = vmatprep.subr.bf16.mxu0 0
    %936 = vmatpush1.bf16.msra.mxu0 0
    %937 = vmatprep.subr.bf16.mxu0 0
    %938 = vmatpush1.bf16.msra.mxu0 0
    %939 = vmatprep.subr.bf16.mxu0 0
    %940 = vmatpush1.bf16.msra.mxu0 0
    %941 = vmatprep.subr.bf16.mxu0 0
    %942 = vmatpush1.bf16.msra.mxu0 0
    %943 = vmatprep.mubr.bf16.mxu0 0
    %944 = vmatmul.mubr.bf16.gmra.mrb[0].mxu0 %v909
    %v945 = vpop.f32.mrb[0].mxu0
    %v946 = vadd.f32 0.0, %v945
    %v947 = vpop.f32.mrb[0].mxu0
    %v948 = vpop.f32.mrb[0].mxu0
    %v949 = vpop.f32.mrb[0].mxu0
    %950 = vdwg.mxu0
    %952 = vrot.lane.b32.xlu0 %v903, 32
    %v953 = vpop.permute.xlu0 %952
    %v955 = vsel %vm241, %v953, 0
    %957 = vmatprep.subr.bf16.mxu0 0
    %958 = vmatpush1.bf16.msra.mxu0 %v390
    %959 = vmatprep.subr.bf16.mxu0 0
    %960 = vmatpush1.bf16.msra.mxu0 %v391
    %961 = vmatprep.subr.bf16.mxu0 0
    %962 = vmatpush1.bf16.msra.mxu0 0
    %963 = vmatprep.subr.bf16.mxu0 0
    %964 = vmatpush1.bf16.msra.mxu0 0
    %965 = vmatprep.subr.bf16.mxu0 0
    %966 = vmatpush1.bf16.msra.mxu0 0
    %967 = vmatprep.subr.bf16.mxu0 0
    %968 = vmatpush1.bf16.msra.mxu0 0
    %969 = vmatprep.subr.bf16.mxu0 0
    %970 = vmatpush1.bf16.msra.mxu0 0
    %971 = vmatprep.subr.bf16.mxu0 0
    %972 = vmatpush1.bf16.msra.mxu0 0
    %973 = vmatprep.subr.bf16.mxu0 0
    %974 = vmatpush1.bf16.msra.mxu0 0
    %975 = vmatprep.subr.bf16.mxu0 0
    %976 = vmatpush1.bf16.msra.mxu0 0
    %977 = vmatprep.subr.bf16.mxu0 0
    %978 = vmatpush1.bf16.msra.mxu0 0
    %979 = vmatprep.subr.bf16.mxu0 0
    %980 = vmatpush1.bf16.msra.mxu0 0
    %981 = vmatprep.subr.bf16.mxu0 0
    %982 = vmatpush1.bf16.msra.mxu0 0
    %983 = vmatprep.subr.bf16.mxu0 0
    %984 = vmatpush1.bf16.msra.mxu0 0
    %985 = vmatprep.subr.bf16.mxu0 0
    %986 = vmatpush1.bf16.msra.mxu0 0
    %987 = vmatprep.subr.bf16.mxu0 0
    %988 = vmatpush1.bf16.msra.mxu0 0
    %989 = vmatprep.mubr.bf16.mxu0 0
    %990 = vmatmul.mubr.bf16.gmra.mrb[0].mxu0 %v955
    %v991 = vpop.f32.mrb[0].mxu0
    %v992 = vadd.f32 %v946, %v991
    %v993 = vpop.f32.mrb[0].mxu0
    %v994 = vpop.f32.mrb[0].mxu0
    %v995 = vpop.f32.mrb[0].mxu0
    %996 = vdwg.mxu0
    %v997 = vadd.f32 %v992, %v437
    %v998 = vxor.u32 %v997, 2147483648
    %v999 = vmul.f32 %v998, 1.442695
    %v1000 = vpow.pop %v999
    %v1001 = vadd.f32 %v1000, 1.0
    %v1002 = vrcp.pop %v1001
    %v1003 = vmul.f32 1.0, %v1002
    %v1004 = vtanh.pop %v997
    %v1005 = vmul.f32 %v1003, %v830
    %1007 = vrot.lane.b32.xlu0 %v1004, 64
    %v1008 = vpop.permute.xlu0 %1007
    %v1010 = vmul.f32 %v1003, %v1008
    %1012 = vrot.lane.b32.xlu0 %v1010, 32
    %v1013 = vpop.permute.xlu0 %1012
    %v1015 = vadd.f32 %v1005, %v1013
    %v1016 = vtanh.pop %v1015
    %1018 = vrot.lane.b32.xlu0 %v1016, 64
    %v1019 = vpop.permute.xlu0 %1018
    %v1021 = vmul.f32 %v1003, %v1019
    %v1022 = vld [vmem:[#allocation2 + $0x8] sm:$0x3]
    %1023 = vmatprep.subr.bf16.mxu0 0
    %1024 = vmatpush1.bf16.msra.mxu0 %v237
    %1025 = vmatprep.subr.bf16.mxu0 0
    %1026 = vmatpush1.bf16.msra.mxu0 %v238
    %1027 = vmatprep.subr.bf16.mxu0 0
    %1028 = vmatpush1.bf16.msra.mxu0 0
    %1029 = vmatprep.subr.bf16.mxu0 0
    %1030 = vmatpush1.bf16.msra.mxu0 0
    %1031 = vmatprep.subr.bf16.mxu0 0
    %1032 = vmatpush1.bf16.msra.mxu0 0
    %1033 = vmatprep.subr.bf16.mxu0 0
    %1034 = vmatpush1.bf16.msra.mxu0 0
    %1035 = vmatprep.subr.bf16.mxu0 0
    %1036 = vmatpush1.bf16.msra.mxu0 0
    %1037 = vmatprep.subr.bf16.mxu0 0
    %1038 = vmatpush1.bf16.msra.mxu0 0
    %1039 = vmatprep.subr.bf16.mxu0 0
    %1040 = vmatpush1.bf16.msra.mxu0 0
    %1041 = vmatprep.subr.bf16.mxu0 0
    %1042 = vmatpush1.bf16.msra.mxu0 0
    %1043 = vmatprep.subr.bf16.mxu0 0
    %1044 = vmatpush1.bf16.msra.mxu0 0
    %1045 = vmatprep.subr.bf16.mxu0 0
    %1046 = vmatpush1.bf16.msra.mxu0 0
    %1047 = vmatprep.subr.bf16.mxu0 0
    %1048 = vmatpush1.bf16.msra.mxu0 0
    %1049 = vmatprep.subr.bf16.mxu0 0
    %1050 = vmatpush1.bf16.msra.mxu0 0
    %1051 = vmatprep.subr.bf16.mxu0 0
    %1052 = vmatpush1.bf16.msra.mxu0 0
    %1053 = vmatprep.subr.bf16.mxu0 0
    %1054 = vmatpush1.bf16.msra.mxu0 0
    %1055 = vmatprep.mubr.bf16.mxu0 0
    %1056 = vmatmul.mubr.bf16.gmra.mrb[0].mxu0 %v955
    %v1057 = vpop.f32.mrb[0].mxu0
    %v1058 = vadd.f32 0.0, %v1057
    %v1059 = vpop.f32.mrb[0].mxu0
    %v1060 = vpop.f32.mrb[0].mxu0
    %v1061 = vpop.f32.mrb[0].mxu0
    %1062 = vdwg.mxu0
    %v1063 = vadd.f32 %v1022, %v1058
    %v1064 = vxor.u32 %v1063, 2147483648
    %v1065 = vmul.f32 %v1064, 1.442695
    %v1066 = vpow.pop %v1065
    %v1067 = vadd.f32 %v1066, 1.0
    %v1068 = vrcp.pop %v1067
    %v1069 = vmul.f32 1.0, %v1068
    %v1070 = vtanh.pop %v1063
    %v1071 = vmul.f32 %v1069, %v896
    %1073 = vrot.lane.b32.xlu0 %v1070, 64
    %v1074 = vpop.permute.xlu0 %1073
    %v1076 = vmul.f32 %v1069, %v1074
    %1078 = vrot.lane.b32.xlu0 %v1076, 32
    %v1079 = vpop.permute.xlu0 %1078
    %v1081 = vadd.f32 %v1071, %v1079
    %v1082 = vtanh.pop %v1081
    %1084 = vrot.lane.b32.xlu0 %v1082, 64
    %v1085 = vpop.permute.xlu0 %1084
    %v1087 = vmul.f32 %v1069, %v1085
    %v1088 = vpack.c.bf16 %v1087, %v1087
    %v1089 = vpack.c.bf16 %v1021, %v1021
    %1091 = vrot.lane.b32.xlu0 %v1089, 32
    %v1092 = vpop.permute.xlu0 %1091
    %v1094 = vsel %vm241, %v1092, 0
    %1096 = vmatprep.subr.bf16.mxu0 0
    %1097 = vmatpush1.bf16.msra.mxu0 %v332
    %1098 = vmatprep.subr.bf16.mxu0 0
    %1099 = vmatpush1.bf16.msra.mxu0 %v333
    %1100 = vmatprep.subr.bf16.mxu0 0
    %1101 = vmatpush1.bf16.msra.mxu0 0
    %1102 = vmatprep.subr.bf16.mxu0 0
    %1103 = vmatpush1.bf16.msra.mxu0 0
    %1104 = vmatprep.subr.bf16.mxu0 0
    %1105 = vmatpush1.bf16.msra.mxu0 0
    %1106 = vmatprep.subr.bf16.mxu0 0
    %1107 = vmatpush1.bf16.msra.mxu0 0
    %1108 = vmatprep.subr.bf16.mxu0 0
    %1109 = vmatpush1.bf16.msra.mxu0 0
    %1110 = vmatprep.subr.bf16.mxu0 0
    %1111 = vmatpush1.bf16.msra.mxu0 0
    %1112 = vmatprep.subr.bf16.mxu0 0
    %1113 = vmatpush1.bf16.msra.mxu0 0
    %1114 = vmatprep.subr.bf16.mxu0 0
    %1115 = vmatpush1.bf16.msra.mxu0 0
    %1116 = vmatprep.subr.bf16.mxu0 0
    %1117 = vmatpush1.bf16.msra.mxu0 0
    %1118 = vmatprep.subr.bf16.mxu0 0
    %1119 = vmatpush1.bf16.msra.mxu0 0
    %1120 = vmatprep.subr.bf16.mxu0 0
    %1121 = vmatpush1.bf16.msra.mxu0 0
    %1122 = vmatprep.subr.bf16.mxu0 0
    %1123 = vmatpush1.bf16.msra.mxu0 0
    %1124 = vmatprep.subr.bf16.mxu0 0
    %1125 = vmatpush1.bf16.msra.mxu0 0
    %1126 = vmatprep.subr.bf16.mxu0 0
    %1127 = vmatpush1.bf16.msra.mxu0 0
    %1128 = vmatprep.mubr.bf16.mxu0 0
    %1129 = vmatmul.mubr.bf16.gmra.mrb[0].mxu0 %v1094
    %v1130 = vpop.f32.mrb[0].mxu0
    %v1131 = vadd.f32 0.0, %v1130
    %v1132 = vpop.f32.mrb[0].mxu0
    %v1133 = vpop.f32.mrb[0].mxu0
    %v1134 = vpop.f32.mrb[0].mxu0
    %1135 = vdwg.mxu0
    %1137 = vrot.lane.b32.xlu0 %v1088, 32
    %v1138 = vpop.permute.xlu0 %1137
    %v1140 = vsel %vm241, %v1138, 0
    %1142 = vmatprep.subr.bf16.mxu0 0
    %1143 = vmatpush1.bf16.msra.mxu0 %v390
    %1144 = vmatprep.subr.bf16.mxu0 0
    %1145 = vmatpush1.bf16.msra.mxu0 %v391
    %1146 = vmatprep.subr.bf16.mxu0 0
    %1147 = vmatpush1.bf16.msra.mxu0 0
    %1148 = vmatprep.subr.bf16.mxu0 0
    %1149 = vmatpush1.bf16.msra.mxu0 0
    %1150 = vmatprep.subr.bf16.mxu0 0
    %1151 = vmatpush1.bf16.msra.mxu0 0
    %1152 = vmatprep.subr.bf16.mxu0 0
    %1153 = vmatpush1.bf16.msra.mxu0 0
    %1154 = vmatprep.subr.bf16.mxu0 0
    %1155 = vmatpush1.bf16.msra.mxu0 0
    %1156 = vmatprep.subr.bf16.mxu0 0
    %1157 = vmatpush1.bf16.msra.mxu0 0
    %1158 = vmatprep.subr.bf16.mxu0 0
    %1159 = vmatpush1.bf16.msra.mxu0 0
    %1160 = vmatprep.subr.bf16.mxu0 0
    %1161 = vmatpush1.bf16.msra.mxu0 0
    %1162 = vmatprep.subr.bf16.mxu0 0
    %1163 = vmatpush1.bf16.msra.mxu0 0
    %1164 = vmatprep.subr.bf16.mxu0 0
    %1165 = vmatpush1.bf16.msra.mxu0 0
    %1166 = vmatprep.subr.bf16.mxu0 0
    %1167 = vmatpush1.bf16.msra.mxu0 0
    %1168 = vmatprep.subr.bf16.mxu0 0
    %1169 = vmatpush1.bf16.msra.mxu0 0
    %1170 = vmatprep.subr.bf16.mxu0 0
    %1171 = vmatpush1.bf16.msra.mxu0 0
    %1172 = vmatprep.subr.bf16.mxu0 0
    %1173 = vmatpush1.bf16.msra.mxu0 0
    %1174 = vmatprep.mubr.bf16.mxu0 0
    %1175 = vmatmul.mubr.bf16.gmra.mrb[0].mxu0 %v1140
    %v1176 = vpop.f32.mrb[0].mxu0
    %v1177 = vadd.f32 %v1131, %v1176
    %v1178 = vpop.f32.mrb[0].mxu0
    %v1179 = vpop.f32.mrb[0].mxu0
    %v1180 = vpop.f32.mrb[0].mxu0
    %1181 = vdwg.mxu0
    %v1182 = vadd.f32 %v1177, %v437
    %v1183 = vxor.u32 %v1182, 2147483648
    %v1184 = vmul.f32 %v1183, 1.442695
    %v1185 = vpow.pop %v1184
    %v1186 = vadd.f32 %v1185, 1.0
    %v1187 = vrcp.pop %v1186
    %v1188 = vmul.f32 1.0, %v1187
    %v1189 = vtanh.pop %v1182
    %v1190 = vmul.f32 %v1188, %v1015
    %1192 = vrot.lane.b32.xlu0 %v1189, 64
    %v1193 = vpop.permute.xlu0 %1192
    %v1195 = vmul.f32 %v1188, %v1193
    %1197 = vrot.lane.b32.xlu0 %v1195, 32
    %v1198 = vpop.permute.xlu0 %1197
    %v1200 = vadd.f32 %v1190, %v1198
    %v1201 = vtanh.pop %v1200
    %1203 = vrot.lane.b32.xlu0 %v1201, 64
    %v1204 = vpop.permute.xlu0 %1203
    %v1206 = vmul.f32 %v1188, %v1204
    %v1207 = vld [vmem:[#allocation2 + $0xa] sm:$0x3]
    %1208 = vmatprep.subr.bf16.mxu0 0
    %1209 = vmatpush1.bf16.msra.mxu0 %v237
    %1210 = vmatprep.subr.bf16.mxu0 0
    %1211 = vmatpush1.bf16.msra.mxu0 %v238
    %1212 = vmatprep.subr.bf16.mxu0 0
    %1213 = vmatpush1.bf16.msra.mxu0 0
    %1214 = vmatprep.subr.bf16.mxu0 0
    %1215 = vmatpush1.bf16.msra.mxu0 0
    %1216 = vmatprep.subr.bf16.mxu0 0
    %1217 = vmatpush1.bf16.msra.mxu0 0
    %1218 = vmatprep.subr.bf16.mxu0 0
    %1219 = vmatpush1.bf16.msra.mxu0 0
    %1220 = vmatprep.subr.bf16.mxu0 0
    %1221 = vmatpush1.bf16.msra.mxu0 0
    %1222 = vmatprep.subr.bf16.mxu0 0
    %1223 = vmatpush1.bf16.msra.mxu0 0
    %1224 = vmatprep.subr.bf16.mxu0 0
    %1225 = vmatpush1.bf16.msra.mxu0 0
    %1226 = vmatprep.subr.bf16.mxu0 0
    %1227 = vmatpush1.bf16.msra.mxu0 0
    %1228 = vmatprep.subr.bf16.mxu0 0
    %1229 = vmatpush1.bf16.msra.mxu0 0
    %1230 = vmatprep.subr.bf16.mxu0 0
    %1231 = vmatpush1.bf16.msra.mxu0 0
    %1232 = vmatprep.subr.bf16.mxu0 0
    %1233 = vmatpush1.bf16.msra.mxu0 0
    %1234 = vmatprep.subr.bf16.mxu0 0
    %1235 = vmatpush1.bf16.msra.mxu0 0
    %1236 = vmatprep.subr.bf16.mxu0 0
    %1237 = vmatpush1.bf16.msra.mxu0 0
    %1238 = vmatprep.subr.bf16.mxu0 0
    %1239 = vmatpush1.bf16.msra.mxu0 0
    %1240 = vmatprep.mubr.bf16.mxu0 0
    %1241 = vmatmul.mubr.bf16.gmra.mrb[0].mxu0 %v1140
    %v1242 = vpop.f32.mrb[0].mxu0
    %v1243 = vadd.f32 0.0, %v1242
    %v1244 = vpop.f32.mrb[0].mxu0
    %v1245 = vpop.f32.mrb[0].mxu0
    %v1246 = vpop.f32.mrb[0].mxu0
    %1247 = vdwg.mxu0
    %v1248 = vadd.f32 %v1207, %v1243
    %v1249 = vxor.u32 %v1248, 2147483648
    %v1250 = vmul.f32 %v1249, 1.442695
    %v1251 = vpow.pop %v1250
    %v1252 = vadd.f32 %v1251, 1.0
    %v1253 = vrcp.pop %v1252
    %v1254 = vmul.f32 1.0, %v1253
    %v1255 = vtanh.pop %v1248
    %v1256 = vmul.f32 %v1254, %v1081
    %1258 = vrot.lane.b32.xlu0 %v1255, 64
    %v1259 = vpop.permute.xlu0 %1258
    %v1261 = vmul.f32 %v1254, %v1259
    %1263 = vrot.lane.b32.xlu0 %v1261, 32
    %v1264 = vpop.permute.xlu0 %1263
    %v1266 = vadd.f32 %v1256, %v1264
    %v1267 = vtanh.pop %v1266
    %1269 = vrot.lane.b32.xlu0 %v1267, 64
    %v1270 = vpop.permute.xlu0 %1269
    %v1272 = vmul.f32 %v1254, %v1270
    %v1273 = vpack.c.bf16 %v1272, %v1272
    %v1274 = vpack.c.bf16 %v1206, %v1206
    %1276 = vrot.lane.b32.xlu0 %v1274, 32
    %v1277 = vpop.permute.xlu0 %1276
    %v1279 = vsel %vm241, %v1277, 0
    %1281 = vmatprep.subr.bf16.mxu0 0
    %1282 = vmatpush1.bf16.msra.mxu0 %v332
    %1283 = vmatprep.subr.bf16.mxu0 0
    %1284 = vmatpush1.bf16.msra.mxu0 %v333
    %1285 = vmatprep.subr.bf16.mxu0 0
    %1286 = vmatpush1.bf16.msra.mxu0 0
    %1287 = vmatprep.subr.bf16.mxu0 0
    %1288 = vmatpush1.bf16.msra.mxu0 0
    %1289 = vmatprep.subr.bf16.mxu0 0
    %1290 = vmatpush1.bf16.msra.mxu0 0
    %1291 = vmatprep.subr.bf16.mxu0 0
    %1292 = vmatpush1.bf16.msra.mxu0 0
    %1293 = vmatprep.subr.bf16.mxu0 0
    %1294 = vmatpush1.bf16.msra.mxu0 0
    %1295 = vmatprep.subr.bf16.mxu0 0
    %1296 = vmatpush1.bf16.msra.mxu0 0
    %1297 = vmatprep.subr.bf16.mxu0 0
    %1298 = vmatpush1.bf16.msra.mxu0 0
    %1299 = vmatprep.subr.bf16.mxu0 0
    %1300 = vmatpush1.bf16.msra.mxu0 0
    %1301 = vmatprep.subr.bf16.mxu0 0
    %1302 = vmatpush1.bf16.msra.mxu0 0
    %1303 = vmatprep.subr.bf16.mxu0 0
    %1304 = vmatpush1.bf16.msra.mxu0 0
    %1305 = vmatprep.subr.bf16.mxu0 0
    %1306 = vmatpush1.bf16.msra.mxu0 0
    %1307 = vmatprep.subr.bf16.mxu0 0
    %1308 = vmatpush1.bf16.msra.mxu0 0
    %1309 = vmatprep.subr.bf16.mxu0 0
    %1310 = vmatpush1.bf16.msra.mxu0 0
    %1311 = vmatprep.subr.bf16.mxu0 0
    %1312 = vmatpush1.bf16.msra.mxu0 0
    %1313 = vmatprep.mubr.bf16.mxu0 0
    %1314 = vmatmul.mubr.bf16.gmra.mrb[0].mxu0 %v1279
    %v1315 = vpop.f32.mrb[0].mxu0
    %v1316 = vadd.f32 0.0, %v1315
    %v1317 = vpop.f32.mrb[0].mxu0
    %v1318 = vpop.f32.mrb[0].mxu0
    %v1319 = vpop.f32.mrb[0].mxu0
    %1320 = vdwg.mxu0
    %1322 = vrot.lane.b32.xlu0 %v1273, 32
    %v1323 = vpop.permute.xlu0 %1322
    %v1325 = vsel %vm241, %v1323, 0
    %1327 = vmatprep.subr.bf16.mxu0 0
    %1328 = vmatpush1.bf16.msra.mxu0 %v390
    %1329 = vmatprep.subr.bf16.mxu0 0
    %1330 = vmatpush1.bf16.msra.mxu0 %v391
    %1331 = vmatprep.subr.bf16.mxu0 0
    %1332 = vmatpush1.bf16.msra.mxu0 0
    %1333 = vmatprep.subr.bf16.mxu0 0
    %1334 = vmatpush1.bf16.msra.mxu0 0
    %1335 = vmatprep.subr.bf16.mxu0 0
    %1336 = vmatpush1.bf16.msra.mxu0 0
    %1337 = vmatprep.subr.bf16.mxu0 0
    %1338 = vmatpush1.bf16.msra.mxu0 0
    %1339 = vmatprep.subr.bf16.mxu0 0
    %1340 = vmatpush1.bf16.msra.mxu0 0
    %1341 = vmatprep.subr.bf16.mxu0 0
    %1342 = vmatpush1.bf16.msra.mxu0 0
    %1343 = vmatprep.subr.bf16.mxu0 0
    %1344 = vmatpush1.bf16.msra.mxu0 0
    %1345 = vmatprep.subr.bf16.mxu0 0
    %1346 = vmatpush1.bf16.msra.mxu0 0
    %1347 = vmatprep.subr.bf16.mxu0 0
    %1348 = vmatpush1.bf16.msra.mxu0 0
    %1349 = vmatprep.subr.bf16.mxu0 0
    %1350 = vmatpush1.bf16.msra.mxu0 0
    %1351 = vmatprep.subr.bf16.mxu0 0
    %1352 = vmatpush1.bf16.msra.mxu0 0
    %1353 = vmatprep.subr.bf16.mxu0 0
    %1354 = vmatpush1.bf16.msra.mxu0 0
    %1355 = vmatprep.subr.bf16.mxu0 0
    %1356 = vmatpush1.bf16.msra.mxu0 0
    %1357 = vmatprep.subr.bf16.mxu0 0
    %1358 = vmatpush1.bf16.msra.mxu0 0
    %1359 = vmatprep.mubr.bf16.mxu0 0
    %1360 = vmatmul.mubr.bf16.gmra.mrb[0].mxu0 %v1325
    %v1361 = vpop.f32.mrb[0].mxu0
    %v1362 = vadd.f32 %v1316, %v1361
    %v1363 = vpop.f32.mrb[0].mxu0
    %v1364 = vpop.f32.mrb[0].mxu0
    %v1365 = vpop.f32.mrb[0].mxu0
    %1366 = vdwg.mxu0
    %v1367 = vadd.f32 %v1362, %v437
    %v1368 = vxor.u32 %v1367, 2147483648
    %v1369 = vmul.f32 %v1368, 1.442695
    %v1370 = vpow.pop %v1369
    %v1371 = vadd.f32 %v1370, 1.0
    %v1372 = vrcp.pop %v1371
    %v1373 = vmul.f32 1.0, %v1372
    %v1374 = vtanh.pop %v1367
    %v1375 = vmul.f32 %v1373, %v1200
    %1377 = vrot.lane.b32.xlu0 %v1374, 64
    %v1378 = vpop.permute.xlu0 %1377
    %v1380 = vmul.f32 %v1373, %v1378
    %1382 = vrot.lane.b32.xlu0 %v1380, 32
    %v1383 = vpop.permute.xlu0 %1382
    %v1385 = vadd.f32 %v1375, %v1383
    %v1386 = vtanh.pop %v1385
    %1388 = vrot.lane.b32.xlu0 %v1386, 64
    %v1389 = vpop.permute.xlu0 %1388
    %v1391 = vmul.f32 %v1373, %v1389
    %v1392 = vld [vmem:[#allocation2 + $0xc] sm:$0x3]
    %1393 = vmatprep.subr.bf16.mxu0 0
    %1394 = vmatpush1.bf16.msra.mxu0 %v237
    %1395 = vmatprep.subr.bf16.mxu0 0
    %1396 = vmatpush1.bf16.msra.mxu0 %v238
    %1397 = vmatprep.subr.bf16.mxu0 0
    %1398 = vmatpush1.bf16.msra.mxu0 0
    %1399 = vmatprep.subr.bf16.mxu0 0
    %1400 = vmatpush1.bf16.msra.mxu0 0
    %1401 = vmatprep.subr.bf16.mxu0 0
    %1402 = vmatpush1.bf16.msra.mxu0 0
    %1403 = vmatprep.subr.bf16.mxu0 0
    %1404 = vmatpush1.bf16.msra.mxu0 0
    %1405 = vmatprep.subr.bf16.mxu0 0
    %1406 = vmatpush1.bf16.msra.mxu0 0
    %1407 = vmatprep.subr.bf16.mxu0 0
    %1408 = vmatpush1.bf16.msra.mxu0 0
    %1409 = vmatprep.subr.bf16.mxu0 0
    %1410 = vmatpush1.bf16.msra.mxu0 0
    %1411 = vmatprep.subr.bf16.mxu0 0
    %1412 = vmatpush1.bf16.msra.mxu0 0
    %1413 = vmatprep.subr.bf16.mxu0 0
    %1414 = vmatpush1.bf16.msra.mxu0 0
    %1415 = vmatprep.subr.bf16.mxu0 0
    %1416 = vmatpush1.bf16.msra.mxu0 0
    %1417 = vmatprep.subr.bf16.mxu0 0
    %1418 = vmatpush1.bf16.msra.mxu0 0
    %1419 = vmatprep.subr.bf16.mxu0 0
    %1420 = vmatpush1.bf16.msra.mxu0 0
    %1421 = vmatprep.subr.bf16.mxu0 0
    %1422 = vmatpush1.bf16.msra.mxu0 0
    %1423 = vmatprep.subr.bf16.mxu0 0
    %1424 = vmatpush1.bf16.msra.mxu0 0
    %1425 = vmatprep.mubr.bf16.mxu0 0
    %1426 = vmatmul.mubr.bf16.gmra.mrb[0].mxu0 %v1325
    %v1427 = vpop.f32.mrb[0].mxu0
    %v1428 = vadd.f32 0.0, %v1427
    %v1429 = vpop.f32.mrb[0].mxu0
    %v1430 = vpop.f32.mrb[0].mxu0
    %v1431 = vpop.f32.mrb[0].mxu0
    %1432 = vdwg.mxu0
    %v1433 = vadd.f32 %v1392, %v1428
    %v1434 = vxor.u32 %v1433, 2147483648
    %v1435 = vmul.f32 %v1434, 1.442695
    %v1436 = vpow.pop %v1435
    %v1437 = vadd.f32 %v1436, 1.0
    %v1438 = vrcp.pop %v1437
    %v1439 = vmul.f32 1.0, %v1438
    %v1440 = vtanh.pop %v1433
    %v1441 = vmul.f32 %v1439, %v1266
    %1443 = vrot.lane.b32.xlu0 %v1440, 64
    %v1444 = vpop.permute.xlu0 %1443
    %v1446 = vmul.f32 %v1439, %v1444
    %1448 = vrot.lane.b32.xlu0 %v1446, 32
    %v1449 = vpop.permute.xlu0 %1448
    %v1451 = vadd.f32 %v1441, %v1449
    %v1452 = vtanh.pop %v1451
    %1454 = vrot.lane.b32.xlu0 %v1452, 64
    %v1455 = vpop.permute.xlu0 %1454
    %v1457 = vmul.f32 %v1439, %v1455
    %v1458 = vpack.c.bf16 %v1457, %v1457
    %v1459 = vpack.c.bf16 %v1391, %v1391
    %1461 = vrot.lane.b32.xlu0 %v1459, 32
    %v1462 = vpop.permute.xlu0 %1461
    %v1464 = vsel %vm241, %v1462, 0
    %1466 = vmatprep.subr.bf16.mxu0 0
    %1467 = vmatpush1.bf16.msra.mxu0 %v332
    %1468 = vmatprep.subr.bf16.mxu0 0
    %1469 = vmatpush1.bf16.msra.mxu0 %v333
    %1470 = vmatprep.subr.bf16.mxu0 0
    %1471 = vmatpush1.bf16.msra.mxu0 0
    %1472 = vmatprep.subr.bf16.mxu0 0
    %1473 = vmatpush1.bf16.msra.mxu0 0
    %1474 = vmatprep.subr.bf16.mxu0 0
    %1475 = vmatpush1.bf16.msra.mxu0 0
    %1476 = vmatprep.subr.bf16.mxu0 0
    %1477 = vmatpush1.bf16.msra.mxu0 0
    %1478 = vmatprep.subr.bf16.mxu0 0
    %1479 = vmatpush1.bf16.msra.mxu0 0
    %1480 = vmatprep.subr.bf16.mxu0 0
    %1481 = vmatpush1.bf16.msra.mxu0 0
    %1482 = vmatprep.subr.bf16.mxu0 0
    %1483 = vmatpush1.bf16.msra.mxu0 0
    %1484 = vmatprep.subr.bf16.mxu0 0
    %1485 = vmatpush1.bf16.msra.mxu0 0
    %1486 = vmatprep.subr.bf16.mxu0 0
    %1487 = vmatpush1.bf16.msra.mxu0 0
    %1488 = vmatprep.subr.bf16.mxu0 0
    %1489 = vmatpush1.bf16.msra.mxu0 0
    %1490 = vmatprep.subr.bf16.mxu0 0
    %1491 = vmatpush1.bf16.msra.mxu0 0
    %1492 = vmatprep.subr.bf16.mxu0 0
    %1493 = vmatpush1.bf16.msra.mxu0 0
    %1494 = vmatprep.subr.bf16.mxu0 0
    %1495 = vmatpush1.bf16.msra.mxu0 0
    %1496 = vmatprep.subr.bf16.mxu0 0
    %1497 = vmatpush1.bf16.msra.mxu0 0
    %1498 = vmatprep.mubr.bf16.mxu0 0
    %1499 = vmatmul.mubr.bf16.gmra.mrb[0].mxu0 %v1464
    %v1500 = vpop.f32.mrb[0].mxu0
    %v1501 = vadd.f32 0.0, %v1500
    %v1502 = vpop.f32.mrb[0].mxu0
    %v1503 = vpop.f32.mrb[0].mxu0
    %v1504 = vpop.f32.mrb[0].mxu0
    %1505 = vdwg.mxu0
    %1507 = vrot.lane.b32.xlu0 %v1458, 32
    %v1508 = vpop.permute.xlu0 %1507
    %v1510 = vsel %vm241, %v1508, 0
    %1512 = vmatprep.subr.bf16.mxu0 0
    %1513 = vmatpush1.bf16.msra.mxu0 %v390
    %1514 = vmatprep.subr.bf16.mxu0 0
    %1515 = vmatpush1.bf16.msra.mxu0 %v391
    %1516 = vmatprep.subr.bf16.mxu0 0
    %1517 = vmatpush1.bf16.msra.mxu0 0
    %1518 = vmatprep.subr.bf16.mxu0 0
    %1519 = vmatpush1.bf16.msra.mxu0 0
    %1520 = vmatprep.subr.bf16.mxu0 0
    %1521 = vmatpush1.bf16.msra.mxu0 0
    %1522 = vmatprep.subr.bf16.mxu0 0
    %1523 = vmatpush1.bf16.msra.mxu0 0
    %1524 = vmatprep.subr.bf16.mxu0 0
    %1525 = vmatpush1.bf16.msra.mxu0 0
    %1526 = vmatprep.subr.bf16.mxu0 0
    %1527 = vmatpush1.bf16.msra.mxu0 0
    %1528 = vmatprep.subr.bf16.mxu0 0
    %1529 = vmatpush1.bf16.msra.mxu0 0
    %1530 = vmatprep.subr.bf16.mxu0 0
    %1531 = vmatpush1.bf16.msra.mxu0 0
    %1532 = vmatprep.subr.bf16.mxu0 0
    %1533 = vmatpush1.bf16.msra.mxu0 0
    %1534 = vmatprep.subr.bf16.mxu0 0
    %1535 = vmatpush1.bf16.msra.mxu0 0
    %1536 = vmatprep.subr.bf16.mxu0 0
    %1537 = vmatpush1.bf16.msra.mxu0 0
    %1538 = vmatprep.subr.bf16.mxu0 0
    %1539 = vmatpush1.bf16.msra.mxu0 0
    %1540 = vmatprep.subr.bf16.mxu0 0
    %1541 = vmatpush1.bf16.msra.mxu0 0
    %1542 = vmatprep.subr.bf16.mxu0 0
    %1543 = vmatpush1.bf16.msra.mxu0 0
    %1544 = vmatprep.mubr.bf16.mxu0 0
    %1545 = vmatmul.mubr.bf16.gmra.mrb[0].mxu0 %v1510
    %v1546 = vpop.f32.mrb[0].mxu0
    %v1547 = vadd.f32 %v1501, %v1546
    %v1548 = vpop.f32.mrb[0].mxu0
    %v1549 = vpop.f32.mrb[0].mxu0
    %v1550 = vpop.f32.mrb[0].mxu0
    %1551 = vdwg.mxu0
    %v1552 = vadd.f32 %v1547, %v437
    %v1553 = vxor.u32 %v1552, 2147483648
    %v1554 = vmul.f32 %v1553, 1.442695
    %v1555 = vpow.pop %v1554
    %v1556 = vadd.f32 %v1555, 1.0
    %v1557 = vrcp.pop %v1556
    %v1558 = vmul.f32 1.0, %v1557
    %v1559 = vtanh.pop %v1552
    %v1560 = vmul.f32 %v1558, %v1385
    %1562 = vrot.lane.b32.xlu0 %v1559, 64
    %v1563 = vpop.permute.xlu0 %1562
    %v1565 = vmul.f32 %v1558, %v1563
    %1567 = vrot.lane.b32.xlu0 %v1565, 32
    %v1568 = vpop.permute.xlu0 %1567
    %v1570 = vadd.f32 %v1560, %v1568
    %v1571 = vtanh.pop %v1570
    %1573 = vrot.lane.b32.xlu0 %v1571, 64
    %v1574 = vpop.permute.xlu0 %1573
    %v1576 = vmul.f32 %v1558, %v1574
    %v1577 = vld [vmem:[#allocation2 + $0xe] sm:$0x3]
    %1578 = vmatprep.subr.bf16.mxu0 0
    %1579 = vmatpush1.bf16.msra.mxu0 %v237
    %1580 = vmatprep.subr.bf16.mxu0 0
    %1581 = vmatpush1.bf16.msra.mxu0 %v238
    %1582 = vmatprep.subr.bf16.mxu0 0
    %1583 = vmatpush1.bf16.msra.mxu0 0
    %1584 = vmatprep.subr.bf16.mxu0 0
    %1585 = vmatpush1.bf16.msra.mxu0 0
    %1586 = vmatprep.subr.bf16.mxu0 0
    %1587 = vmatpush1.bf16.msra.mxu0 0
    %1588 = vmatprep.subr.bf16.mxu0 0
    %1589 = vmatpush1.bf16.msra.mxu0 0
    %1590 = vmatprep.subr.bf16.mxu0 0
    %1591 = vmatpush1.bf16.msra.mxu0 0
    %1592 = vmatprep.subr.bf16.mxu0 0
    %1593 = vmatpush1.bf16.msra.mxu0 0
    %1594 = vmatprep.subr.bf16.mxu0 0
    %1595 = vmatpush1.bf16.msra.mxu0 0
    %1596 = vmatprep.subr.bf16.mxu0 0
    %1597 = vmatpush1.bf16.msra.mxu0 0
    %1598 = vmatprep.subr.bf16.mxu0 0
    %1599 = vmatpush1.bf16.msra.mxu0 0
    %1600 = vmatprep.subr.bf16.mxu0 0
    %1601 = vmatpush1.bf16.msra.mxu0 0
    %1602 = vmatprep.subr.bf16.mxu0 0
    %1603 = vmatpush1.bf16.msra.mxu0 0
    %1604 = vmatprep.subr.bf16.mxu0 0
    %1605 = vmatpush1.bf16.msra.mxu0 0
    %1606 = vmatprep.subr.bf16.mxu0 0
    %1607 = vmatpush1.bf16.msra.mxu0 0
    %1608 = vmatprep.subr.bf16.mxu0 0
    %1609 = vmatpush1.bf16.msra.mxu0 0
    %1610 = vmatprep.mubr.bf16.mxu0 0
    %1611 = vmatmul.mubr.bf16.gmra.mrb[0].mxu0 %v1510
    %v1612 = vpop.f32.mrb[0].mxu0
    %v1613 = vadd.f32 0.0, %v1612
    %v1614 = vpop.f32.mrb[0].mxu0
    %v1615 = vpop.f32.mrb[0].mxu0
    %v1616 = vpop.f32.mrb[0].mxu0
    %1617 = vdwg.mxu0
    %v1618 = vadd.f32 %v1577, %v1613
    %v1619 = vxor.u32 %v1618, 2147483648
    %v1620 = vmul.f32 %v1619, 1.442695
    %v1621 = vpow.pop %v1620
    %v1622 = vadd.f32 %v1621, 1.0
    %v1623 = vrcp.pop %v1622
    %v1624 = vmul.f32 1.0, %v1623
    %v1625 = vtanh.pop %v1618
    %v1626 = vmul.f32 %v1624, %v1451
    %1628 = vrot.lane.b32.xlu0 %v1625, 64
    %v1629 = vpop.permute.xlu0 %1628
    %v1631 = vmul.f32 %v1624, %v1629
    %1633 = vrot.lane.b32.xlu0 %v1631, 32
    %v1634 = vpop.permute.xlu0 %1633
    %v1636 = vadd.f32 %v1626, %v1634
    %v1637 = vtanh.pop %v1636
    %1639 = vrot.lane.b32.xlu0 %v1637, 64
    %v1640 = vpop.permute.xlu0 %1639
    %v1642 = vmul.f32 %v1624, %v1640
    %v1643 = vpack.c.bf16 %v1642, %v1642
    %v1644 = vpack.c.bf16 %v1576, %v1576
    %1646 = vrot.lane.b32.xlu0 %v1644, 32
    %v1647 = vpop.permute.xlu0 %1646
    %v1649 = vsel %vm241, %v1647, 0
    %1651 = vmatprep.subr.bf16.mxu0 0
    %1652 = vmatpush1.bf16.msra.mxu0 %v332
    %1653 = vmatprep.subr.bf16.mxu0 0
    %1654 = vmatpush1.bf16.msra.mxu0 %v333
    %1655 = vmatprep.subr.bf16.mxu0 0
    %1656 = vmatpush1.bf16.msra.mxu0 0
    %1657 = vmatprep.subr.bf16.mxu0 0
    %1658 = vmatpush1.bf16.msra.mxu0 0
    %1659 = vmatprep.subr.bf16.mxu0 0
    %1660 = vmatpush1.bf16.msra.mxu0 0
    %1661 = vmatprep.subr.bf16.mxu0 0
    %1662 = vmatpush1.bf16.msra.mxu0 0
    %1663 = vmatprep.subr.bf16.mxu0 0
    %1664 = vmatpush1.bf16.msra.mxu0 0
    %1665 = vmatprep.subr.bf16.mxu0 0
    %1666 = vmatpush1.bf16.msra.mxu0 0
    %1667 = vmatprep.subr.bf16.mxu0 0
    %1668 = vmatpush1.bf16.msra.mxu0 0
    %1669 = vmatprep.subr.bf16.mxu0 0
    %1670 = vmatpush1.bf16.msra.mxu0 0
    %1671 = vmatprep.subr.bf16.mxu0 0
    %1672 = vmatpush1.bf16.msra.mxu0 0
    %1673 = vmatprep.subr.bf16.mxu0 0
    %1674 = vmatpush1.bf16.msra.mxu0 0
    %1675 = vmatprep.subr.bf16.mxu0 0
    %1676 = vmatpush1.bf16.msra.mxu0 0
    %1677 = vmatprep.subr.bf16.mxu0 0
    %1678 = vmatpush1.bf16.msra.mxu0 0
    %1679 = vmatprep.subr.bf16.mxu0 0
    %1680 = vmatpush1.bf16.msra.mxu0 0
    %1681 = vmatprep.subr.bf16.mxu0 0
    %1682 = vmatpush1.bf16.msra.mxu0 0
    %1683 = vmatprep.mubr.bf16.mxu0 0
    %1684 = vmatmul.mubr.bf16.gmra.mrb[0].mxu0 %v1649
    %v1685 = vpop.f32.mrb[0].mxu0
    %v1686 = vadd.f32 0.0, %v1685
    %v1687 = vpop.f32.mrb[0].mxu0
    %v1688 = vpop.f32.mrb[0].mxu0
    %v1689 = vpop.f32.mrb[0].mxu0
    %1690 = vdwg.mxu0
    %1692 = vrot.lane.b32.xlu0 %v1643, 32
    %v1693 = vpop.permute.xlu0 %1692
    %v1695 = vsel %vm241, %v1693, 0
    %1697 = vmatprep.subr.bf16.mxu0 0
    %1698 = vmatpush1.bf16.msra.mxu0 %v390
    %1699 = vmatprep.subr.bf16.mxu0 0
    %1700 = vmatpush1.bf16.msra.mxu0 %v391
    %1701 = vmatprep.subr.bf16.mxu0 0
    %1702 = vmatpush1.bf16.msra.mxu0 0
    %1703 = vmatprep.subr.bf16.mxu0 0
    %1704 = vmatpush1.bf16.msra.mxu0 0
    %1705 = vmatprep.subr.bf16.mxu0 0
    %1706 = vmatpush1.bf16.msra.mxu0 0
    %1707 = vmatprep.subr.bf16.mxu0 0
    %1708 = vmatpush1.bf16.msra.mxu0 0
    %1709 = vmatprep.subr.bf16.mxu0 0
    %1710 = vmatpush1.bf16.msra.mxu0 0
    %1711 = vmatprep.subr.bf16.mxu0 0
    %1712 = vmatpush1.bf16.msra.mxu0 0
    %1713 = vmatprep.subr.bf16.mxu0 0
    %1714 = vmatpush1.bf16.msra.mxu0 0
    %1715 = vmatprep.subr.bf16.mxu0 0
    %1716 = vmatpush1.bf16.msra.mxu0 0
    %1717 = vmatprep.subr.bf16.mxu0 0
    %1718 = vmatpush1.bf16.msra.mxu0 0
    %1719 = vmatprep.subr.bf16.mxu0 0
    %1720 = vmatpush1.bf16.msra.mxu0 0
    %1721 = vmatprep.subr.bf16.mxu0 0
    %1722 = vmatpush1.bf16.msra.mxu0 0
    %1723 = vmatprep.subr.bf16.mxu0 0
    %1724 = vmatpush1.bf16.msra.mxu0 0
    %1725 = vmatprep.subr.bf16.mxu0 0
    %1726 = vmatpush1.bf16.msra.mxu0 0
    %1727 = vmatprep.subr.bf16.mxu0 0
    %1728 = vmatpush1.bf16.msra.mxu0 0
    %1729 = vmatprep.mubr.bf16.mxu0 0
    %1730 = vmatmul.mubr.bf16.gmra.mrb[0].mxu0 %v1695
    %v1731 = vpop.f32.mrb[0].mxu0
    %v1732 = vadd.f32 %v1686, %v1731
    %v1733 = vpop.f32.mrb[0].mxu0
    %v1734 = vpop.f32.mrb[0].mxu0
    %v1735 = vpop.f32.mrb[0].mxu0
    %1736 = vdwg.mxu0
    %v1737 = vadd.f32 %v1732, %v437
    %v1738 = vxor.u32 %v1737, 2147483648
    %v1739 = vmul.f32 %v1738, 1.442695
    %v1740 = vpow.pop %v1739
    %v1741 = vadd.f32 %v1740, 1.0
    %v1742 = vrcp.pop %v1741
    %v1743 = vmul.f32 1.0, %v1742
    %v1744 = vtanh.pop %v1737
    %v1745 = vmul.f32 %v1743, %v1570
    %1747 = vrot.lane.b32.xlu0 %v1744, 64
    %v1748 = vpop.permute.xlu0 %1747
    %v1750 = vmul.f32 %v1743, %v1748
    %1752 = vrot.lane.b32.xlu0 %v1750, 32
    %v1753 = vpop.permute.xlu0 %1752
    %v1755 = vadd.f32 %v1745, %v1753
    %v1756 = vtanh.pop %v1755
    %1758 = vrot.lane.b32.xlu0 %v1756, 64
    %v1759 = vpop.permute.xlu0 %1758
    %v1761 = vmul.f32 %v1743, %v1759
    %1763 = vrot.lane.b32.xlu0 %v1642, 32
    %v1764 = vpop.permute.xlu0 %1763
    %vm1766 = vcmask 254976
    %1767 = vst.msk [vmem:[#allocation15] sm:$0x3] %vm1766, %v1764
    %1769 = vrot.lane.b32.xlu0 %v1636, 96
    %v1770 = vpop.permute.xlu0 %1769
    %1772 = vst.msk [vmem:[#allocation16] sm:$0x3] %vm1766, %v1770
    %1774 = vrot.lane.b32.xlu0 %v1761, 32
    %v1775 = vpop.permute.xlu0 %1774
    %s1777 = scalar_lea.vmem [#allocation15], 2
    %1778 = vst.msk [vmem:[%s1777] sm:$0x3] %vm1766, %v1775
    %1780 = vrot.lane.b32.xlu0 %v1755, 96
    %v1781 = vpop.permute.xlu0 %1780
    %s1783 = scalar_lea.vmem [#allocation16], 2
    %1784 = vst.msk [vmem:[%s1783] sm:$0x3] %vm1766, %v1781
    %v1785 = vld [vmem:[%s9] sm:$0xf]
    %v1786 = vld [vmem:[%s9 + $0x4] sm:$0xf]
    %v1787 = vld [vmem:[%s9 + $0x8] sm:$0xf]
    %v1788 = vld [vmem:[%s9 + $0xc] sm:$0xf]
    %v1789 = vpack.c.bf16 %v1761, %v1761
    %v1790 = vld [vmem:[%s13] sm:$0xf]
    %v1791 = vld [vmem:[%s13 + $0x4] sm:$0xf]
    %v1792 = vld [vmem:[%s13 + $0x8] sm:$0xf]
    %v1793 = vld [vmem:[%s13 + $0xc] sm:$0xf]
    %v1798 = vunpack.c.l.b16 %v1790
    %v1799 = vunpack.c.l.b16 %v1791
    %v1800 = vunpack.c.l.b16 %v1792
    %v1801 = vunpack.c.l.b16 %v1793
    %v1802 = vpack.c.b16 %v1799, %v1798
    %v1803 = vpack.c.b16 %v1801, %v1800
    %1806 = vmatprep.subr.bf16.mxu0 0
    %1807 = vmatpush1.bf16.msra.mxu0 %v1802
    %1808 = vmatprep.subr.bf16.mxu0 0
    %1809 = vmatpush1.bf16.msra.mxu0 %v1803
    %1810 = vmatprep.subr.bf16.mxu0 0
    %1811 = vmatpush1.bf16.msra.mxu0 0
    %1812 = vmatprep.subr.bf16.mxu0 0
    %1813 = vmatpush1.bf16.msra.mxu0 0
    %1814 = vmatprep.subr.bf16.mxu0 0
    %1815 = vmatpush1.bf16.msra.mxu0 0
    %1816 = vmatprep.subr.bf16.mxu0 0
    %1817 = vmatpush1.bf16.msra.mxu0 0
    %1818 = vmatprep.subr.bf16.mxu0 0
    %1819 = vmatpush1.bf16.msra.mxu0 0
    %1820 = vmatprep.subr.bf16.mxu0 0
    %1821 = vmatpush1.bf16.msra.mxu0 0
    %1822 = vmatprep.subr.bf16.mxu0 0
    %1823 = vmatpush1.bf16.msra.mxu0 0
    %1824 = vmatprep.subr.bf16.mxu0 0
    %1825 = vmatpush1.bf16.msra.mxu0 0
    %1826 = vmatprep.subr.bf16.mxu0 0
    %1827 = vmatpush1.bf16.msra.mxu0 0
    %1828 = vmatprep.subr.bf16.mxu0 0
    %1829 = vmatpush1.bf16.msra.mxu0 0
    %1830 = vmatprep.subr.bf16.mxu0 0
    %1831 = vmatpush1.bf16.msra.mxu0 0
    %1832 = vmatprep.subr.bf16.mxu0 0
    %1833 = vmatpush1.bf16.msra.mxu0 0
    %1834 = vmatprep.subr.bf16.mxu0 0
    %1835 = vmatpush1.bf16.msra.mxu0 0
    %1836 = vmatprep.subr.bf16.mxu0 0
    %1837 = vmatpush1.bf16.msra.mxu0 0
    %1838 = vmatprep.mubr.bf16.mxu0 0
    %1839 = vmatmul.mubr.bf16.gmra.mrb[0].mxu0 %v1695
    %v1840 = vpop.f32.mrb[0].mxu0
    %v1841 = vadd.f32 0.0, %v1840
    %v1842 = vpop.f32.mrb[0].mxu0
    %v1843 = vpop.f32.mrb[0].mxu0
    %v1844 = vpop.f32.mrb[0].mxu0
    %1845 = vdwg.mxu0
    %1847 = vrot.lane.b32.xlu0 %v1789, 32
    %v1848 = vpop.permute.xlu0 %1847
    %v1853 = vunpack.c.l.b16 %v1785
    %v1854 = vunpack.c.l.b16 %v1786
    %v1855 = vunpack.c.l.b16 %v1787
    %v1856 = vunpack.c.l.b16 %v1788
    %v1857 = vpack.c.b16 %v1854, %v1853
    %v1858 = vpack.c.b16 %v1856, %v1855
    %v1862 = vsel %vm241, %v1848, 0
    %1864 = vmatprep.subr.bf16.mxu0 0
    %1865 = vmatpush1.bf16.msra.mxu0 %v1857
    %1866 = vmatprep.subr.bf16.mxu0 0
    %1867 = vmatpush1.bf16.msra.mxu0 %v1858
    %1868 = vmatprep.subr.bf16.mxu0 0
    %1869 = vmatpush1.bf16.msra.mxu0 0
    %1870 = vmatprep.subr.bf16.mxu0 0
    %1871 = vmatpush1.bf16.msra.mxu0 0
    %1872 = vmatprep.subr.bf16.mxu0 0
    %1873 = vmatpush1.bf16.msra.mxu0 0
    %1874 = vmatprep.subr.bf16.mxu0 0
    %1875 = vmatpush1.bf16.msra.mxu0 0
    %1876 = vmatprep.subr.bf16.mxu0 0
    %1877 = vmatpush1.bf16.msra.mxu0 0
    %1878 = vmatprep.subr.bf16.mxu0 0
    %1879 = vmatpush1.bf16.msra.mxu0 0
    %1880 = vmatprep.subr.bf16.mxu0 0
    %1881 = vmatpush1.bf16.msra.mxu0 0
    %1882 = vmatprep.subr.bf16.mxu0 0
    %1883 = vmatpush1.bf16.msra.mxu0 0
    %1884 = vmatprep.subr.bf16.mxu0 0
    %1885 = vmatpush1.bf16.msra.mxu0 0
    %1886 = vmatprep.subr.bf16.mxu0 0
    %1887 = vmatpush1.bf16.msra.mxu0 0
    %1888 = vmatprep.subr.bf16.mxu0 0
    %1889 = vmatpush1.bf16.msra.mxu0 0
    %1890 = vmatprep.subr.bf16.mxu0 0
    %1891 = vmatpush1.bf16.msra.mxu0 0
    %1892 = vmatprep.subr.bf16.mxu0 0
    %1893 = vmatpush1.bf16.msra.mxu0 0
    %1894 = vmatprep.subr.bf16.mxu0 0
    %1895 = vmatpush1.bf16.msra.mxu0 0
    %1896 = vmatprep.mubr.bf16.mxu0 0
    %1897 = vmatmul.mubr.bf16.gmra.mrb[0].mxu0 %v1862
    %v1898 = vpop.f32.mrb[0].mxu0
    %v1899 = vadd.f32 %v1841, %v1898
    %v1900 = vpop.f32.mrb[0].mxu0
    %v1901 = vpop.f32.mrb[0].mxu0
    %v1902 = vpop.f32.mrb[0].mxu0
    %1903 = vdwg.mxu0
    %v1904 = vld [vmem:[%s10] sm:$0x3]
    %v1905 = vadd.f32 %v1899, %v1904
    %v1906 = vxor.u32 %v1905, 2147483648
    %v1907 = vmul.f32 %v1906, 1.442695
    %v1908 = vpow.pop %v1907
    %v1909 = vadd.f32 %v1908, 1.0
    %v1910 = vrcp.pop %v1909
    %v1911 = vmul.f32 1.0, %v1910
    %v1912 = vtanh.pop %v1905
    %v1913 = vmul.f32 %v1911, %v1636
    %1915 = vrot.lane.b32.xlu0 %v1912, 64
    %v1916 = vpop.permute.xlu0 %1915
    %v1918 = vmul.f32 %v1911, %v1916
    %1920 = vrot.lane.b32.xlu0 %v1918, 32
    %v1921 = vpop.permute.xlu0 %1920
    %v1923 = vadd.f32 %v1913, %v1921
    %v1924 = vtanh.pop %v1923
    %1926 = vrot.lane.b32.xlu0 %v1924, 64
    %v1927 = vpop.permute.xlu0 %1926
    %v1929 = vmul.f32 %v1911, %v1927
    %v1930 = vld [vmem:[#allocation12] sm:$0xf]
    %v1931 = vld [vmem:[#allocation12 + $0x4] sm:$0xf]
    %v1932 = vld [vmem:[#allocation12 + $0x8] sm:$0xf]
    %v1933 = vld [vmem:[#allocation12 + $0xc] sm:$0xf]
    %v1934 = vpack.c.bf16 %v1929, %v1929
    %v1935 = vld [vmem:[#allocation14] sm:$0xf]
    %v1936 = vld [vmem:[#allocation14 + $0x4] sm:$0xf]
    %v1937 = vld [vmem:[#allocation14 + $0x8] sm:$0xf]
    %v1938 = vld [vmem:[#allocation14 + $0xc] sm:$0xf]
    %v1943 = vunpack.c.l.b16 %v1935
    %v1944 = vunpack.c.l.b16 %v1936
    %v1945 = vunpack.c.l.b16 %v1937
    %v1946 = vunpack.c.l.b16 %v1938
    %v1947 = vpack.c.b16 %v1944, %v1943
    %v1948 = vpack.c.b16 %v1946, %v1945
    %1951 = vmatprep.subr.bf16.mxu0 0
    %1952 = vmatpush1.bf16.msra.mxu0 %v1947
    %1953 = vmatprep.subr.bf16.mxu0 0
    %1954 = vmatpush1.bf16.msra.mxu0 %v1948
    %1955 = vmatprep.subr.bf16.mxu0 0
    %1956 = vmatpush1.bf16.msra.mxu0 0
    %1957 = vmatprep.subr.bf16.mxu0 0
    %1958 = vmatpush1.bf16.msra.mxu0 0
    %1959 = vmatprep.subr.bf16.mxu0 0
    %1960 = vmatpush1.bf16.msra.mxu0 0
    %1961 = vmatprep.subr.bf16.mxu0 0
    %1962 = vmatpush1.bf16.msra.mxu0 0
    %1963 = vmatprep.subr.bf16.mxu0 0
    %1964 = vmatpush1.bf16.msra.mxu0 0
    %1965 = vmatprep.subr.bf16.mxu0 0
    %1966 = vmatpush1.bf16.msra.mxu0 0
    %1967 = vmatprep.subr.bf16.mxu0 0
    %1968 = vmatpush1.bf16.msra.mxu0 0
    %1969 = vmatprep.subr.bf16.mxu0 0
    %1970 = vmatpush1.bf16.msra.mxu0 0
    %1971 = vmatprep.subr.bf16.mxu0 0
    %1972 = vmatpush1.bf16.msra.mxu0 0
    %1973 = vmatprep.subr.bf16.mxu0 0
    %1974 = vmatpush1.bf16.msra.mxu0 0
    %1975 = vmatprep.subr.bf16.mxu0 0
    %1976 = vmatpush1.bf16.msra.mxu0 0
    %1977 = vmatprep.subr.bf16.mxu0 0
    %1978 = vmatpush1.bf16.msra.mxu0 0
    %1979 = vmatprep.subr.bf16.mxu0 0
    %1980 = vmatpush1.bf16.msra.mxu0 0
    %1981 = vmatprep.subr.bf16.mxu0 0
    %1982 = vmatpush1.bf16.msra.mxu0 0
    %1983 = vmatprep.mubr.bf16.mxu0 0
    %1984 = vmatmul.mubr.bf16.gmra.mrb[0].mxu0 %v1862
    %v1985 = vpop.f32.mrb[0].mxu0
    %v1986 = vadd.f32 0.0, %v1985
    %v1987 = vpop.f32.mrb[0].mxu0
    %v1988 = vpop.f32.mrb[0].mxu0
    %v1989 = vpop.f32.mrb[0].mxu0
    %1990 = vdwg.mxu0
    %1992 = vrot.lane.b32.xlu0 %v1934, 32
    %v1993 = vpop.permute.xlu0 %1992
    %v1998 = vunpack.c.l.b16 %v1930
    %v1999 = vunpack.c.l.b16 %v1931
    %v2000 = vunpack.c.l.b16 %v1932
    %v2001 = vunpack.c.l.b16 %v1933
    %v2002 = vpack.c.b16 %v1999, %v1998
    %v2003 = vpack.c.b16 %v2001, %v2000
    %v2007 = vsel %vm241, %v1993, 0
    %2009 = vmatprep.subr.bf16.mxu0 0
    %2010 = vmatpush1.bf16.msra.mxu0 %v2002
    %2011 = vmatprep.subr.bf16.mxu0 0
    %2012 = vmatpush1.bf16.msra.mxu0 %v2003
    %2013 = vmatprep.subr.bf16.mxu0 0
    %2014 = vmatpush1.bf16.msra.mxu0 0
    %2015 = vmatprep.subr.bf16.mxu0 0
    %2016 = vmatpush1.bf16.msra.mxu0 0
    %2017 = vmatprep.subr.bf16.mxu0 0
    %2018 = vmatpush1.bf16.msra.mxu0 0
    %2019 = vmatprep.subr.bf16.mxu0 0
    %2020 = vmatpush1.bf16.msra.mxu0 0
    %2021 = vmatprep.subr.bf16.mxu0 0
    %2022 = vmatpush1.bf16.msra.mxu0 0
    %2023 = vmatprep.subr.bf16.mxu0 0
    %2024 = vmatpush1.bf16.msra.mxu0 0
    %2025 = vmatprep.subr.bf16.mxu0 0
    %2026 = vmatpush1.bf16.msra.mxu0 0
    %2027 = vmatprep.subr.bf16.mxu0 0
    %2028 = vmatpush1.bf16.msra.mxu0 0
    %2029 = vmatprep.subr.bf16.mxu0 0
    %2030 = vmatpush1.bf16.msra.mxu0 0
    %2031 = vmatprep.subr.bf16.mxu0 0
    %2032 = vmatpush1.bf16.msra.mxu0 0
    %2033 = vmatprep.subr.bf16.mxu0 0
    %2034 = vmatpush1.bf16.msra.mxu0 0
    %2035 = vmatprep.subr.bf16.mxu0 0
    %2036 = vmatpush1.bf16.msra.mxu0 0
    %2037 = vmatprep.subr.bf16.mxu0 0
    %2038 = vmatpush1.bf16.msra.mxu0 0
    %2039 = vmatprep.subr.bf16.mxu0 0
    %2040 = vmatpush1.bf16.msra.mxu0 0
    %2041 = vmatprep.mubr.bf16.mxu0 0
    %2042 = vmatmul.mubr.bf16.gmra.mrb[0].mxu0 %v2007
    %v2043 = vpop.f32.mrb[0].mxu0
    %v2044 = vadd.f32 %v1986, %v2043
    %v2045 = vpop.f32.mrb[0].mxu0
    %v2046 = vpop.f32.mrb[0].mxu0
    %v2047 = vpop.f32.mrb[0].mxu0
    %2048 = vdwg.mxu0
    %v2049 = vld [vmem:[%s16] sm:$0x3]
    %v2050 = vadd.f32 %v2044, %v2049
    %v2051 = vxor.u32 %v2050, 2147483648
    %v2052 = vmul.f32 %v2051, 1.442695
    %v2053 = vpow.pop %v2052
    %v2054 = vadd.f32 %v2053, 1.0
    %v2055 = vrcp.pop %v2054
    %v2056 = vmul.f32 1.0, %v2055
    %v2057 = vtanh.pop %v2050
    %v2058 = vmul.f32 %v2056, %v1755
    %2060 = vrot.lane.b32.xlu0 %v2057, 64
    %v2061 = vpop.permute.xlu0 %2060
    %v2063 = vmul.f32 %v2056, %v2061
    %2065 = vrot.lane.b32.xlu0 %v2063, 32
    %v2066 = vpop.permute.xlu0 %2065
    %v2068 = vadd.f32 %v2058, %v2066
    %v2069 = vtanh.pop %v2068
    %2071 = vrot.lane.b32.xlu0 %v2069, 64
    %v2072 = vpop.permute.xlu0 %2071
    %v2074 = vmul.f32 %v2056, %v2072
    %v2075 = vld [vmem:[%s11] sm:$0xf]
    %v2076 = vld [vmem:[%s11 + $0x4] sm:$0xf]
    %v2077 = vld [vmem:[%s11 + $0x8] sm:$0xf]
    %v2078 = vld [vmem:[%s11 + $0xc] sm:$0xf]
    %v2079 = vpack.c.bf16 %v2074, %v2074
    %2080 = vmatprep.subr.bf16.mxu0 0
    %2081 = vmatpush1.bf16.msra.mxu0 %v1802
    %2082 = vmatprep.subr.bf16.mxu0 0
    %2083 = vmatpush1.bf16.msra.mxu0 %v1803
    %2084 = vmatprep.subr.bf16.mxu0 0
    %2085 = vmatpush1.bf16.msra.mxu0 0
    %2086 = vmatprep.subr.bf16.mxu0 0
    %2087 = vmatpush1.bf16.msra.mxu0 0
    %2088 = vmatprep.subr.bf16.mxu0 0
    %2089 = vmatpush1.bf16.msra.mxu0 0
    %2090 = vmatprep.subr.bf16.mxu0 0
    %2091 = vmatpush1.bf16.msra.mxu0 0
    %2092 = vmatprep.subr.bf16.mxu0 0
    %2093 = vmatpush1.bf16.msra.mxu0 0
    %2094 = vmatprep.subr.bf16.mxu0 0
    %2095 = vmatpush1.bf16.msra.mxu0 0
    %2096 = vmatprep.subr.bf16.mxu0 0
    %2097 = vmatpush1.bf16.msra.mxu0 0
    %2098 = vmatprep.subr.bf16.mxu0 0
    %2099 = vmatpush1.bf16.msra.mxu0 0
    %2100 = vmatprep.subr.bf16.mxu0 0
    %2101 = vmatpush1.bf16.msra.mxu0 0
    %2102 = vmatprep.subr.bf16.mxu0 0
    %2103 = vmatpush1.bf16.msra.mxu0 0
    %2104 = vmatprep.subr.bf16.mxu0 0
    %2105 = vmatpush1.bf16.msra.mxu0 0
    %2106 = vmatprep.subr.bf16.mxu0 0
    %2107 = vmatpush1.bf16.msra.mxu0 0
    %2108 = vmatprep.subr.bf16.mxu0 0
    %2109 = vmatpush1.bf16.msra.mxu0 0
    %2110 = vmatprep.subr.bf16.mxu0 0
    %2111 = vmatpush1.bf16.msra.mxu0 0
    %2112 = vmatprep.mubr.bf16.mxu0 0
    %2113 = vmatmul.mubr.bf16.gmra.mrb[0].mxu0 %v2007
    %v2114 = vpop.f32.mrb[0].mxu0
    %v2115 = vadd.f32 0.0, %v2114
    %v2116 = vpop.f32.mrb[0].mxu0
    %v2117 = vpop.f32.mrb[0].mxu0
    %v2118 = vpop.f32.mrb[0].mxu0
    %2119 = vdwg.mxu0
    %2121 = vrot.lane.b32.xlu0 %v2079, 32
    %v2122 = vpop.permute.xlu0 %2121
    %v2127 = vunpack.c.l.b16 %v2075
    %v2128 = vunpack.c.l.b16 %v2076
    %v2129 = vunpack.c.l.b16 %v2077
    %v2130 = vunpack.c.l.b16 %v2078
    %v2131 = vpack.c.b16 %v2128, %v2127
    %v2132 = vpack.c.b16 %v2130, %v2129
    %v2136 = vsel %vm241, %v2122, 0
    %2138 = vmatprep.subr.bf16.mxu0 0
    %2139 = vmatpush1.bf16.msra.mxu0 %v2131
    %2140 = vmatprep.subr.bf16.mxu0 0
    %2141 = vmatpush1.bf16.msra.mxu0 %v2132
    %2142 = vmatprep.subr.bf16.mxu0 0
    %2143 = vmatpush1.bf16.msra.mxu0 0
    %2144 = vmatprep.subr.bf16.mxu0 0
    %2145 = vmatpush1.bf16.msra.mxu0 0
    %2146 = vmatprep.subr.bf16.mxu0 0
    %2147 = vmatpush1.bf16.msra.mxu0 0
    %2148 = vmatprep.subr.bf16.mxu0 0
    %2149 = vmatpush1.bf16.msra.mxu0 0
    %2150 = vmatprep.subr.bf16.mxu0 0
    %2151 = vmatpush1.bf16.msra.mxu0 0
    %2152 = vmatprep.subr.bf16.mxu0 0
    %2153 = vmatpush1.bf16.msra.mxu0 0
    %2154 = vmatprep.subr.bf16.mxu0 0
    %2155 = vmatpush1.bf16.msra.mxu0 0
    %2156 = vmatprep.subr.bf16.mxu0 0
    %2157 = vmatpush1.bf16.msra.mxu0 0
    %2158 = vmatprep.subr.bf16.mxu0 0
    %2159 = vmatpush1.bf16.msra.mxu0 0
    %2160 = vmatprep.subr.bf16.mxu0 0
    %2161 = vmatpush1.bf16.msra.mxu0 0
    %2162 = vmatprep.subr.bf16.mxu0 0
    %2163 = vmatpush1.bf16.msra.mxu0 0
    %2164 = vmatprep.subr.bf16.mxu0 0
    %2165 = vmatpush1.bf16.msra.mxu0 0
    %2166 = vmatprep.subr.bf16.mxu0 0
    %2167 = vmatpush1.bf16.msra.mxu0 0
    %2168 = vmatprep.subr.bf16.mxu0 0
    %2169 = vmatpush1.bf16.msra.mxu0 0
    %2170 = vmatprep.mubr.bf16.mxu0 0
    %2171 = vmatmul.mubr.bf16.gmra.mrb[0].mxu0 %v2136
    %v2172 = vpop.f32.mrb[0].mxu0
    %v2173 = vadd.f32 %v2115, %v2172
    %v2174 = vpop.f32.mrb[0].mxu0
    %v2175 = vpop.f32.mrb[0].mxu0
    %v2176 = vpop.f32.mrb[0].mxu0
    %2177 = vdwg.mxu0
    %v2178 = vld [vmem:[#allocation11] sm:$0x3]
    %v2179 = vadd.f32 %v2173, %v2178
    %v2180 = vxor.u32 %v2179, 2147483648
    %v2181 = vmul.f32 %v2180, 1.442695
    %v2182 = vpow.pop %v2181
    %v2183 = vadd.f32 %v2182, 1.0
    %v2184 = vrcp.pop %v2183
    %v2185 = vmul.f32 1.0, %v2184
    %v2186 = vtanh.pop %v2179
    %v2187 = vmul.f32 %v2185, %v1923
    %2189 = vrot.lane.b32.xlu0 %v2186, 64
    %v2190 = vpop.permute.xlu0 %2189
    %v2192 = vmul.f32 %v2185, %v2190
    %2194 = vrot.lane.b32.xlu0 %v2192, 32
    %v2195 = vpop.permute.xlu0 %2194
    %v2197 = vadd.f32 %v2187, %v2195
    %v2198 = vtanh.pop %v2197
    %2200 = vrot.lane.b32.xlu0 %v2198, 64
    %v2201 = vpop.permute.xlu0 %2200
    %v2203 = vmul.f32 %v2185, %v2201
    %v2204 = vpack.c.bf16 %v2203, %v2203
    %2205 = vmatprep.subr.bf16.mxu0 0
    %2206 = vmatpush1.bf16.msra.mxu0 %v1947
    %2207 = vmatprep.subr.bf16.mxu0 0
    %2208 = vmatpush1.bf16.msra.mxu0 %v1948
    %2209 = vmatprep.subr.bf16.mxu0 0
    %2210 = vmatpush1.bf16.msra.mxu0 0
    %2211 = vmatprep.subr.bf16.mxu0 0
    %2212 = vmatpush1.bf16.msra.mxu0 0
    %2213 = vmatprep.subr.bf16.mxu0 0
    %2214 = vmatpush1.bf16.msra.mxu0 0
    %2215 = vmatprep.subr.bf16.mxu0 0
    %2216 = vmatpush1.bf16.msra.mxu0 0
    %2217 = vmatprep.subr.bf16.mxu0 0
    %2218 = vmatpush1.bf16.msra.mxu0 0
    %2219 = vmatprep.subr.bf16.mxu0 0
    %2220 = vmatpush1.bf16.msra.mxu0 0
    %2221 = vmatprep.subr.bf16.mxu0 0
    %2222 = vmatpush1.bf16.msra.mxu0 0
    %2223 = vmatprep.subr.bf16.mxu0 0
    %2224 = vmatpush1.bf16.msra.mxu0 0
    %2225 = vmatprep.subr.bf16.mxu0 0
    %2226 = vmatpush1.bf16.msra.mxu0 0
    %2227 = vmatprep.subr.bf16.mxu0 0
    %2228 = vmatpush1.bf16.msra.mxu0 0
    %2229 = vmatprep.subr.bf16.mxu0 0
    %2230 = vmatpush1.bf16.msra.mxu0 0
    %2231 = vmatprep.subr.bf16.mxu0 0
    %2232 = vmatpush1.bf16.msra.mxu0 0
    %2233 = vmatprep.subr.bf16.mxu0 0
    %2234 = vmatpush1.bf16.msra.mxu0 0
    %2235 = vmatprep.subr.bf16.mxu0 0
    %2236 = vmatpush1.bf16.msra.mxu0 0
    %2237 = vmatprep.mubr.bf16.mxu0 0
    %2238 = vmatmul.mubr.bf16.gmra.mrb[0].mxu0 %v2136
    %v2239 = vpop.f32.mrb[0].mxu0
    %v2240 = vadd.f32 0.0, %v2239
    %v2241 = vpop.f32.mrb[0].mxu0
    %v2242 = vpop.f32.mrb[0].mxu0
    %v2243 = vpop.f32.mrb[0].mxu0
    %2244 = vdwg.mxu0
    %2246 = vrot.lane.b32.xlu0 %v2204, 32
    %v2247 = vpop.permute.xlu0 %2246
    %v2249 = vsel %vm241, %v2247, 0
    %2251 = vmatprep.subr.bf16.mxu0 0
    %2252 = vmatpush1.bf16.msra.mxu0 %v2002
    %2253 = vmatprep.subr.bf16.mxu0 0
    %2254 = vmatpush1.bf16.msra.mxu0 %v2003
    %2255 = vmatprep.subr.bf16.mxu0 0
    %2256 = vmatpush1.bf16.msra.mxu0 0
    %2257 = vmatprep.subr.bf16.mxu0 0
    %2258 = vmatpush1.bf16.msra.mxu0 0
    %2259 = vmatprep.subr.bf16.mxu0 0
    %2260 = vmatpush1.bf16.msra.mxu0 0
    %2261 = vmatprep.subr.bf16.mxu0 0
    %2262 = vmatpush1.bf16.msra.mxu0 0
    %2263 = vmatprep.subr.bf16.mxu0 0
    %2264 = vmatpush1.bf16.msra.mxu0 0
    %2265 = vmatprep.subr.bf16.mxu0 0
    %2266 = vmatpush1.bf16.msra.mxu0 0
    %2267 = vmatprep.subr.bf16.mxu0 0
    %2268 = vmatpush1.bf16.msra.mxu0 0
    %2269 = vmatprep.subr.bf16.mxu0 0
    %2270 = vmatpush1.bf16.msra.mxu0 0
    %2271 = vmatprep.subr.bf16.mxu0 0
    %2272 = vmatpush1.bf16.msra.mxu0 0
    %2273 = vmatprep.subr.bf16.mxu0 0
    %2274 = vmatpush1.bf16.msra.mxu0 0
    %2275 = vmatprep.subr.bf16.mxu0 0
    %2276 = vmatpush1.bf16.msra.mxu0 0
    %2277 = vmatprep.subr.bf16.mxu0 0
    %2278 = vmatpush1.bf16.msra.mxu0 0
    %2279 = vmatprep.subr.bf16.mxu0 0
    %2280 = vmatpush1.bf16.msra.mxu0 0
    %2281 = vmatprep.subr.bf16.mxu0 0
    %2282 = vmatpush1.bf16.msra.mxu0 0
    %2283 = vmatprep.mubr.bf16.mxu0 0
    %2284 = vmatmul.mubr.bf16.gmra.mrb[0].mxu0 %v2249
    %v2285 = vpop.f32.mrb[0].mxu0
    %v2286 = vadd.f32 %v2240, %v2285
    %v2287 = vpop.f32.mrb[0].mxu0
    %v2288 = vpop.f32.mrb[0].mxu0
    %v2289 = vpop.f32.mrb[0].mxu0
    %2290 = vdwg.mxu0
    %v2291 = vadd.f32 %v2286, %v2049
    %v2292 = vxor.u32 %v2291, 2147483648
    %v2293 = vmul.f32 %v2292, 1.442695
    %v2294 = vpow.pop %v2293
    %v2295 = vadd.f32 %v2294, 1.0
    %v2296 = vrcp.pop %v2295
    %v2297 = vmul.f32 1.0, %v2296
    %v2298 = vtanh.pop %v2291
    %v2299 = vmul.f32 %v2297, %v2068
    %2301 = vrot.lane.b32.xlu0 %v2298, 64
    %v2302 = vpop.permute.xlu0 %2301
    %v2304 = vmul.f32 %v2297, %v2302
    %2306 = vrot.lane.b32.xlu0 %v2304, 32
    %v2307 = vpop.permute.xlu0 %2306
    %v2309 = vadd.f32 %v2299, %v2307
    %v2310 = vtanh.pop %v2309
    %2312 = vrot.lane.b32.xlu0 %v2310, 64
    %v2313 = vpop.permute.xlu0 %2312
    %v2315 = vmul.f32 %v2297, %v2313
    %v2316 = vpack.c.bf16 %v2315, %v2315
    %2317 = vmatprep.subr.bf16.mxu0 0
    %2318 = vmatpush1.bf16.msra.mxu0 %v1802
    %2319 = vmatprep.subr.bf16.mxu0 0
    %2320 = vmatpush1.bf16.msra.mxu0 %v1803
    %2321 = vmatprep.subr.bf16.mxu0 0
    %2322 = vmatpush1.bf16.msra.mxu0 0
    %2323 = vmatprep.subr.bf16.mxu0 0
    %2324 = vmatpush1.bf16.msra.mxu0 0
    %2325 = vmatprep.subr.bf16.mxu0 0
    %2326 = vmatpush1.bf16.msra.mxu0 0
    %2327 = vmatprep.subr.bf16.mxu0 0
    %2328 = vmatpush1.bf16.msra.mxu0 0
    %2329 = vmatprep.subr.bf16.mxu0 0
    %2330 = vmatpush1.bf16.msra.mxu0 0
    %2331 = vmatprep.subr.bf16.mxu0 0
    %2332 = vmatpush1.bf16.msra.mxu0 0
    %2333 = vmatprep.subr.bf16.mxu0 0
    %2334 = vmatpush1.bf16.msra.mxu0 0
    %2335 = vmatprep.subr.bf16.mxu0 0
    %2336 = vmatpush1.bf16.msra.mxu0 0
    %2337 = vmatprep.subr.bf16.mxu0 0
    %2338 = vmatpush1.bf16.msra.mxu0 0
    %2339 = vmatprep.subr.bf16.mxu0 0
    %2340 = vmatpush1.bf16.msra.mxu0 0
    %2341 = vmatprep.subr.bf16.mxu0 0
    %2342 = vmatpush1.bf16.msra.mxu0 0
    %2343 = vmatprep.subr.bf16.mxu0 0
    %2344 = vmatpush1.bf16.msra.mxu0 0
    %2345 = vmatprep.subr.bf16.mxu0 0
    %2346 = vmatpush1.bf16.msra.mxu0 0
    %2347 = vmatprep.subr.bf16.mxu0 0
    %2348 = vmatpush1.bf16.msra.mxu0 0
    %2349 = vmatprep.mubr.bf16.mxu0 0
    %2350 = vmatmul.mubr.bf16.gmra.mrb[0].mxu0 %v2249
    %v2351 = vpop.f32.mrb[0].mxu0
    %v2352 = vadd.f32 0.0, %v2351
    %v2353 = vpop.f32.mrb[0].mxu0
    %v2354 = vpop.f32.mrb[0].mxu0
    %v2355 = vpop.f32.mrb[0].mxu0
    %2356 = vdwg.mxu0
    %2358 = vrot.lane.b32.xlu0 %v2316, 32
    %v2359 = vpop.permute.xlu0 %2358
    %v2361 = vsel %vm241, %v2359, 0
    %2363 = vmatprep.subr.bf16.mxu0 0
    %2364 = vmatpush1.bf16.msra.mxu0 %v2131
    %2365 = vmatprep.subr.bf16.mxu0 0
    %2366 = vmatpush1.bf16.msra.mxu0 %v2132
    %2367 = vmatprep.subr.bf16.mxu0 0
    %2368 = vmatpush1.bf16.msra.mxu0 0
    %2369 = vmatprep.subr.bf16.mxu0 0
    %2370 = vmatpush1.bf16.msra.mxu0 0
    %2371 = vmatprep.subr.bf16.mxu0 0
    %2372 = vmatpush1.bf16.msra.mxu0 0
    %2373 = vmatprep.subr.bf16.mxu0 0
    %2374 = vmatpush1.bf16.msra.mxu0 0
    %2375 = vmatprep.subr.bf16.mxu0 0
    %2376 = vmatpush1.bf16.msra.mxu0 0
    %2377 = vmatprep.subr.bf16.mxu0 0
    %2378 = vmatpush1.bf16.msra.mxu0 0
    %2379 = vmatprep.subr.bf16.mxu0 0
    %2380 = vmatpush1.bf16.msra.mxu0 0
    %2381 = vmatprep.subr.bf16.mxu0 0
    %2382 = vmatpush1.bf16.msra.mxu0 0
    %2383 = vmatprep.subr.bf16.mxu0 0
    %2384 = vmatpush1.bf16.msra.mxu0 0
    %2385 = vmatprep.subr.bf16.mxu0 0
    %2386 = vmatpush1.bf16.msra.mxu0 0
    %2387 = vmatprep.subr.bf16.mxu0 0
    %2388 = vmatpush1.bf16.msra.mxu0 0
    %2389 = vmatprep.subr.bf16.mxu0 0
    %2390 = vmatpush1.bf16.msra.mxu0 0
    %2391 = vmatprep.subr.bf16.mxu0 0
    %2392 = vmatpush1.bf16.msra.mxu0 0
    %2393 = vmatprep.subr.bf16.mxu0 0
    %2394 = vmatpush1.bf16.msra.mxu0 0
    %2395 = vmatprep.mubr.bf16.mxu0 0
    %2396 = vmatmul.mubr.bf16.gmra.mrb[0].mxu0 %v2361
    %v2397 = vpop.f32.mrb[0].mxu0
    %v2398 = vadd.f32 %v2352, %v2397
    %v2399 = vpop.f32.mrb[0].mxu0
    %v2400 = vpop.f32.mrb[0].mxu0
    %v2401 = vpop.f32.mrb[0].mxu0
    %2402 = vdwg.mxu0
    %v2403 = vadd.f32 %v2398, %v2178
    %v2404 = vxor.u32 %v2403, 2147483648
    %v2405 = vmul.f32 %v2404, 1.442695
    %v2406 = vpow.pop %v2405
    %v2407 = vadd.f32 %v2406, 1.0
    %v2408 = vrcp.pop %v2407
    %v2409 = vmul.f32 1.0, %v2408
    %v2410 = vtanh.pop %v2403
    %v2411 = vmul.f32 %v2409, %v2197
    %2413 = vrot.lane.b32.xlu0 %v2410, 64
    %v2414 = vpop.permute.xlu0 %2413
    %v2416 = vmul.f32 %v2409, %v2414
    %2418 = vrot.lane.b32.xlu0 %v2416, 32
    %v2419 = vpop.permute.xlu0 %2418
    %v2421 = vadd.f32 %v2411, %v2419
    %v2422 = vtanh.pop %v2421
    %2424 = vrot.lane.b32.xlu0 %v2422, 64
    %v2425 = vpop.permute.xlu0 %2424
    %v2427 = vmul.f32 %v2409, %v2425
    %v2428 = vpack.c.bf16 %v2427, %v2427
    %2429 = vmatprep.subr.bf16.mxu0 0
    %2430 = vmatpush1.bf16.msra.mxu0 %v1947
    %2431 = vmatprep.subr.bf16.mxu0 0
    %2432 = vmatpush1.bf16.msra.mxu0 %v1948
    %2433 = vmatprep.subr.bf16.mxu0 0
    %2434 = vmatpush1.bf16.msra.mxu0 0
    %2435 = vmatprep.subr.bf16.mxu0 0
    %2436 = vmatpush1.bf16.msra.mxu0 0
    %2437 = vmatprep.subr.bf16.mxu0 0
    %2438 = vmatpush1.bf16.msra.mxu0 0
    %2439 = vmatprep.subr.bf16.mxu0 0
    %2440 = vmatpush1.bf16.msra.mxu0 0
    %2441 = vmatprep.subr.bf16.mxu0 0
    %2442 = vmatpush1.bf16.msra.mxu0 0
    %2443 = vmatprep.subr.bf16.mxu0 0
    %2444 = vmatpush1.bf16.msra.mxu0 0
    %2445 = vmatprep.subr.bf16.mxu0 0
    %2446 = vmatpush1.bf16.msra.mxu0 0
    %2447 = vmatprep.subr.bf16.mxu0 0
    %2448 = vmatpush1.bf16.msra.mxu0 0
    %2449 = vmatprep.subr.bf16.mxu0 0
    %2450 = vmatpush1.bf16.msra.mxu0 0
    %2451 = vmatprep.subr.bf16.mxu0 0
    %2452 = vmatpush1.bf16.msra.mxu0 0
    %2453 = vmatprep.subr.bf16.mxu0 0
    %2454 = vmatpush1.bf16.msra.mxu0 0
    %2455 = vmatprep.subr.bf16.mxu0 0
    %2456 = vmatpush1.bf16.msra.mxu0 0
    %2457 = vmatprep.subr.bf16.mxu0 0
    %2458 = vmatpush1.bf16.msra.mxu0 0
    %2459 = vmatprep.subr.bf16.mxu0 0
    %2460 = vmatpush1.bf16.msra.mxu0 0
    %2461 = vmatprep.mubr.bf16.mxu0 0
    %2462 = vmatmul.mubr.bf16.gmra.mrb[0].mxu0 %v2361
    %v2463 = vpop.f32.mrb[0].mxu0
    %v2464 = vadd.f32 0.0, %v2463
    %v2465 = vpop.f32.mrb[0].mxu0
    %v2466 = vpop.f32.mrb[0].mxu0
    %v2467 = vpop.f32.mrb[0].mxu0
    %2468 = vdwg.mxu0
    %2470 = vrot.lane.b32.xlu0 %v2428, 32
    %v2471 = vpop.permute.xlu0 %2470
    %v2473 = vsel %vm241, %v2471, 0
    %2475 = vmatprep.subr.bf16.mxu0 0
    %2476 = vmatpush1.bf16.msra.mxu0 %v2002
    %2477 = vmatprep.subr.bf16.mxu0 0
    %2478 = vmatpush1.bf16.msra.mxu0 %v2003
    %2479 = vmatprep.subr.bf16.mxu0 0
    %2480 = vmatpush1.bf16.msra.mxu0 0
    %2481 = vmatprep.subr.bf16.mxu0 0
    %2482 = vmatpush1.bf16.msra.mxu0 0
    %2483 = vmatprep.subr.bf16.mxu0 0
    %2484 = vmatpush1.bf16.msra.mxu0 0
    %2485 = vmatprep.subr.bf16.mxu0 0
    %2486 = vmatpush1.bf16.msra.mxu0 0
    %2487 = vmatprep.subr.bf16.mxu0 0
    %2488 = vmatpush1.bf16.msra.mxu0 0
    %2489 = vmatprep.subr.bf16.mxu0 0
    %2490 = vmatpush1.bf16.msra.mxu0 0
    %2491 = vmatprep.subr.bf16.mxu0 0
    %2492 = vmatpush1.bf16.msra.mxu0 0
    %2493 = vmatprep.subr.bf16.mxu0 0
    %2494 = vmatpush1.bf16.msra.mxu0 0
    %2495 = vmatprep.subr.bf16.mxu0 0
    %2496 = vmatpush1.bf16.msra.mxu0 0
    %2497 = vmatprep.subr.bf16.mxu0 0
    %2498 = vmatpush1.bf16.msra.mxu0 0
    %2499 = vmatprep.subr.bf16.mxu0 0
    %2500 = vmatpush1.bf16.msra.mxu0 0
    %2501 = vmatprep.subr.bf16.mxu0 0
    %2502 = vmatpush1.bf16.msra.mxu0 0
    %2503 = vmatprep.subr.bf16.mxu0 0
    %2504 = vmatpush1.bf16.msra.mxu0 0
    %2505 = vmatprep.subr.bf16.mxu0 0
    %2506 = vmatpush1.bf16.msra.mxu0 0
    %2507 = vmatprep.mubr.bf16.mxu0 0
    %2508 = vmatmul.mubr.bf16.gmra.mrb[0].mxu0 %v2473
    %v2509 = vpop.f32.mrb[0].mxu0
    %v2510 = vadd.f32 %v2464, %v2509
    %v2511 = vpop.f32.mrb[0].mxu0
    %v2512 = vpop.f32.mrb[0].mxu0
    %v2513 = vpop.f32.mrb[0].mxu0
    %2514 = vdwg.mxu0
    %v2515 = vadd.f32 %v2510, %v2049
    %v2516 = vxor.u32 %v2515, 2147483648
    %v2517 = vmul.f32 %v2516, 1.442695
    %v2518 = vpow.pop %v2517
    %v2519 = vadd.f32 %v2518, 1.0
    %v2520 = vrcp.pop %v2519
    %v2521 = vmul.f32 1.0, %v2520
    %v2522 = vtanh.pop %v2515
    %v2523 = vmul.f32 %v2521, %v2309
    %2525 = vrot.lane.b32.xlu0 %v2522, 64
    %v2526 = vpop.permute.xlu0 %2525
    %v2528 = vmul.f32 %v2521, %v2526
    %2530 = vrot.lane.b32.xlu0 %v2528, 32
    %v2531 = vpop.permute.xlu0 %2530
    %v2533 = vadd.f32 %v2523, %v2531
    %v2534 = vtanh.pop %v2533
    %2536 = vrot.lane.b32.xlu0 %v2534, 64
    %v2537 = vpop.permute.xlu0 %2536
    %v2539 = vmul.f32 %v2521, %v2537
    %v2540 = vpack.c.bf16 %v2539, %v2539
    %2541 = vmatprep.subr.bf16.mxu0 0
    %2542 = vmatpush1.bf16.msra.mxu0 %v1802
    %2543 = vmatprep.subr.bf16.mxu0 0
    %2544 = vmatpush1.bf16.msra.mxu0 %v1803
    %2545 = vmatprep.subr.bf16.mxu0 0
    %2546 = vmatpush1.bf16.msra.mxu0 0
    %2547 = vmatprep.subr.bf16.mxu0 0
    %2548 = vmatpush1.bf16.msra.mxu0 0
    %2549 = vmatprep.subr.bf16.mxu0 0
    %2550 = vmatpush1.bf16.msra.mxu0 0
    %2551 = vmatprep.subr.bf16.mxu0 0
    %2552 = vmatpush1.bf16.msra.mxu0 0
    %2553 = vmatprep.subr.bf16.mxu0 0
    %2554 = vmatpush1.bf16.msra.mxu0 0
    %2555 = vmatprep.subr.bf16.mxu0 0
    %2556 = vmatpush1.bf16.msra.mxu0 0
    %2557 = vmatprep.subr.bf16.mxu0 0
    %2558 = vmatpush1.bf16.msra.mxu0 0
    %2559 = vmatprep.subr.bf16.mxu0 0
    %2560 = vmatpush1.bf16.msra.mxu0 0
    %2561 = vmatprep.subr.bf16.mxu0 0
    %2562 = vmatpush1.bf16.msra.mxu0 0
    %2563 = vmatprep.subr.bf16.mxu0 0
    %2564 = vmatpush1.bf16.msra.mxu0 0
    %2565 = vmatprep.subr.bf16.mxu0 0
    %2566 = vmatpush1.bf16.msra.mxu0 0
    %2567 = vmatprep.subr.bf16.mxu0 0
    %2568 = vmatpush1.bf16.msra.mxu0 0
    %2569 = vmatprep.subr.bf16.mxu0 0
    %2570 = vmatpush1.bf16.msra.mxu0 0
    %2571 = vmatprep.subr.bf16.mxu0 0
    %2572 = vmatpush1.bf16.msra.mxu0 0
    %2573 = vmatprep.mubr.bf16.mxu0 0
    %2574 = vmatmul.mubr.bf16.gmra.mrb[0].mxu0 %v2473
    %v2575 = vpop.f32.mrb[0].mxu0
    %v2576 = vadd.f32 0.0, %v2575
    %v2577 = vpop.f32.mrb[0].mxu0
    %v2578 = vpop.f32.mrb[0].mxu0
    %v2579 = vpop.f32.mrb[0].mxu0
    %2580 = vdwg.mxu0
    %2582 = vrot.lane.b32.xlu0 %v2540, 32
    %v2583 = vpop.permute.xlu0 %2582
    %v2585 = vsel %vm241, %v2583, 0
    %2587 = vmatprep.subr.bf16.mxu0 0
    %2588 = vmatpush1.bf16.msra.mxu0 %v2131
    %2589 = vmatprep.subr.bf16.mxu0 0
    %2590 = vmatpush1.bf16.msra.mxu0 %v2132
    %2591 = vmatprep.subr.bf16.mxu0 0
    %2592 = vmatpush1.bf16.msra.mxu0 0
    %2593 = vmatprep.subr.bf16.mxu0 0
    %2594 = vmatpush1.bf16.msra.mxu0 0
    %2595 = vmatprep.subr.bf16.mxu0 0
    %2596 = vmatpush1.bf16.msra.mxu0 0
    %2597 = vmatprep.subr.bf16.mxu0 0
    %2598 = vmatpush1.bf16.msra.mxu0 0
    %2599 = vmatprep.subr.bf16.mxu0 0
    %2600 = vmatpush1.bf16.msra.mxu0 0
    %2601 = vmatprep.subr.bf16.mxu0 0
    %2602 = vmatpush1.bf16.msra.mxu0 0
    %2603 = vmatprep.subr.bf16.mxu0 0
    %2604 = vmatpush1.bf16.msra.mxu0 0
    %2605 = vmatprep.subr.bf16.mxu0 0
    %2606 = vmatpush1.bf16.msra.mxu0 0
    %2607 = vmatprep.subr.bf16.mxu0 0
    %2608 = vmatpush1.bf16.msra.mxu0 0
    %2609 = vmatprep.subr.bf16.mxu0 0
    %2610 = vmatpush1.bf16.msra.mxu0 0
    %2611 = vmatprep.subr.bf16.mxu0 0
    %2612 = vmatpush1.bf16.msra.mxu0 0
    %2613 = vmatprep.subr.bf16.mxu0 0
    %2614 = vmatpush1.bf16.msra.mxu0 0
    %2615 = vmatprep.subr.bf16.mxu0 0
    %2616 = vmatpush1.bf16.msra.mxu0 0
    %2617 = vmatprep.subr.bf16.mxu0 0
    %2618 = vmatpush1.bf16.msra.mxu0 0
    %2619 = vmatprep.mubr.bf16.mxu0 0
    %2620 = vmatmul.mubr.bf16.gmra.mrb[0].mxu0 %v2585
    %v2621 = vpop.f32.mrb[0].mxu0
    %v2622 = vadd.f32 %v2576, %v2621
    %v2623 = vpop.f32.mrb[0].mxu0
    %v2624 = vpop.f32.mrb[0].mxu0
    %v2625 = vpop.f32.mrb[0].mxu0
    %2626 = vdwg.mxu0
    %v2627 = vadd.f32 %v2622, %v2178
    %v2628 = vxor.u32 %v2627, 2147483648
    %v2629 = vmul.f32 %v2628, 1.442695
    %v2630 = vpow.pop %v2629
    %v2631 = vadd.f32 %v2630, 1.0
    %v2632 = vrcp.pop %v2631
    %v2633 = vmul.f32 1.0, %v2632
    %v2634 = vtanh.pop %v2627
    %v2635 = vmul.f32 %v2633, %v2421
    %2637 = vrot.lane.b32.xlu0 %v2634, 64
    %v2638 = vpop.permute.xlu0 %2637
    %v2640 = vmul.f32 %v2633, %v2638
    %2642 = vrot.lane.b32.xlu0 %v2640, 32
    %v2643 = vpop.permute.xlu0 %2642
    %v2645 = vadd.f32 %v2635, %v2643
    %v2646 = vtanh.pop %v2645
    %2648 = vrot.lane.b32.xlu0 %v2646, 64
    %v2649 = vpop.permute.xlu0 %2648
    %v2651 = vmul.f32 %v2633, %v2649
    %v2652 = vpack.c.bf16 %v2651, %v2651
    %2653 = vmatprep.subr.bf16.mxu0 0
    %2654 = vmatpush1.bf16.msra.mxu0 %v1947
    %2655 = vmatprep.subr.bf16.mxu0 0
    %2656 = vmatpush1.bf16.msra.mxu0 %v1948
    %2657 = vmatprep.subr.bf16.mxu0 0
    %2658 = vmatpush1.bf16.msra.mxu0 0
    %2659 = vmatprep.subr.bf16.mxu0 0
    %2660 = vmatpush1.bf16.msra.mxu0 0
    %2661 = vmatprep.subr.bf16.mxu0 0
    %2662 = vmatpush1.bf16.msra.mxu0 0
    %2663 = vmatprep.subr.bf16.mxu0 0
    %2664 = vmatpush1.bf16.msra.mxu0 0
    %2665 = vmatprep.subr.bf16.mxu0 0
    %2666 = vmatpush1.bf16.msra.mxu0 0
    %2667 = vmatprep.subr.bf16.mxu0 0
    %2668 = vmatpush1.bf16.msra.mxu0 0
    %2669 = vmatprep.subr.bf16.mxu0 0
    %2670 = vmatpush1.bf16.msra.mxu0 0
    %2671 = vmatprep.subr.bf16.mxu0 0
    %2672 = vmatpush1.bf16.msra.mxu0 0
    %2673 = vmatprep.subr.bf16.mxu0 0
    %2674 = vmatpush1.bf16.msra.mxu0 0
    %2675 = vmatprep.subr.bf16.mxu0 0
    %2676 = vmatpush1.bf16.msra.mxu0 0
    %2677 = vmatprep.subr.bf16.mxu0 0
    %2678 = vmatpush1.bf16.msra.mxu0 0
    %2679 = vmatprep.subr.bf16.mxu0 0
    %2680 = vmatpush1.bf16.msra.mxu0 0
    %2681 = vmatprep.subr.bf16.mxu0 0
    %2682 = vmatpush1.bf16.msra.mxu0 0
    %2683 = vmatprep.subr.bf16.mxu0 0
    %2684 = vmatpush1.bf16.msra.mxu0 0
    %2685 = vmatprep.mubr.bf16.mxu0 0
    %2686 = vmatmul.mubr.bf16.gmra.mrb[0].mxu0 %v2585
    %v2687 = vpop.f32.mrb[0].mxu0
    %v2688 = vadd.f32 0.0, %v2687
    %v2689 = vpop.f32.mrb[0].mxu0
    %v2690 = vpop.f32.mrb[0].mxu0
    %v2691 = vpop.f32.mrb[0].mxu0
    %2692 = vdwg.mxu0
    %2694 = vrot.lane.b32.xlu0 %v2652, 32
    %v2695 = vpop.permute.xlu0 %2694
    %v2697 = vsel %vm241, %v2695, 0
    %2699 = vmatprep.subr.bf16.mxu0 0
    %2700 = vmatpush1.bf16.msra.mxu0 %v2002
    %2701 = vmatprep.subr.bf16.mxu0 0
    %2702 = vmatpush1.bf16.msra.mxu0 %v2003
    %2703 = vmatprep.subr.bf16.mxu0 0
    %2704 = vmatpush1.bf16.msra.mxu0 0
    %2705 = vmatprep.subr.bf16.mxu0 0
    %2706 = vmatpush1.bf16.msra.mxu0 0
    %2707 = vmatprep.subr.bf16.mxu0 0
    %2708 = vmatpush1.bf16.msra.mxu0 0
    %2709 = vmatprep.subr.bf16.mxu0 0
    %2710 = vmatpush1.bf16.msra.mxu0 0
    %2711 = vmatprep.subr.bf16.mxu0 0
    %2712 = vmatpush1.bf16.msra.mxu0 0
    %2713 = vmatprep.subr.bf16.mxu0 0
    %2714 = vmatpush1.bf16.msra.mxu0 0
    %2715 = vmatprep.subr.bf16.mxu0 0
    %2716 = vmatpush1.bf16.msra.mxu0 0
    %2717 = vmatprep.subr.bf16.mxu0 0
    %2718 = vmatpush1.bf16.msra.mxu0 0
    %2719 = vmatprep.subr.bf16.mxu0 0
    %2720 = vmatpush1.bf16.msra.mxu0 0
    %2721 = vmatprep.subr.bf16.mxu0 0
    %2722 = vmatpush1.bf16.msra.mxu0 0
    %2723 = vmatprep.subr.bf16.mxu0 0
    %2724 = vmatpush1.bf16.msra.mxu0 0
    %2725 = vmatprep.subr.bf16.mxu0 0
    %2726 = vmatpush1.bf16.msra.mxu0 0
    %2727 = vmatprep.subr.bf16.mxu0 0
    %2728 = vmatpush1.bf16.msra.mxu0 0
    %2729 = vmatprep.subr.bf16.mxu0 0
    %2730 = vmatpush1.bf16.msra.mxu0 0
    %2731 = vmatprep.mubr.bf16.mxu0 0
    %2732 = vmatmul.mubr.bf16.gmra.mrb[0].mxu0 %v2697
    %v2733 = vpop.f32.mrb[0].mxu0
    %v2734 = vadd.f32 %v2688, %v2733
    %v2735 = vpop.f32.mrb[0].mxu0
    %v2736 = vpop.f32.mrb[0].mxu0
    %v2737 = vpop.f32.mrb[0].mxu0
    %2738 = vdwg.mxu0
    %v2739 = vadd.f32 %v2734, %v2049
    %v2740 = vxor.u32 %v2739, 2147483648
    %v2741 = vmul.f32 %v2740, 1.442695
    %v2742 = vpow.pop %v2741
    %v2743 = vadd.f32 %v2742, 1.0
    %v2744 = vrcp.pop %v2743
    %v2745 = vmul.f32 1.0, %v2744
    %v2746 = vtanh.pop %v2739
    %v2747 = vmul.f32 %v2745, %v2533
    %2749 = vrot.lane.b32.xlu0 %v2746, 64
    %v2750 = vpop.permute.xlu0 %2749
    %v2752 = vmul.f32 %v2745, %v2750
    %2754 = vrot.lane.b32.xlu0 %v2752, 32
    %v2755 = vpop.permute.xlu0 %2754
    %v2757 = vadd.f32 %v2747, %v2755
    %v2758 = vtanh.pop %v2757
    %2760 = vrot.lane.b32.xlu0 %v2758, 64
    %v2761 = vpop.permute.xlu0 %2760
    %v2763 = vmul.f32 %v2745, %v2761
    %v2764 = vpack.c.bf16 %v2763, %v2763
    %2765 = vmatprep.subr.bf16.mxu0 0
    %2766 = vmatpush1.bf16.msra.mxu0 %v1802
    %2767 = vmatprep.subr.bf16.mxu0 0
    %2768 = vmatpush1.bf16.msra.mxu0 %v1803
    %2769 = vmatprep.subr.bf16.mxu0 0
    %2770 = vmatpush1.bf16.msra.mxu0 0
    %2771 = vmatprep.subr.bf16.mxu0 0
    %2772 = vmatpush1.bf16.msra.mxu0 0
    %2773 = vmatprep.subr.bf16.mxu0 0
    %2774 = vmatpush1.bf16.msra.mxu0 0
    %2775 = vmatprep.subr.bf16.mxu0 0
    %2776 = vmatpush1.bf16.msra.mxu0 0
    %2777 = vmatprep.subr.bf16.mxu0 0
    %2778 = vmatpush1.bf16.msra.mxu0 0
    %2779 = vmatprep.subr.bf16.mxu0 0
    %2780 = vmatpush1.bf16.msra.mxu0 0
    %2781 = vmatprep.subr.bf16.mxu0 0
    %2782 = vmatpush1.bf16.msra.mxu0 0
    %2783 = vmatprep.subr.bf16.mxu0 0
    %2784 = vmatpush1.bf16.msra.mxu0 0
    %2785 = vmatprep.subr.bf16.mxu0 0
    %2786 = vmatpush1.bf16.msra.mxu0 0
    %2787 = vmatprep.subr.bf16.mxu0 0
    %2788 = vmatpush1.bf16.msra.mxu0 0
    %2789 = vmatprep.subr.bf16.mxu0 0
    %2790 = vmatpush1.bf16.msra.mxu0 0
    %2791 = vmatprep.subr.bf16.mxu0 0
    %2792 = vmatpush1.bf16.msra.mxu0 0
    %2793 = vmatprep.subr.bf16.mxu0 0
    %2794 = vmatpush1.bf16.msra.mxu0 0
    %2795 = vmatprep.subr.bf16.mxu0 0
    %2796 = vmatpush1.bf16.msra.mxu0 0
    %2797 = vmatprep.mubr.bf16.mxu0 0
    %2798 = vmatmul.mubr.bf16.gmra.mrb[0].mxu0 %v2697
    %v2799 = vpop.f32.mrb[0].mxu0
    %v2800 = vadd.f32 0.0, %v2799
    %v2801 = vpop.f32.mrb[0].mxu0
    %v2802 = vpop.f32.mrb[0].mxu0
    %v2803 = vpop.f32.mrb[0].mxu0
    %2804 = vdwg.mxu0
    %2806 = vrot.lane.b32.xlu0 %v2764, 32
    %v2807 = vpop.permute.xlu0 %2806
    %v2809 = vsel %vm241, %v2807, 0
    %2811 = vmatprep.subr.bf16.mxu0 0
    %2812 = vmatpush1.bf16.msra.mxu0 %v2131
    %2813 = vmatprep.subr.bf16.mxu0 0
    %2814 = vmatpush1.bf16.msra.mxu0 %v2132
    %2815 = vmatprep.subr.bf16.mxu0 0
    %2816 = vmatpush1.bf16.msra.mxu0 0
    %2817 = vmatprep.subr.bf16.mxu0 0
    %2818 = vmatpush1.bf16.msra.mxu0 0
    %2819 = vmatprep.subr.bf16.mxu0 0
    %2820 = vmatpush1.bf16.msra.mxu0 0
    %2821 = vmatprep.subr.bf16.mxu0 0
    %2822 = vmatpush1.bf16.msra.mxu0 0
    %2823 = vmatprep.subr.bf16.mxu0 0
    %2824 = vmatpush1.bf16.msra.mxu0 0
    %2825 = vmatprep.subr.bf16.mxu0 0
    %2826 = vmatpush1.bf16.msra.mxu0 0
    %2827 = vmatprep.subr.bf16.mxu0 0
    %2828 = vmatpush1.bf16.msra.mxu0 0
    %2829 = vmatprep.subr.bf16.mxu0 0
    %2830 = vmatpush1.bf16.msra.mxu0 0
    %2831 = vmatprep.subr.bf16.mxu0 0
    %2832 = vmatpush1.bf16.msra.mxu0 0
    %2833 = vmatprep.subr.bf16.mxu0 0
    %2834 = vmatpush1.bf16.msra.mxu0 0
    %2835 = vmatprep.subr.bf16.mxu0 0
    %2836 = vmatpush1.bf16.msra.mxu0 0
    %2837 = vmatprep.subr.bf16.mxu0 0
    %2838 = vmatpush1.bf16.msra.mxu0 0
    %2839 = vmatprep.subr.bf16.mxu0 0
    %2840 = vmatpush1.bf16.msra.mxu0 0
    %2841 = vmatprep.subr.bf16.mxu0 0
    %2842 = vmatpush1.bf16.msra.mxu0 0
    %2843 = vmatprep.mubr.bf16.mxu0 0
    %2844 = vmatmul.mubr.bf16.gmra.mrb[0].mxu0 %v2809
    %v2845 = vpop.f32.mrb[0].mxu0
    %v2846 = vadd.f32 %v2800, %v2845
    %v2847 = vpop.f32.mrb[0].mxu0
    %v2848 = vpop.f32.mrb[0].mxu0
    %v2849 = vpop.f32.mrb[0].mxu0
    %2850 = vdwg.mxu0
    %v2851 = vadd.f32 %v2846, %v2178
    %v2852 = vxor.u32 %v2851, 2147483648
    %v2853 = vmul.f32 %v2852, 1.442695
    %v2854 = vpow.pop %v2853
    %v2855 = vadd.f32 %v2854, 1.0
    %v2856 = vrcp.pop %v2855
    %v2857 = vmul.f32 1.0, %v2856
    %v2858 = vtanh.pop %v2851
    %v2859 = vmul.f32 %v2857, %v2645
    %2861 = vrot.lane.b32.xlu0 %v2858, 64
    %v2862 = vpop.permute.xlu0 %2861
    %v2864 = vmul.f32 %v2857, %v2862
    %2866 = vrot.lane.b32.xlu0 %v2864, 32
    %v2867 = vpop.permute.xlu0 %2866
    %v2869 = vadd.f32 %v2859, %v2867
    %v2870 = vtanh.pop %v2869
    %2872 = vrot.lane.b32.xlu0 %v2870, 64
    %v2873 = vpop.permute.xlu0 %2872
    %v2875 = vmul.f32 %v2857, %v2873
    %v2876 = vpack.c.bf16 %v2875, %v2875
    %2877 = vmatprep.subr.bf16.mxu0 0
    %2878 = vmatpush1.bf16.msra.mxu0 %v1947
    %2879 = vmatprep.subr.bf16.mxu0 0
    %2880 = vmatpush1.bf16.msra.mxu0 %v1948
    %2881 = vmatprep.subr.bf16.mxu0 0
    %2882 = vmatpush1.bf16.msra.mxu0 0
    %2883 = vmatprep.subr.bf16.mxu0 0
    %2884 = vmatpush1.bf16.msra.mxu0 0
    %2885 = vmatprep.subr.bf16.mxu0 0
    %2886 = vmatpush1.bf16.msra.mxu0 0
    %2887 = vmatprep.subr.bf16.mxu0 0
    %2888 = vmatpush1.bf16.msra.mxu0 0
    %2889 = vmatprep.subr.bf16.mxu0 0
    %2890 = vmatpush1.bf16.msra.mxu0 0
    %2891 = vmatprep.subr.bf16.mxu0 0
    %2892 = vmatpush1.bf16.msra.mxu0 0
    %2893 = vmatprep.subr.bf16.mxu0 0
    %2894 = vmatpush1.bf16.msra.mxu0 0
    %2895 = vmatprep.subr.bf16.mxu0 0
    %2896 = vmatpush1.bf16.msra.mxu0 0
    %2897 = vmatprep.subr.bf16.mxu0 0
    %2898 = vmatpush1.bf16.msra.mxu0 0
    %2899 = vmatprep.subr.bf16.mxu0 0
    %2900 = vmatpush1.bf16.msra.mxu0 0
    %2901 = vmatprep.subr.bf16.mxu0 0
    %2902 = vmatpush1.bf16.msra.mxu0 0
    %2903 = vmatprep.subr.bf16.mxu0 0
    %2904 = vmatpush1.bf16.msra.mxu0 0
    %2905 = vmatprep.subr.bf16.mxu0 0
    %2906 = vmatpush1.bf16.msra.mxu0 0
    %2907 = vmatprep.subr.bf16.mxu0 0
    %2908 = vmatpush1.bf16.msra.mxu0 0
    %2909 = vmatprep.mubr.bf16.mxu0 0
    %2910 = vmatmul.mubr.bf16.gmra.mrb[0].mxu0 %v2809
    %v2911 = vpop.f32.mrb[0].mxu0
    %v2912 = vadd.f32 0.0, %v2911
    %v2913 = vpop.f32.mrb[0].mxu0
    %v2914 = vpop.f32.mrb[0].mxu0
    %v2915 = vpop.f32.mrb[0].mxu0
    %2916 = vdwg.mxu0
    %2918 = vrot.lane.b32.xlu0 %v2876, 32
    %v2919 = vpop.permute.xlu0 %2918
    %v2921 = vsel %vm241, %v2919, 0
    %2923 = vmatprep.subr.bf16.mxu0 0
    %2924 = vmatpush1.bf16.msra.mxu0 %v2002
    %2925 = vmatprep.subr.bf16.mxu0 0
    %2926 = vmatpush1.bf16.msra.mxu0 %v2003
    %2927 = vmatprep.subr.bf16.mxu0 0
    %2928 = vmatpush1.bf16.msra.mxu0 0
    %2929 = vmatprep.subr.bf16.mxu0 0
    %2930 = vmatpush1.bf16.msra.mxu0 0
    %2931 = vmatprep.subr.bf16.mxu0 0
    %2932 = vmatpush1.bf16.msra.mxu0 0
    %2933 = vmatprep.subr.bf16.mxu0 0
    %2934 = vmatpush1.bf16.msra.mxu0 0
    %2935 = vmatprep.subr.bf16.mxu0 0
    %2936 = vmatpush1.bf16.msra.mxu0 0
    %2937 = vmatprep.subr.bf16.mxu0 0
    %2938 = vmatpush1.bf16.msra.mxu0 0
    %2939 = vmatprep.subr.bf16.mxu0 0
    %2940 = vmatpush1.bf16.msra.mxu0 0
    %2941 = vmatprep.subr.bf16.mxu0 0
    %2942 = vmatpush1.bf16.msra.mxu0 0
    %2943 = vmatprep.subr.bf16.mxu0 0
    %2944 = vmatpush1.bf16.msra.mxu0 0
    %2945 = vmatprep.subr.bf16.mxu0 0
    %2946 = vmatpush1.bf16.msra.mxu0 0
    %2947 = vmatprep.subr.bf16.mxu0 0
    %2948 = vmatpush1.bf16.msra.mxu0 0
    %2949 = vmatprep.subr.bf16.mxu0 0
    %2950 = vmatpush1.bf16.msra.mxu0 0
    %2951 = vmatprep.subr.bf16.mxu0 0
    %2952 = vmatpush1.bf16.msra.mxu0 0
    %2953 = vmatprep.subr.bf16.mxu0 0
    %2954 = vmatpush1.bf16.msra.mxu0 0
    %2955 = vmatprep.mubr.bf16.mxu0 0
    %2956 = vmatmul.mubr.bf16.gmra.mrb[0].mxu0 %v2921
    %v2957 = vpop.f32.mrb[0].mxu0
    %v2958 = vadd.f32 %v2912, %v2957
    %v2959 = vpop.f32.mrb[0].mxu0
    %v2960 = vpop.f32.mrb[0].mxu0
    %v2961 = vpop.f32.mrb[0].mxu0
    %2962 = vdwg.mxu0
    %v2963 = vadd.f32 %v2958, %v2049
    %v2964 = vxor.u32 %v2963, 2147483648
    %v2965 = vmul.f32 %v2964, 1.442695
    %v2966 = vpow.pop %v2965
    %v2967 = vadd.f32 %v2966, 1.0
    %v2968 = vrcp.pop %v2967
    %v2969 = vmul.f32 1.0, %v2968
    %v2970 = vtanh.pop %v2963
    %v2971 = vmul.f32 %v2969, %v2757
    %2973 = vrot.lane.b32.xlu0 %v2970, 64
    %v2974 = vpop.permute.xlu0 %2973
    %v2976 = vmul.f32 %v2969, %v2974
    %2978 = vrot.lane.b32.xlu0 %v2976, 32
    %v2979 = vpop.permute.xlu0 %2978
    %v2981 = vadd.f32 %v2971, %v2979
    %v2982 = vtanh.pop %v2981
    %2984 = vrot.lane.b32.xlu0 %v2982, 64
    %v2985 = vpop.permute.xlu0 %2984
    %v2987 = vmul.f32 %v2969, %v2985
    %v2988 = vpack.c.bf16 %v2987, %v2987
    %2989 = vmatprep.subr.bf16.mxu0 0
    %2990 = vmatpush1.bf16.msra.mxu0 %v1802
    %2991 = vmatprep.subr.bf16.mxu0 0
    %2992 = vmatpush1.bf16.msra.mxu0 %v1803
    %2993 = vmatprep.subr.bf16.mxu0 0
    %2994 = vmatpush1.bf16.msra.mxu0 0
    %2995 = vmatprep.subr.bf16.mxu0 0
    %2996 = vmatpush1.bf16.msra.mxu0 0
    %2997 = vmatprep.subr.bf16.mxu0 0
    %2998 = vmatpush1.bf16.msra.mxu0 0
    %2999 = vmatprep.subr.bf16.mxu0 0
    %3000 = vmatpush1.bf16.msra.mxu0 0
    %3001 = vmatprep.subr.bf16.mxu0 0
    %3002 = vmatpush1.bf16.msra.mxu0 0
    %3003 = vmatprep.subr.bf16.mxu0 0
    %3004 = vmatpush1.bf16.msra.mxu0 0
    %3005 = vmatprep.subr.bf16.mxu0 0
    %3006 = vmatpush1.bf16.msra.mxu0 0
    %3007 = vmatprep.subr.bf16.mxu0 0
    %3008 = vmatpush1.bf16.msra.mxu0 0
    %3009 = vmatprep.subr.bf16.mxu0 0
    %3010 = vmatpush1.bf16.msra.mxu0 0
    %3011 = vmatprep.subr.bf16.mxu0 0
    %3012 = vmatpush1.bf16.msra.mxu0 0
    %3013 = vmatprep.subr.bf16.mxu0 0
    %3014 = vmatpush1.bf16.msra.mxu0 0
    %3015 = vmatprep.subr.bf16.mxu0 0
    %3016 = vmatpush1.bf16.msra.mxu0 0
    %3017 = vmatprep.subr.bf16.mxu0 0
    %3018 = vmatpush1.bf16.msra.mxu0 0
    %3019 = vmatprep.subr.bf16.mxu0 0
    %3020 = vmatpush1.bf16.msra.mxu0 0
    %3021 = vmatprep.mubr.bf16.mxu0 0
    %3022 = vmatmul.mubr.bf16.gmra.mrb[0].mxu0 %v2921
    %v3023 = vpop.f32.mrb[0].mxu0
    %v3024 = vadd.f32 0.0, %v3023
    %v3025 = vpop.f32.mrb[0].mxu0
    %v3026 = vpop.f32.mrb[0].mxu0
    %v3027 = vpop.f32.mrb[0].mxu0
    %3028 = vdwg.mxu0
    %3030 = vrot.lane.b32.xlu0 %v2988, 32
    %v3031 = vpop.permute.xlu0 %3030
    %v3033 = vsel %vm241, %v3031, 0
    %3035 = vmatprep.subr.bf16.mxu0 0
    %3036 = vmatpush1.bf16.msra.mxu0 %v2131
    %3037 = vmatprep.subr.bf16.mxu0 0
    %3038 = vmatpush1.bf16.msra.mxu0 %v2132
    %3039 = vmatprep.subr.bf16.mxu0 0
    %3040 = vmatpush1.bf16.msra.mxu0 0
    %3041 = vmatprep.subr.bf16.mxu0 0
    %3042 = vmatpush1.bf16.msra.mxu0 0
    %3043 = vmatprep.subr.bf16.mxu0 0
    %3044 = vmatpush1.bf16.msra.mxu0 0
    %3045 = vmatprep.subr.bf16.mxu0 0
    %3046 = vmatpush1.bf16.msra.mxu0 0
    %3047 = vmatprep.subr.bf16.mxu0 0
    %3048 = vmatpush1.bf16.msra.mxu0 0
    %3049 = vmatprep.subr.bf16.mxu0 0
    %3050 = vmatpush1.bf16.msra.mxu0 0
    %3051 = vmatprep.subr.bf16.mxu0 0
    %3052 = vmatpush1.bf16.msra.mxu0 0
    %3053 = vmatprep.subr.bf16.mxu0 0
    %3054 = vmatpush1.bf16.msra.mxu0 0
    %3055 = vmatprep.subr.bf16.mxu0 0
    %3056 = vmatpush1.bf16.msra.mxu0 0
    %3057 = vmatprep.subr.bf16.mxu0 0
    %3058 = vmatpush1.bf16.msra.mxu0 0
    %3059 = vmatprep.subr.bf16.mxu0 0
    %3060 = vmatpush1.bf16.msra.mxu0 0
    %3061 = vmatprep.subr.bf16.mxu0 0
    %3062 = vmatpush1.bf16.msra.mxu0 0
    %3063 = vmatprep.subr.bf16.mxu0 0
    %3064 = vmatpush1.bf16.msra.mxu0 0
    %3065 = vmatprep.subr.bf16.mxu0 0
    %3066 = vmatpush1.bf16.msra.mxu0 0
    %3067 = vmatprep.mubr.bf16.mxu0 0
    %3068 = vmatmul.mubr.bf16.gmra.mrb[0].mxu0 %v3033
    %v3069 = vpop.f32.mrb[0].mxu0
    %v3070 = vadd.f32 %v3024, %v3069
    %v3071 = vpop.f32.mrb[0].mxu0
    %v3072 = vpop.f32.mrb[0].mxu0
    %v3073 = vpop.f32.mrb[0].mxu0
    %3074 = vdwg.mxu0
    %v3075 = vadd.f32 %v3070, %v2178
    %v3076 = vxor.u32 %v3075, 2147483648
    %v3077 = vmul.f32 %v3076, 1.442695
    %v3078 = vpow.pop %v3077
    %v3079 = vadd.f32 %v3078, 1.0
    %v3080 = vrcp.pop %v3079
    %v3081 = vmul.f32 1.0, %v3080
    %v3082 = vtanh.pop %v3075
    %v3083 = vmul.f32 %v3081, %v2869
    %3085 = vrot.lane.b32.xlu0 %v3082, 64
    %v3086 = vpop.permute.xlu0 %3085
    %v3088 = vmul.f32 %v3081, %v3086
    %3090 = vrot.lane.b32.xlu0 %v3088, 32
    %v3091 = vpop.permute.xlu0 %3090
    %v3093 = vadd.f32 %v3083, %v3091
    %v3094 = vtanh.pop %v3093
    %3096 = vrot.lane.b32.xlu0 %v3094, 64
    %v3097 = vpop.permute.xlu0 %3096
    %v3099 = vmul.f32 %v3081, %v3097
    %v3100 = vpack.c.bf16 %v3099, %v3099
    %3101 = vmatprep.subr.bf16.mxu0 0
    %3102 = vmatpush1.bf16.msra.mxu0 %v1947
    %3103 = vmatprep.subr.bf16.mxu0 0
    %3104 = vmatpush1.bf16.msra.mxu0 %v1948
    %3105 = vmatprep.subr.bf16.mxu0 0
    %3106 = vmatpush1.bf16.msra.mxu0 0
    %3107 = vmatprep.subr.bf16.mxu0 0
    %3108 = vmatpush1.bf16.msra.mxu0 0
    %3109 = vmatprep.subr.bf16.mxu0 0
    %3110 = vmatpush1.bf16.msra.mxu0 0
    %3111 = vmatprep.subr.bf16.mxu0 0
    %3112 = vmatpush1.bf16.msra.mxu0 0
    %3113 = vmatprep.subr.bf16.mxu0 0
    %3114 = vmatpush1.bf16.msra.mxu0 0
    %3115 = vmatprep.subr.bf16.mxu0 0
    %3116 = vmatpush1.bf16.msra.mxu0 0
    %3117 = vmatprep.subr.bf16.mxu0 0
    %3118 = vmatpush1.bf16.msra.mxu0 0
    %3119 = vmatprep.subr.bf16.mxu0 0
    %3120 = vmatpush1.bf16.msra.mxu0 0
    %3121 = vmatprep.subr.bf16.mxu0 0
    %3122 = vmatpush1.bf16.msra.mxu0 0
    %3123 = vmatprep.subr.bf16.mxu0 0
    %3124 = vmatpush1.bf16.msra.mxu0 0
    %3125 = vmatprep.subr.bf16.mxu0 0
    %3126 = vmatpush1.bf16.msra.mxu0 0
    %3127 = vmatprep.subr.bf16.mxu0 0
    %3128 = vmatpush1.bf16.msra.mxu0 0
    %3129 = vmatprep.subr.bf16.mxu0 0
    %3130 = vmatpush1.bf16.msra.mxu0 0
    %3131 = vmatprep.subr.bf16.mxu0 0
    %3132 = vmatpush1.bf16.msra.mxu0 0
    %3133 = vmatprep.mubr.bf16.mxu0 0
    %3134 = vmatmul.mubr.bf16.gmra.mrb[0].mxu0 %v3033
    %v3135 = vpop.f32.mrb[0].mxu0
    %v3136 = vadd.f32 0.0, %v3135
    %v3137 = vpop.f32.mrb[0].mxu0
    %v3138 = vpop.f32.mrb[0].mxu0
    %v3139 = vpop.f32.mrb[0].mxu0
    %3140 = vdwg.mxu0
    %3142 = vrot.lane.b32.xlu0 %v3100, 32
    %v3143 = vpop.permute.xlu0 %3142
    %v3145 = vsel %vm241, %v3143, 0
    %3147 = vmatprep.subr.bf16.mxu0 0
    %3148 = vmatpush1.bf16.msra.mxu0 %v2002
    %3149 = vmatprep.subr.bf16.mxu0 0
    %3150 = vmatpush1.bf16.msra.mxu0 %v2003
    %3151 = vmatprep.subr.bf16.mxu0 0
    %3152 = vmatpush1.bf16.msra.mxu0 0
    %3153 = vmatprep.subr.bf16.mxu0 0
    %3154 = vmatpush1.bf16.msra.mxu0 0
    %3155 = vmatprep.subr.bf16.mxu0 0
    %3156 = vmatpush1.bf16.msra.mxu0 0
    %3157 = vmatprep.subr.bf16.mxu0 0
    %3158 = vmatpush1.bf16.msra.mxu0 0
    %3159 = vmatprep.subr.bf16.mxu0 0
    %3160 = vmatpush1.bf16.msra.mxu0 0
    %3161 = vmatprep.subr.bf16.mxu0 0
    %3162 = vmatpush1.bf16.msra.mxu0 0
    %3163 = vmatprep.subr.bf16.mxu0 0
    %3164 = vmatpush1.bf16.msra.mxu0 0
    %3165 = vmatprep.subr.bf16.mxu0 0
    %3166 = vmatpush1.bf16.msra.mxu0 0
    %3167 = vmatprep.subr.bf16.mxu0 0
    %3168 = vmatpush1.bf16.msra.mxu0 0
    %3169 = vmatprep.subr.bf16.mxu0 0
    %3170 = vmatpush1.bf16.msra.mxu0 0
    %3171 = vmatprep.subr.bf16.mxu0 0
    %3172 = vmatpush1.bf16.msra.mxu0 0
    %3173 = vmatprep.subr.bf16.mxu0 0
    %3174 = vmatpush1.bf16.msra.mxu0 0
    %3175 = vmatprep.subr.bf16.mxu0 0
    %3176 = vmatpush1.bf16.msra.mxu0 0
    %3177 = vmatprep.subr.bf16.mxu0 0
    %3178 = vmatpush1.bf16.msra.mxu0 0
    %3179 = vmatprep.mubr.bf16.mxu0 0
    %3180 = vmatmul.mubr.bf16.gmra.mrb[0].mxu0 %v3145
    %v3181 = vpop.f32.mrb[0].mxu0
    %v3182 = vadd.f32 %v3136, %v3181
    %v3183 = vpop.f32.mrb[0].mxu0
    %v3184 = vpop.f32.mrb[0].mxu0
    %v3185 = vpop.f32.mrb[0].mxu0
    %3186 = vdwg.mxu0
    %v3187 = vadd.f32 %v3182, %v2049
    %v3188 = vxor.u32 %v3187, 2147483648
    %v3189 = vmul.f32 %v3188, 1.442695
    %v3190 = vpow.pop %v3189
    %v3191 = vadd.f32 %v3190, 1.0
    %v3192 = vrcp.pop %v3191
    %v3193 = vmul.f32 1.0, %v3192
    %v3194 = vtanh.pop %v3187
    %v3195 = vmul.f32 %v3193, %v2981
    %3197 = vrot.lane.b32.xlu0 %v3194, 64
    %v3198 = vpop.permute.xlu0 %3197
    %v3200 = vmul.f32 %v3193, %v3198
    %3202 = vrot.lane.b32.xlu0 %v3200, 32
    %v3203 = vpop.permute.xlu0 %3202
    %v3205 = vadd.f32 %v3195, %v3203
    %v3206 = vtanh.pop %v3205
    %3208 = vrot.lane.b32.xlu0 %v3206, 64
    %v3209 = vpop.permute.xlu0 %3208
    %v3211 = vmul.f32 %v3193, %v3209
    %v3212 = vpack.c.bf16 %v3211, %v3211
    %3213 = vmatprep.subr.bf16.mxu0 0
    %3214 = vmatpush1.bf16.msra.mxu0 %v1802
    %3215 = vmatprep.subr.bf16.mxu0 0
    %3216 = vmatpush1.bf16.msra.mxu0 %v1803
    %3217 = vmatprep.subr.bf16.mxu0 0
    %3218 = vmatpush1.bf16.msra.mxu0 0
    %3219 = vmatprep.subr.bf16.mxu0 0
    %3220 = vmatpush1.bf16.msra.mxu0 0
    %3221 = vmatprep.subr.bf16.mxu0 0
    %3222 = vmatpush1.bf16.msra.mxu0 0
    %3223 = vmatprep.subr.bf16.mxu0 0
    %3224 = vmatpush1.bf16.msra.mxu0 0
    %3225 = vmatprep.subr.bf16.mxu0 0
    %3226 = vmatpush1.bf16.msra.mxu0 0
    %3227 = vmatprep.subr.bf16.mxu0 0
    %3228 = vmatpush1.bf16.msra.mxu0 0
    %3229 = vmatprep.subr.bf16.mxu0 0
    %3230 = vmatpush1.bf16.msra.mxu0 0
    %3231 = vmatprep.subr.bf16.mxu0 0
    %3232 = vmatpush1.bf16.msra.mxu0 0
    %3233 = vmatprep.subr.bf16.mxu0 0
    %3234 = vmatpush1.bf16.msra.mxu0 0
    %3235 = vmatprep.subr.bf16.mxu0 0
    %3236 = vmatpush1.bf16.msra.mxu0 0
    %3237 = vmatprep.subr.bf16.mxu0 0
    %3238 = vmatpush1.bf16.msra.mxu0 0
    %3239 = vmatprep.subr.bf16.mxu0 0
    %3240 = vmatpush1.bf16.msra.mxu0 0
    %3241 = vmatprep.subr.bf16.mxu0 0
    %3242 = vmatpush1.bf16.msra.mxu0 0
    %3243 = vmatprep.subr.bf16.mxu0 0
    %3244 = vmatpush1.bf16.msra.mxu0 0
    %3245 = vmatprep.mubr.bf16.mxu0 0
    %3246 = vmatmul.mubr.bf16.gmra.mrb[0].mxu0 %v3145
    %v3247 = vpop.f32.mrb[0].mxu0
    %v3248 = vadd.f32 0.0, %v3247
    %v3249 = vpop.f32.mrb[0].mxu0
    %v3250 = vpop.f32.mrb[0].mxu0
    %v3251 = vpop.f32.mrb[0].mxu0
    %3252 = vdwg.mxu0
    %3254 = vrot.lane.b32.xlu0 %v3212, 32
    %v3255 = vpop.permute.xlu0 %3254
    %v3257 = vsel %vm241, %v3255, 0
    %3259 = vmatprep.subr.bf16.mxu0 0
    %3260 = vmatpush1.bf16.msra.mxu0 %v2131
    %3261 = vmatprep.subr.bf16.mxu0 0
    %3262 = vmatpush1.bf16.msra.mxu0 %v2132
    %3263 = vmatprep.subr.bf16.mxu0 0
    %3264 = vmatpush1.bf16.msra.mxu0 0
    %3265 = vmatprep.subr.bf16.mxu0 0
    %3266 = vmatpush1.bf16.msra.mxu0 0
    %3267 = vmatprep.subr.bf16.mxu0 0
    %3268 = vmatpush1.bf16.msra.mxu0 0
    %3269 = vmatprep.subr.bf16.mxu0 0
    %3270 = vmatpush1.bf16.msra.mxu0 0
    %3271 = vmatprep.subr.bf16.mxu0 0
    %3272 = vmatpush1.bf16.msra.mxu0 0
    %3273 = vmatprep.subr.bf16.mxu0 0
    %3274 = vmatpush1.bf16.msra.mxu0 0
    %3275 = vmatprep.subr.bf16.mxu0 0
    %3276 = vmatpush1.bf16.msra.mxu0 0
    %3277 = vmatprep.subr.bf16.mxu0 0
    %3278 = vmatpush1.bf16.msra.mxu0 0
    %3279 = vmatprep.subr.bf16.mxu0 0
    %3280 = vmatpush1.bf16.msra.mxu0 0
    %3281 = vmatprep.subr.bf16.mxu0 0
    %3282 = vmatpush1.bf16.msra.mxu0 0
    %3283 = vmatprep.subr.bf16.mxu0 0
    %3284 = vmatpush1.bf16.msra.mxu0 0
    %3285 = vmatprep.subr.bf16.mxu0 0
    %3286 = vmatpush1.bf16.msra.mxu0 0
    %3287 = vmatprep.subr.bf16.mxu0 0
    %3288 = vmatpush1.bf16.msra.mxu0 0
    %3289 = vmatprep.subr.bf16.mxu0 0
    %3290 = vmatpush1.bf16.msra.mxu0 0
    %3291 = vmatprep.mubr.bf16.mxu0 0
    %3292 = vmatmul.mubr.bf16.gmra.mrb[0].mxu0 %v3257
    %v3293 = vpop.f32.mrb[0].mxu0
    %v3294 = vadd.f32 %v3248, %v3293
    %v3295 = vpop.f32.mrb[0].mxu0
    %v3296 = vpop.f32.mrb[0].mxu0
    %v3297 = vpop.f32.mrb[0].mxu0
    %3298 = vdwg.mxu0
    %v3299 = vadd.f32 %v3294, %v2178
    %v3300 = vxor.u32 %v3299, 2147483648
    %v3301 = vmul.f32 %v3300, 1.442695
    %v3302 = vpow.pop %v3301
    %v3303 = vadd.f32 %v3302, 1.0
    %v3304 = vrcp.pop %v3303
    %v3305 = vmul.f32 1.0, %v3304
    %v3306 = vtanh.pop %v3299
    %v3307 = vmul.f32 %v3305, %v3093
    %3309 = vrot.lane.b32.xlu0 %v3306, 64
    %v3310 = vpop.permute.xlu0 %3309
    %v3312 = vmul.f32 %v3305, %v3310
    %3314 = vrot.lane.b32.xlu0 %v3312, 32
    %v3315 = vpop.permute.xlu0 %3314
    %v3317 = vadd.f32 %v3307, %v3315
    %v3318 = vtanh.pop %v3317
    %3320 = vrot.lane.b32.xlu0 %v3318, 64
    %v3321 = vpop.permute.xlu0 %3320
    %v3323 = vmul.f32 %v3305, %v3321
    %v3324 = vpack.c.bf16 %v3323, %v3323
    %3325 = vmatprep.subr.bf16.mxu0 0
    %3326 = vmatpush1.bf16.msra.mxu0 %v1947
    %3327 = vmatprep.subr.bf16.mxu0 0
    %3328 = vmatpush1.bf16.msra.mxu0 %v1948
    %3329 = vmatprep.subr.bf16.mxu0 0
    %3330 = vmatpush1.bf16.msra.mxu0 0
    %3331 = vmatprep.subr.bf16.mxu0 0
    %3332 = vmatpush1.bf16.msra.mxu0 0
    %3333 = vmatprep.subr.bf16.mxu0 0
    %3334 = vmatpush1.bf16.msra.mxu0 0
    %3335 = vmatprep.subr.bf16.mxu0 0
    %3336 = vmatpush1.bf16.msra.mxu0 0
    %3337 = vmatprep.subr.bf16.mxu0 0
    %3338 = vmatpush1.bf16.msra.mxu0 0
    %3339 = vmatprep.subr.bf16.mxu0 0
    %3340 = vmatpush1.bf16.msra.mxu0 0
    %3341 = vmatprep.subr.bf16.mxu0 0
    %3342 = vmatpush1.bf16.msra.mxu0 0
    %3343 = vmatprep.subr.bf16.mxu0 0
    %3344 = vmatpush1.bf16.msra.mxu0 0
    %3345 = vmatprep.subr.bf16.mxu0 0
    %3346 = vmatpush1.bf16.msra.mxu0 0
    %3347 = vmatprep.subr.bf16.mxu0 0
    %3348 = vmatpush1.bf16.msra.mxu0 0
    %3349 = vmatprep.subr.bf16.mxu0 0
    %3350 = vmatpush1.bf16.msra.mxu0 0
    %3351 = vmatprep.subr.bf16.mxu0 0
    %3352 = vmatpush1.bf16.msra.mxu0 0
    %3353 = vmatprep.subr.bf16.mxu0 0
    %3354 = vmatpush1.bf16.msra.mxu0 0
    %3355 = vmatprep.subr.bf16.mxu0 0
    %3356 = vmatpush1.bf16.msra.mxu0 0
    %3357 = vmatprep.mubr.bf16.mxu0 0
    %3358 = vmatmul.mubr.bf16.gmra.mrb[0].mxu0 %v3257
    %v3359 = vpop.f32.mrb[0].mxu0
    %v3360 = vadd.f32 0.0, %v3359
    %v3361 = vpop.f32.mrb[0].mxu0
    %v3362 = vpop.f32.mrb[0].mxu0
    %v3363 = vpop.f32.mrb[0].mxu0
    %3364 = vdwg.mxu0
    %3366 = vrot.lane.b32.xlu0 %v3324, 32
    %v3367 = vpop.permute.xlu0 %3366
    %v3369 = vsel %vm241, %v3367, 0
    %3371 = vmatprep.subr.bf16.mxu0 0
    %3372 = vmatpush1.bf16.msra.mxu0 %v2002
    %3373 = vmatprep.subr.bf16.mxu0 0
    %3374 = vmatpush1.bf16.msra.mxu0 %v2003
    %3375 = vmatprep.subr.bf16.mxu0 0
    %3376 = vmatpush1.bf16.msra.mxu0 0
    %3377 = vmatprep.subr.bf16.mxu0 0
    %3378 = vmatpush1.bf16.msra.mxu0 0
    %3379 = vmatprep.subr.bf16.mxu0 0
    %3380 = vmatpush1.bf16.msra.mxu0 0
    %3381 = vmatprep.subr.bf16.mxu0 0
    %3382 = vmatpush1.bf16.msra.mxu0 0
    %3383 = vmatprep.subr.bf16.mxu0 0
    %3384 = vmatpush1.bf16.msra.mxu0 0
    %3385 = vmatprep.subr.bf16.mxu0 0
    %3386 = vmatpush1.bf16.msra.mxu0 0
    %3387 = vmatprep.subr.bf16.mxu0 0
    %3388 = vmatpush1.bf16.msra.mxu0 0
    %3389 = vmatprep.subr.bf16.mxu0 0
    %3390 = vmatpush1.bf16.msra.mxu0 0
    %3391 = vmatprep.subr.bf16.mxu0 0
    %3392 = vmatpush1.bf16.msra.mxu0 0
    %3393 = vmatprep.subr.bf16.mxu0 0
    %3394 = vmatpush1.bf16.msra.mxu0 0
    %3395 = vmatprep.subr.bf16.mxu0 0
    %3396 = vmatpush1.bf16.msra.mxu0 0
    %3397 = vmatprep.subr.bf16.mxu0 0
    %3398 = vmatpush1.bf16.msra.mxu0 0
    %3399 = vmatprep.subr.bf16.mxu0 0
    %3400 = vmatpush1.bf16.msra.mxu0 0
    %3401 = vmatprep.subr.bf16.mxu0 0
    %3402 = vmatpush1.bf16.msra.mxu0 0
    %3403 = vmatprep.mubr.bf16.mxu0 0
    %3404 = vmatmul.mubr.bf16.gmra.mrb[0].mxu0 %v3369
    %v3405 = vpop.f32.mrb[0].mxu0
    %v3406 = vadd.f32 %v3360, %v3405
    %v3407 = vpop.f32.mrb[0].mxu0
    %v3408 = vpop.f32.mrb[0].mxu0
    %v3409 = vpop.f32.mrb[0].mxu0
    %3410 = vdwg.mxu0
    %v3411 = vadd.f32 %v3406, %v2049
    %v3412 = vxor.u32 %v3411, 2147483648
    %v3413 = vmul.f32 %v3412, 1.442695
    %v3414 = vpow.pop %v3413
    %v3415 = vadd.f32 %v3414, 1.0
    %v3416 = vrcp.pop %v3415
    %v3417 = vmul.f32 1.0, %v3416
    %v3418 = vtanh.pop %v3411
    %v3419 = vmul.f32 %v3417, %v3205
    %3421 = vrot.lane.b32.xlu0 %v3418, 64
    %v3422 = vpop.permute.xlu0 %3421
    %v3424 = vmul.f32 %v3417, %v3422
    %3426 = vrot.lane.b32.xlu0 %v3424, 32
    %v3427 = vpop.permute.xlu0 %3426
    %v3429 = vadd.f32 %v3419, %v3427
    %v3430 = vtanh.pop %v3429
    %3432 = vrot.lane.b32.xlu0 %v3430, 64
    %v3433 = vpop.permute.xlu0 %3432
    %v3435 = vmul.f32 %v3417, %v3433
    %v3436 = vpack.c.bf16 %v3435, %v3435
    %3437 = vmatprep.subr.bf16.mxu0 0
    %3438 = vmatpush1.bf16.msra.mxu0 %v1802
    %3439 = vmatprep.subr.bf16.mxu0 0
    %3440 = vmatpush1.bf16.msra.mxu0 %v1803
    %3441 = vmatprep.subr.bf16.mxu0 0
    %3442 = vmatpush1.bf16.msra.mxu0 0
    %3443 = vmatprep.subr.bf16.mxu0 0
    %3444 = vmatpush1.bf16.msra.mxu0 0
    %3445 = vmatprep.subr.bf16.mxu0 0
    %3446 = vmatpush1.bf16.msra.mxu0 0
    %3447 = vmatprep.subr.bf16.mxu0 0
    %3448 = vmatpush1.bf16.msra.mxu0 0
    %3449 = vmatprep.subr.bf16.mxu0 0
    %3450 = vmatpush1.bf16.msra.mxu0 0
    %3451 = vmatprep.subr.bf16.mxu0 0
    %3452 = vmatpush1.bf16.msra.mxu0 0
    %3453 = vmatprep.subr.bf16.mxu0 0
    %3454 = vmatpush1.bf16.msra.mxu0 0
    %3455 = vmatprep.subr.bf16.mxu0 0
    %3456 = vmatpush1.bf16.msra.mxu0 0
    %3457 = vmatprep.subr.bf16.mxu0 0
    %3458 = vmatpush1.bf16.msra.mxu0 0
    %3459 = vmatprep.subr.bf16.mxu0 0
    %3460 = vmatpush1.bf16.msra.mxu0 0
    %3461 = vmatprep.subr.bf16.mxu0 0
    %3462 = vmatpush1.bf16.msra.mxu0 0
    %3463 = vmatprep.subr.bf16.mxu0 0
    %3464 = vmatpush1.bf16.msra.mxu0 0
    %3465 = vmatprep.subr.bf16.mxu0 0
    %3466 = vmatpush1.bf16.msra.mxu0 0
    %3467 = vmatprep.subr.bf16.mxu0 0
    %3468 = vmatpush1.bf16.msra.mxu0 0
    %3469 = vmatprep.mubr.bf16.mxu0 0
    %3470 = vmatmul.mubr.bf16.gmra.mrb[0].mxu0 %v3369
    %v3471 = vpop.f32.mrb[0].mxu0
    %v3472 = vadd.f32 0.0, %v3471
    %v3473 = vpop.f32.mrb[0].mxu0
    %v3474 = vpop.f32.mrb[0].mxu0
    %v3475 = vpop.f32.mrb[0].mxu0
    %3476 = vdwg.mxu0
    %3478 = vrot.lane.b32.xlu0 %v3436, 32
    %v3479 = vpop.permute.xlu0 %3478
    %v3481 = vsel %vm241, %v3479, 0
    %3483 = vmatprep.subr.bf16.mxu0 0
    %3484 = vmatpush1.bf16.msra.mxu0 %v2131
    %3485 = vmatprep.subr.bf16.mxu0 0
    %3486 = vmatpush1.bf16.msra.mxu0 %v2132
    %3487 = vmatprep.subr.bf16.mxu0 0
    %3488 = vmatpush1.bf16.msra.mxu0 0
    %3489 = vmatprep.subr.bf16.mxu0 0
    %3490 = vmatpush1.bf16.msra.mxu0 0
    %3491 = vmatprep.subr.bf16.mxu0 0
    %3492 = vmatpush1.bf16.msra.mxu0 0
    %3493 = vmatprep.subr.bf16.mxu0 0
    %3494 = vmatpush1.bf16.msra.mxu0 0
    %3495 = vmatprep.subr.bf16.mxu0 0
    %3496 = vmatpush1.bf16.msra.mxu0 0
    %3497 = vmatprep.subr.bf16.mxu0 0
    %3498 = vmatpush1.bf16.msra.mxu0 0
    %3499 = vmatprep.subr.bf16.mxu0 0
    %3500 = vmatpush1.bf16.msra.mxu0 0
    %3501 = vmatprep.subr.bf16.mxu0 0
    %3502 = vmatpush1.bf16.msra.mxu0 0
    %3503 = vmatprep.subr.bf16.mxu0 0
    %3504 = vmatpush1.bf16.msra.mxu0 0
    %3505 = vmatprep.subr.bf16.mxu0 0
    %3506 = vmatpush1.bf16.msra.mxu0 0
    %3507 = vmatprep.subr.bf16.mxu0 0
    %3508 = vmatpush1.bf16.msra.mxu0 0
    %3509 = vmatprep.subr.bf16.mxu0 0
    %3510 = vmatpush1.bf16.msra.mxu0 0
    %3511 = vmatprep.subr.bf16.mxu0 0
    %3512 = vmatpush1.bf16.msra.mxu0 0
    %3513 = vmatprep.subr.bf16.mxu0 0
    %3514 = vmatpush1.bf16.msra.mxu0 0
    %3515 = vmatprep.mubr.bf16.mxu0 0
    %3516 = vmatmul.mubr.bf16.gmra.mrb[0].mxu0 %v3481
    %v3517 = vpop.f32.mrb[0].mxu0
    %v3518 = vadd.f32 %v3472, %v3517
    %v3519 = vpop.f32.mrb[0].mxu0
    %v3520 = vpop.f32.mrb[0].mxu0
    %v3521 = vpop.f32.mrb[0].mxu0
    %3522 = vdwg.mxu0
    %v3523 = vadd.f32 %v3518, %v2178
    %v3524 = vxor.u32 %v3523, 2147483648
    %v3525 = vmul.f32 %v3524, 1.442695
    %v3526 = vpow.pop %v3525
    %v3527 = vadd.f32 %v3526, 1.0
    %v3528 = vrcp.pop %v3527
    %v3529 = vmul.f32 1.0, %v3528
    %v3530 = vtanh.pop %v3523
    %v3531 = vmul.f32 %v3529, %v3317
    %3533 = vrot.lane.b32.xlu0 %v3530, 64
    %v3534 = vpop.permute.xlu0 %3533
    %v3536 = vmul.f32 %v3529, %v3534
    %3538 = vrot.lane.b32.xlu0 %v3536, 32
    %v3539 = vpop.permute.xlu0 %3538
    %v3541 = vadd.f32 %v3531, %v3539
    %v3542 = vtanh.pop %v3541
    %3544 = vrot.lane.b32.xlu0 %v3542, 64
    %v3545 = vpop.permute.xlu0 %3544
    %v3547 = vmul.f32 %v3529, %v3545
    %v3548 = vpack.c.bf16 %v3547, %v3547
    %3549 = vmatprep.subr.bf16.mxu0 0
    %3550 = vmatpush1.bf16.msra.mxu0 %v1947
    %3551 = vmatprep.subr.bf16.mxu0 0
    %3552 = vmatpush1.bf16.msra.mxu0 %v1948
    %3553 = vmatprep.subr.bf16.mxu0 0
    %3554 = vmatpush1.bf16.msra.mxu0 0
    %3555 = vmatprep.subr.bf16.mxu0 0
    %3556 = vmatpush1.bf16.msra.mxu0 0
    %3557 = vmatprep.subr.bf16.mxu0 0
    %3558 = vmatpush1.bf16.msra.mxu0 0
    %3559 = vmatprep.subr.bf16.mxu0 0
    %3560 = vmatpush1.bf16.msra.mxu0 0
    %3561 = vmatprep.subr.bf16.mxu0 0
    %3562 = vmatpush1.bf16.msra.mxu0 0
    %3563 = vmatprep.subr.bf16.mxu0 0
    %3564 = vmatpush1.bf16.msra.mxu0 0
    %3565 = vmatprep.subr.bf16.mxu0 0
    %3566 = vmatpush1.bf16.msra.mxu0 0
    %3567 = vmatprep.subr.bf16.mxu0 0
    %3568 = vmatpush1.bf16.msra.mxu0 0
    %3569 = vmatprep.subr.bf16.mxu0 0
    %3570 = vmatpush1.bf16.msra.mxu0 0
    %3571 = vmatprep.subr.bf16.mxu0 0
    %3572 = vmatpush1.bf16.msra.mxu0 0
    %3573 = vmatprep.subr.bf16.mxu0 0
    %3574 = vmatpush1.bf16.msra.mxu0 0
    %3575 = vmatprep.subr.bf16.mxu0 0
    %3576 = vmatpush1.bf16.msra.mxu0 0
    %3577 = vmatprep.subr.bf16.mxu0 0
    %3578 = vmatpush1.bf16.msra.mxu0 0
    %3579 = vmatprep.subr.bf16.mxu0 0
    %3580 = vmatpush1.bf16.msra.mxu0 0
    %3581 = vmatprep.mubr.bf16.mxu0 0
    %3582 = vmatmul.mubr.bf16.gmra.mrb[0].mxu0 %v3481
    %v3583 = vpop.f32.mrb[0].mxu0
    %v3584 = vadd.f32 0.0, %v3583
    %v3585 = vpop.f32.mrb[0].mxu0
    %v3586 = vpop.f32.mrb[0].mxu0
    %v3587 = vpop.f32.mrb[0].mxu0
    %3588 = vdwg.mxu0
    %3590 = vrot.lane.b32.xlu0 %v3548, 32
    %v3591 = vpop.permute.xlu0 %3590
    %v3593 = vsel %vm241, %v3591, 0
    %3595 = vmatprep.subr.bf16.mxu0 0
    %3596 = vmatpush1.bf16.msra.mxu0 %v2002
    %3597 = vmatprep.subr.bf16.mxu0 0
    %3598 = vmatpush1.bf16.msra.mxu0 %v2003
    %3599 = vmatprep.subr.bf16.mxu0 0
    %3600 = vmatpush1.bf16.msra.mxu0 0
    %3601 = vmatprep.subr.bf16.mxu0 0
    %3602 = vmatpush1.bf16.msra.mxu0 0
    %3603 = vmatprep.subr.bf16.mxu0 0
    %3604 = vmatpush1.bf16.msra.mxu0 0
    %3605 = vmatprep.subr.bf16.mxu0 0
    %3606 = vmatpush1.bf16.msra.mxu0 0
    %3607 = vmatprep.subr.bf16.mxu0 0
    %3608 = vmatpush1.bf16.msra.mxu0 0
    %3609 = vmatprep.subr.bf16.mxu0 0
    %3610 = vmatpush1.bf16.msra.mxu0 0
    %3611 = vmatprep.subr.bf16.mxu0 0
    %3612 = vmatpush1.bf16.msra.mxu0 0
    %3613 = vmatprep.subr.bf16.mxu0 0
    %3614 = vmatpush1.bf16.msra.mxu0 0
    %3615 = vmatprep.subr.bf16.mxu0 0
    %3616 = vmatpush1.bf16.msra.mxu0 0
    %3617 = vmatprep.subr.bf16.mxu0 0
    %3618 = vmatpush1.bf16.msra.mxu0 0
    %3619 = vmatprep.subr.bf16.mxu0 0
    %3620 = vmatpush1.bf16.msra.mxu0 0
    %3621 = vmatprep.subr.bf16.mxu0 0
    %3622 = vmatpush1.bf16.msra.mxu0 0
    %3623 = vmatprep.subr.bf16.mxu0 0
    %3624 = vmatpush1.bf16.msra.mxu0 0
    %3625 = vmatprep.subr.bf16.mxu0 0
    %3626 = vmatpush1.bf16.msra.mxu0 0
    %3627 = vmatprep.mubr.bf16.mxu0 0
    %3628 = vmatmul.mubr.bf16.gmra.mrb[0].mxu0 %v3593
    %v3629 = vpop.f32.mrb[0].mxu0
    %v3630 = vadd.f32 %v3584, %v3629
    %v3631 = vpop.f32.mrb[0].mxu0
    %v3632 = vpop.f32.mrb[0].mxu0
    %v3633 = vpop.f32.mrb[0].mxu0
    %3634 = vdwg.mxu0
    %v3635 = vadd.f32 %v3630, %v2049
    %v3636 = vxor.u32 %v3635, 2147483648
    %v3637 = vmul.f32 %v3636, 1.442695
    %v3638 = vpow.pop %v3637
    %v3639 = vadd.f32 %v3638, 1.0
    %v3640 = vrcp.pop %v3639
    %v3641 = vmul.f32 1.0, %v3640
    %v3642 = vtanh.pop %v3635
    %v3643 = vmul.f32 %v3641, %v3429
    %3645 = vrot.lane.b32.xlu0 %v3642, 64
    %v3646 = vpop.permute.xlu0 %3645
    %v3648 = vmul.f32 %v3641, %v3646
    %3650 = vrot.lane.b32.xlu0 %v3648, 32
    %v3651 = vpop.permute.xlu0 %3650
    %v3653 = vadd.f32 %v3643, %v3651
    %v3654 = vtanh.pop %v3653
    %3656 = vrot.lane.b32.xlu0 %v3654, 64
    %v3657 = vpop.permute.xlu0 %3656
    %v3659 = vmul.f32 %v3641, %v3657
    %3661 = vrot.lane.b32.xlu0 %v3547, 32
    %v3662 = vpop.permute.xlu0 %3661
    %3664 = vst.msk [vmem:[#allocation18] sm:$0x3] %vm1766, %v3662
    %3666 = vrot.lane.b32.xlu0 %v3541, 96
    %v3667 = vpop.permute.xlu0 %3666
    %3669 = vst.msk [vmem:[#allocation19] sm:$0x3] %vm1766, %v3667
    %3671 = vrot.lane.b32.xlu0 %v3659, 32
    %v3672 = vpop.permute.xlu0 %3671
    %s3674 = scalar_lea.vmem [#allocation18], 2
    %3675 = vst.msk [vmem:[%s3674] sm:$0x3] %vm1766, %v3672
    %3677 = vrot.lane.b32.xlu0 %v3653, 96
    %v3678 = vpop.permute.xlu0 %3677
    %s3680 = scalar_lea.vmem [#allocation19], 2
    %3681 = vst.msk [vmem:[%s3680] sm:$0x3] %vm1766, %v3678
    %v3683 = vrot.slane %v2315, 6
    %v3686 = vrot.slane %v2539, 4
    %v3689 = vrot.slane %v2763, 2
    %v3692 = vrot.slane %v3211, 6
    %v3695 = vrot.slane %v3435, 4
    %v3697 = vrot.slane %v3659, 2
    %v3699 = vsel %vm170, %v2074, %v3683
    %vm3700 = vcmask 1043456
    %v3701 = vsel %vm3700, %v3699, %v3686
    %vm3702 = vcmask 1045504
    %v3703 = vsel %vm3702, %v3701, %v3689
    %v3704 = vsel %vm170, %v2987, %v3692
    %v3705 = vsel %vm3700, %v3704, %v3695
    %v3706 = vsel %vm3702, %v3705, %v3697
    %v3707 = vld [vmem:[%s17] sm:$0xf]
    %v3708 = vld [vmem:[%s17 + $0x4] sm:$0xf]
    %v3709 = vld [vmem:[%s17 + $0x8] sm:$0xf]
    %v3710 = vld [vmem:[%s17 + $0xc] sm:$0xf]
    %v3711 = vpack.c.bf16 %v3706, %v3703
    %v3712 = vld [vmem:[%s18] sm:$0xff]
    %v3713 = vld [vmem:[%s18 + $0x8] sm:$0xff]
    %3715 = vrot.lane.b32.xlu0 %v3711, 32
    %v3716 = vpop.permute.xlu0 %3715
    %v3721 = vunpack.c.l.b16 %v3707
    %v3722 = vunpack.c.l.b16 %v3708
    %v3723 = vunpack.c.l.b16 %v3709
    %v3724 = vunpack.c.l.b16 %v3710
    %v3725 = vpack.c.b16 %v3722, %v3721
    %v3726 = vpack.c.b16 %v3724, %v3723
    %v3730 = vsel %vm241, %v3716, 0
    %3732 = vmatprep.subr.bf16.mxu0 0
    %3733 = vmatpush1.bf16.msra.mxu0 %v3725
    %3734 = vmatprep.subr.bf16.mxu0 0
    %3735 = vmatpush1.bf16.msra.mxu0 %v3726
    %3736 = vmatprep.subr.bf16.mxu0 0
    %3737 = vmatpush1.bf16.msra.mxu0 0
    %3738 = vmatprep.subr.bf16.mxu0 0
    %3739 = vmatpush1.bf16.msra.mxu0 0
    %3740 = vmatprep.subr.bf16.mxu0 0
    %3741 = vmatpush1.bf16.msra.mxu0 0
    %3742 = vmatprep.subr.bf16.mxu0 0
    %3743 = vmatpush1.bf16.msra.mxu0 0
    %3744 = vmatprep.subr.bf16.mxu0 0
    %3745 = vmatpush1.bf16.msra.mxu0 0
    %3746 = vmatprep.subr.bf16.mxu0 0
    %3747 = vmatpush1.bf16.msra.mxu0 0
    %3748 = vmatprep.subr.bf16.mxu0 0
    %3749 = vmatpush1.bf16.msra.mxu0 0
    %3750 = vmatprep.subr.bf16.mxu0 0
    %3751 = vmatpush1.bf16.msra.mxu0 0
    %3752 = vmatprep.subr.bf16.mxu0 0
    %3753 = vmatpush1.bf16.msra.mxu0 0
    %3754 = vmatprep.subr.bf16.mxu0 0
    %3755 = vmatpush1.bf16.msra.mxu0 0
    %3756 = vmatprep.subr.bf16.mxu0 0
    %3757 = vmatpush1.bf16.msra.mxu0 0
    %3758 = vmatprep.subr.bf16.mxu0 0
    %3759 = vmatpush1.bf16.msra.mxu0 0
    %3760 = vmatprep.subr.bf16.mxu0 0
    %3761 = vmatpush1.bf16.msra.mxu0 0
    %3762 = vmatprep.subr.bf16.mxu0 0
    %3763 = vmatpush1.bf16.msra.mxu0 0
    %3764 = vmatprep.mubr.bf16.mxu0 0
    %3765 = vmatmul.mubr.bf16.gmra.mrb[0].mxu0 %v3730
    %v3766 = vpop.f32.mrb[0].mxu0
    %v3767 = vadd.f32 %v3712, %v3766
    %v3768 = vpop.f32.mrb[0].mxu0
    %v3769 = vpop.f32.mrb[0].mxu0
    %v3770 = vadd.f32 %v3713, %v3769
    %v3771 = vpop.f32.mrb[0].mxu0
    %3772 = vdwg.mxu0
    %3773 = vst.msk [vmem:[%s19] sm:$0xff] %vm166, %v3767
    %3774 = vst.msk [vmem:[%s19 + $0x8] sm:$0xff] %vm166, %v3770
    // Predicated region
    $region106: #{sequence2_forward.1} parent=1 // pred_check
      _
    $region107: #{sequence2_forward.1} parent=1 // pred_check_branch
      %3776 = sbr.rel (0) target = $region109
    $region108: #{sequence2_forward.1} parent=1 // pred_region
      _
    $region109: #{sequence2_forward.1} parent=1 // pred_fallthru
      _
    // Predicated region
    $region110: #{sequence2_forward.1} parent=1 // pred_check
      _
    $region111: #{sequence2_forward.1} parent=1 // pred_check_branch
      %3778 = sbr.rel (0) target = $region113
    $region112: #{sequence2_forward.1} parent=1 // pred_region
      %s3780 = ssub.s32 64, 64
      %3781 = vsyncadd [#allocation5], %s3780
      %s3782 = sshll.u32 [#allocation15], 4
      %s3783 = int_to_ptr.vmem [resolvable:$true] %s3782
      %3788 = dma.vmem_to_hbm [thread:$0]  %s3783, 64, %s20, [#allocation5], 32, 32, 2
    $region113: #{sequence2_forward.1} parent=1 // pred_fallthru
      _
    // Predicated region
    $region114: #{sequence2_forward.1} parent=1 // pred_check
      _
    $region115: #{sequence2_forward.1} parent=1 // pred_check_branch
      %3790 = sbr.rel (0) target = $region117
    $region116: #{sequence2_forward.1} parent=1 // pred_region
      %s3792 = ssub.s32 64, 64
      %3793 = vsyncadd [#allocation17], %s3792
      %s3794 = sshll.u32 [#allocation16], 4
      %s3795 = int_to_ptr.vmem [resolvable:$true] %s3794
      %3800 = dma.vmem_to_hbm [thread:$0]  %s3795, 64, %s21, [#allocation17], 32, 32, 2
    $region117: #{sequence2_forward.1} parent=1 // pred_fallthru
      _
    // Predicated region
    $region118: #{sequence2_forward.1} parent=1 // pred_check
      _
    $region119: #{sequence2_forward.1} parent=1 // pred_check_branch
      %3802 = sbr.rel (0) target = $region121
    $region120: #{sequence2_forward.1} parent=1 // pred_region
      %s3804 = ssub.s32 64, 64
      %3805 = vsyncadd [#allocation17], %s3804
      %s3806 = sshll.u32 [#allocation18], 4
      %s3807 = int_to_ptr.vmem [resolvable:$true] %s3806
      %3812 = dma.vmem_to_hbm [thread:$0]  %s3807, 64, %s22, [#allocation17], 32, 32, 2
    $region121: #{sequence2_forward.1} parent=1 // pred_fallthru
      _
    // Predicated region
    $region122: #{sequence2_forward.1} parent=1 // pred_check
      _
    $region123: #{sequence2_forward.1} parent=1 // pred_check_branch
      %3814 = sbr.rel (0) target = $region125
    $region124: #{sequence2_forward.1} parent=1 // pred_region
      %s3816 = ssub.s32 64, 64
      %3817 = vsyncadd [#allocation20], %s3816
      %s3818 = sshll.u32 [#allocation19], 4
      %s3819 = int_to_ptr.vmem [resolvable:$true] %s3818
      %3824 = dma.vmem_to_hbm [thread:$0]  %s3819, 64, %s23, [#allocation20], 32, 32, 2
    $region125: #{sequence2_forward.1} parent=1 // pred_fallthru
      _
    // Predicated region
    $region126: #{sequence2_forward.1} parent=1 // pred_check
      _
    $region127: #{sequence2_forward.1} parent=1 // pred_check_branch
      %3826 = sbr.rel (0) target = $region129
    $region128: #{sequence2_forward.1} parent=1 // pred_region
      _
    $region129: #{sequence2_forward.1} parent=1 // pred_fallthru
      _
    // Predicated region
    $region130: #{sequence2_forward.1} parent=1 // pred_check
      _
    $region131: #{sequence2_forward.1} parent=1 // pred_check_branch
      %3828 = sbr.rel (0) target = $region133
    $region132: #{sequence2_forward.1} parent=1 // pred_region
      %3829 = dma.done [#allocation5], 64
    $region133: #{sequence2_forward.1} parent=1 // pred_fallthru
      _
    // Predicated region
    $region134: #{sequence2_forward.1} parent=1 // pred_check
      _
    $region135: #{sequence2_forward.1} parent=1 // pred_check_branch
      %3831 = sbr.rel (0) target = $region137
    $region136: #{sequence2_forward.1} parent=1 // pred_region
      %3832 = dma.done [#allocation17], 64
    $region137: #{sequence2_forward.1} parent=1 // pred_fallthru
      _
    // Predicated region
    $region138: #{sequence2_forward.1} parent=1 // pred_check
      _
    $region139: #{sequence2_forward.1} parent=1 // pred_check_branch
      %3834 = sbr.rel (0) target = $region141
    $region140: #{sequence2_forward.1} parent=1 // pred_region
      %3835 = dma.done [#allocation17], 64
    $region141: #{sequence2_forward.1} parent=1 // pred_fallthru
      _
    // Predicated region
    $region142: #{sequence2_forward.1} parent=1 // pred_check
      _
    $region143: #{sequence2_forward.1} parent=1 // pred_check_branch
      %3837 = sbr.rel (0) target = $region145
    $region144: #{sequence2_forward.1} parent=1 // pred_region
      %3838 = dma.done [#allocation20], 64
    $region145: #{sequence2_forward.1} parent=1 // pred_fallthru
      _
    %3839 = vsyncpa [#allocation4], 1
    %3840 = vsyncpa [#allocation7], 1
    %3841 = vsyncpa [#allocation10], 1
    %3842 = vsyncpa [#allocation13], 1
    %3843 = vsyncpa [#allocation5], 1
    %3844 = vsyncpa [#allocation17], 1
    %3845 = vsyncpa [#allocation20], 1

</llo_original>
